<compile_context>
chip_gen: v7x
topology: tpu7x:2x2x1
jax: 0.10.0
libtpu: 0.0.40
codegen_flags: <defaults>
</compile_context>

<pallas_src>
import jax
import jax.numpy as jnp
from jax.experimental import pallas as pl
from jax.experimental.pallas import tpu as pltpu


# ---------------------------------------------------------------------------
# Pallas kernels
# ---------------------------------------------------------------------------
def _conv_relu_pool_kernel(cols_ref, w_ref, b_ref, o_ref):
    """Fused conv (as matmul) + bias + ReLU + 2x2 max-pool.

    cols_ref : (4, Mq, Kp)  bf16 -- one im2col matrix per pool offset (dh, dw)
    w_ref    : (Kp, 128)    bf16 -- conv weights, K rows ordered (ki, kj, c)
    b_ref    : (1, 128)     f32
    o_ref    : (Mq, 128)    f32  -- pooled activations, rows ordered (n, oh2, ow2)
    """
    w = w_ref[...]
    b = b_ref[...]

    def branch(i):
        acc = jnp.dot(cols_ref[i], w, preferred_element_type=jnp.float32)
        return jnp.maximum(acc + b, 0.0)

    o_ref[...] = jnp.maximum(jnp.maximum(branch(0), branch(1)),
                             jnp.maximum(branch(2), branch(3)))


def _fc_block_kernel(x_ref, w1_ref, b1_ref, w2_ref, b2_ref, w3_ref, b3_ref,
                     o_ref):
    """Fused fc1+ReLU -> fc2+ReLU -> fc3 on a single resident block."""
    h = jnp.dot(x_ref[...], w1_ref[...], preferred_element_type=jnp.float32)
    h = jnp.maximum(h + b1_ref[...], 0.0)
    h = jnp.dot(h.astype(jnp.bfloat16), w2_ref[...],
                preferred_element_type=jnp.float32)
    h = jnp.maximum(h + b2_ref[...], 0.0)
    h = jnp.dot(h.astype(jnp.bfloat16), w3_ref[...],
                preferred_element_type=jnp.float32)
    o_ref[...] = h + b3_ref[...]


# ---------------------------------------------------------------------------
# pallas_call wrappers (single full-VMEM block; everything here is tiny)
# ---------------------------------------------------------------------------
def _full_spec(shape):
    return pl.BlockSpec(shape, lambda i: tuple(0 for _ in shape))


def conv_relu_pool_pallas(cols, w, b):
    """cols: (4, Mq, Kp) bf16, w: (Kp, 128) bf16, b: (1, 128) f32 -> (Mq, 128) f32."""
    _, mq, kp = cols.shape
    return pl.pallas_call(
        _conv_relu_pool_kernel,
        out_shape=jax.ShapeDtypeStruct((mq, 128), jnp.float32),
        grid=(1,),
        in_specs=[_full_spec((4, mq, kp)),
                  _full_spec((kp, 128)),
                  _full_spec((1, 128))],
        out_specs=_full_spec((mq, 128)),
        compiler_params=pltpu.CompilerParams(
            dimension_semantics=("arbitrary",)),
    )(cols, w, b)


def fc_block_pallas(x, w1, b1, w2, b2, w3, b3):
    """x: (N, K1) bf16 -> logits padded to (N, 128) f32."""
    n, k1 = x.shape
    return pl.pallas_call(
        _fc_block_kernel,
        out_shape=jax.ShapeDtypeStruct((n, 128), jnp.float32),
        grid=(1,),
        in_specs=[_full_spec((n, k1)),
                  _full_spec((k1, 128)), _full_spec((1, 128)),
                  _full_spec((128, 128)), _full_spec((1, 128)),
                  _full_spec((128, 128)), _full_spec((1, 128))],
        out_specs=_full_spec((n, 128)),
        compiler_params=pltpu.CompilerParams(
            dimension_semantics=("arbitrary",)),
    )(x, w1, b1, w2, b2, w3, b3)


# ---------------------------------------------------------------------------
# Wrapper-side glue: channels-last im2col split by 2x2-pool offset
# ---------------------------------------------------------------------------
def _im2col_pool(x_nhwc, kh, kw, k_pad):
    """x_nhwc: (N, H, W, C) -> (4, N*OH2*OW2, k_pad) bf16.

    Leading dim 4 enumerates the pool offsets (dh, dw); columns of each matrix
    are ordered (ki, kj, c); rows are ordered (n, oh2, ow2) so the kernel output
    is already the channels-last pooled feature map, flattened over (n, h', w').
    """
    n, h, w, c = x_nhwc.shape
    oh, ow = h - kh + 1, w - kw + 1
    oh2, ow2 = oh // 2, ow // 2
    pats = jnp.concatenate(
        [x_nhwc[:, i:i + oh, j:j + ow, :] for i in range(kh) for j in range(kw)],
        axis=-1)                                        # (N, OH, OW, KH*KW*C)
    offs = [pats[:, dh:dh + 2 * oh2:2, dw:dw + 2 * ow2:2, :]
            for dh in (0, 1) for dw in (0, 1)]          # 4 x (N, OH2, OW2, K)
    cols = jnp.stack(offs, axis=0).reshape(4, n * oh2 * ow2, kh * kw * c)
    if k_pad > kh * kw * c:
        cols = jnp.pad(cols, ((0, 0), (0, 0), (0, k_pad - kh * kw * c)))
    return cols.astype(jnp.bfloat16)


# ---------------------------------------------------------------------------
# Parameters
# ---------------------------------------------------------------------------
def init_params(key):
    """Deterministic PyTorch-default-style uniform init (PyTorch shapes)."""
    def uniform(k, shape, fan_in):
        bound = 1.0 / jnp.sqrt(jnp.float32(fan_in))
        return jax.random.uniform(k, shape, jnp.float32, -bound, bound)

    ks = jax.random.split(key, 10)
    p = {}
    p["conv1_w"] = uniform(ks[0], (6, 3, 5, 5), 3 * 5 * 5)
    p["conv1_b"] = uniform(ks[1], (6,), 3 * 5 * 5)
    p["conv2_w"] = uniform(ks[2], (16, 6, 5, 5), 6 * 5 * 5)
    p["conv2_b"] = uniform(ks[3], (16,), 6 * 5 * 5)
    p["fc1_w"] = uniform(ks[4], (120, 400), 400)   # PyTorch Linear: (out, in)
    p["fc1_b"] = uniform(ks[5], (120,), 400)
    p["fc2_w"] = uniform(ks[6], (84, 120), 120)
    p["fc2_b"] = uniform(ks[7], (84,), 120)
    p["fc3_w"] = uniform(ks[8], (10, 84), 84)
    p["fc3_b"] = uniform(ks[9], (10,), 84)
    return p


def prepare_params(p):
    """One-time layout prep: permute, pad to 128 lanes, cast matmul weights to bf16."""
    def pad2(a, rows, cols):
        r, c = a.shape
        return jnp.pad(a, ((0, rows - r), (0, cols - c)))

    prep = {}
    # conv1: (6,3,5,5) -> rows (ki,kj,c) x cols oc -> (128, 128)
    w = p["conv1_w"].transpose(2, 3, 1, 0).reshape(75, 6)
    prep["c1_w"] = pad2(w, 128, 128).astype(jnp.bfloat16)
    prep["c1_b"] = pad2(p["conv1_b"].reshape(1, 6), 1, 128).astype(jnp.float32)
    # conv2: (16,6,5,5) -> (150, 16) -> (256, 128)
    w = p["conv2_w"].transpose(2, 3, 1, 0).reshape(150, 16)
    prep["c2_w"] = pad2(w, 256, 128).astype(jnp.bfloat16)
    prep["c2_b"] = pad2(p["conv2_b"].reshape(1, 16), 1, 128).astype(jnp.float32)
    # fc1: PyTorch flatten order is (c,h,w); our flatten order is (h,w,c) -> fold
    # the permutation into the weight once:  W1[(h*5+w)*16 + c, f] = fc1_w[f, c, h, w]
    w = p["fc1_w"].reshape(120, 16, 5, 5).transpose(2, 3, 1, 0).reshape(400, 120)
    prep["fc1_w"] = pad2(w, 400, 128).astype(jnp.bfloat16)
    prep["fc1_b"] = pad2(p["fc1_b"].reshape(1, 120), 1, 128).astype(jnp.float32)
    prep["fc2_w"] = pad2(p["fc2_w"].T, 128, 128).astype(jnp.bfloat16)
    prep["fc2_b"] = pad2(p["fc2_b"].reshape(1, 84), 1, 128).astype(jnp.float32)
    prep["fc3_w"] = pad2(p["fc3_w"].T, 128, 128).astype(jnp.bfloat16)
    prep["fc3_b"] = pad2(p["fc3_b"].reshape(1, 10), 1, 128).astype(jnp.float32)
    return prep


# ---------------------------------------------------------------------------
# Forward pass (mirrors LeNet5.forward)
# ---------------------------------------------------------------------------
def lenet5_forward(prep, x):
    # x: (N, 3, 32, 32) f32, NCHW at the module boundary.
    n = x.shape[0]
    x_nhwc = jnp.transpose(x, (0, 2, 3, 1))                       # only layout transpose
    cols1 = _im2col_pool(x_nhwc, 5, 5, 128)                        # (4, N*196, 128)
    h1 = conv_relu_pool_pallas(cols1, prep["c1_w"], prep["c1_b"])  # (N*196, 128)
    h1_img = h1.reshape(n, 14, 14, 128)[..., :6]                   # (N,14,14,6)
    cols2 = _im2col_pool(h1_img, 5, 5, 256)                        # (4, N*25, 256)
    h2 = conv_relu_pool_pallas(cols2, prep["c2_w"], prep["c2_b"])  # (N*25, 128)
    flat = h2.reshape(n, 25, 128)[..., :16].reshape(n, 400)        # (h,w,c) flatten
    flat = flat.astype(jnp.bfloat16)
    logits_p = fc_block_pallas(flat, prep["fc1_w"], prep["fc1_b"],
                               prep["fc2_w"], prep["fc2_b"],
                               prep["fc3_w"], prep["fc3_b"])       # (N, 128)
    return logits_p[:, :10]


# ---------------------------------------------------------------------------
# Pure-JAX f32 reference for the sanity check
# ---------------------------------------------------------------------------
def lenet5_reference(params, x):
    dn = jax.lax.conv_dimension_numbers(x.shape, params["conv1_w"].shape,
                                        ("NCHW", "OIHW", "NCHW"))
    out = jax.lax.conv_general_dilated(x, params["conv1_w"], (1, 1), "VALID",
                                       dimension_numbers=dn)
    out = jax.nn.relu(out + params["conv1_b"][None, :, None, None])
    out = jax.lax.reduce_window(out, -jnp.inf, jax.lax.max,
                                (1, 1, 2, 2), (1, 1, 2, 2), "VALID")
    dn2 = jax.lax.conv_dimension_numbers(out.shape, params["conv2_w"].shape,
                                         ("NCHW", "OIHW", "NCHW"))
    out = jax.lax.conv_general_dilated(out, params["conv2_w"], (1, 1), "VALID",
                                       dimension_numbers=dn2)
    out = jax.nn.relu(out + params["conv2_b"][None, :, None, None])
    out = jax.lax.reduce_window(out, -jnp.inf, jax.lax.max,
                                (1, 1, 2, 2), (1, 1, 2, 2), "VALID")
    out = out.reshape(out.shape[0], -1)
    out = jax.nn.relu(out @ params["fc1_w"].T + params["fc1_b"])
    out = jax.nn.relu(out @ params["fc2_w"].T + params["fc2_b"])
    out = out @ params["fc3_w"].T + params["fc3_b"]
    return out


if __name__ == "__main__":
    key = jax.random.PRNGKey(0)
    pkey, xkey = jax.random.split(key)
    params = init_params(pkey)
    prep = prepare_params(params)

    # CIFAR-10 sized input implied by the module (16*5*5 flatten needs 32x32).
    x = jax.random.normal(xkey, (2, 3, 32, 32), dtype=jnp.float32)

    fwd = jax.jit(lenet5_forward)
    logits = jax.block_until_ready(fwd(prep, x))

    assert logits.shape == (2, 10), logits.shape
    ref = lenet5_reference(params, x)
    max_diff = float(jnp.max(jnp.abs(logits - ref)))
    # Matmuls run with bf16 inputs / f32 accumulation -> slightly looser tolerance.
    assert jnp.allclose(logits, ref, rtol=2e-2, atol=2e-2), (
        "mismatch vs reference: max abs diff = %f" % max_diff)

    print("KERNEL_OK")
</pallas_src>

<mosaic_0001>
module attributes {stable_mosaic.version = 11 : i64} {
  func.func @_conv_relu_pool_kernel(%arg0: i32, %arg1: memref<4x392x128xbf16, #tpu.memory_space<vmem>>, %arg2: memref<128x128xbf16, #tpu.memory_space<vmem>>, %arg3: memref<1x128xf32, #tpu.memory_space<vmem>>, %arg4: memref<392x128xf32, #tpu.memory_space<vmem>>) attributes {dimension_semantics = [#tpu.dimension_semantics<arbitrary>], iteration_bounds = array<i64: 1>, scalar_prefetch = 0 : i64, scratch_operands = 0 : i64, tpu.core_type = #tpu.core_type<tc>, window_params = [{pipeline_mode = #tpu.pipeline_mode<synchronous>, transform_indices = @transform_0, window_bounds = array<i64: 4, 392, 128>}, {pipeline_mode = #tpu.pipeline_mode<synchronous>, transform_indices = @transform_1, window_bounds = array<i64: 128, 128>}, {pipeline_mode = #tpu.pipeline_mode<synchronous>, transform_indices = @transform_2, window_bounds = array<i64: 1, 128>}, {pipeline_mode = #tpu.pipeline_mode<synchronous>, transform_indices = @transform_3, window_bounds = array<i64: 392, 128>}]} {
    %c0 = arith.constant 0 : index
    %c0_0 = arith.constant 0 : index
    %0 = vector.load %arg2[%c0, %c0_0] : memref<128x128xbf16, #tpu.memory_space<vmem>>, vector<128x128xbf16>
    %c0_1 = arith.constant 0 : index
    %c0_2 = arith.constant 0 : index
    %1 = vector.load %arg3[%c0_1, %c0_2] : memref<1x128xf32, #tpu.memory_space<vmem>>, vector<1x128xf32>
    %c0_3 = arith.constant 0 : index
    %c0_4 = arith.constant 0 : index
    %c0_5 = arith.constant 0 : index
    %2 = vector.load %arg1[%c0_3, %c0_4, %c0_5] : memref<4x392x128xbf16, #tpu.memory_space<vmem>>, vector<1x392x128xbf16>
    %3 = vector.shape_cast %2 : vector<1x392x128xbf16> to vector<392x128xbf16>
    %cst = arith.constant dense<0.000000e+00> : vector<392x128xf32>
    %4 = tpu.matmul %3, %0, %cst {dimension_numbers = #tpu.dot_dimension_numbers<[1], [0], [0], [1], [0, 0, 1, 1], [], []>} : vector<392x128xbf16>, vector<128x128xbf16>, vector<392x128xf32> -> vector<392x128xf32>
    %5 = vector.broadcast %1 : vector<1x128xf32> to vector<392x128xf32>
    %6 = arith.addf %4, %5 : vector<392x128xf32>
    %cst_6 = arith.constant 0.000000e+00 : f32
    %7 = vector.broadcast %cst_6 : f32 to vector<392x128xf32>
    %8 = arith.maximumf %6, %7 : vector<392x128xf32>
    %c1 = arith.constant 1 : index
    %c0_7 = arith.constant 0 : index
    %c0_8 = arith.constant 0 : index
    %9 = vector.load %arg1[%c1, %c0_7, %c0_8] : memref<4x392x128xbf16, #tpu.memory_space<vmem>>, vector<1x392x128xbf16>
    %10 = vector.shape_cast %9 : vector<1x392x128xbf16> to vector<392x128xbf16>
    %cst_9 = arith.constant dense<0.000000e+00> : vector<392x128xf32>
    %11 = tpu.matmul %10, %0, %cst_9 {dimension_numbers = #tpu.dot_dimension_numbers<[1], [0], [0], [1], [0, 0, 1, 1], [], []>} : vector<392x128xbf16>, vector<128x128xbf16>, vector<392x128xf32> -> vector<392x128xf32>
    %12 = vector.broadcast %1 : vector<1x128xf32> to vector<392x128xf32>
    %13 = arith.addf %11, %12 : vector<392x128xf32>
    %cst_10 = arith.constant 0.000000e+00 : f32
    %14 = vector.broadcast %cst_10 : f32 to vector<392x128xf32>
    %15 = arith.maximumf %13, %14 : vector<392x128xf32>
    %16 = arith.maximumf %8, %15 : vector<392x128xf32>
    %c2 = arith.constant 2 : index
    %c0_11 = arith.constant 0 : index
    %c0_12 = arith.constant 0 : index
    %17 = vector.load %arg1[%c2, %c0_11, %c0_12] : memref<4x392x128xbf16, #tpu.memory_space<vmem>>, vector<1x392x128xbf16>
    %18 = vector.shape_cast %17 : vector<1x392x128xbf16> to vector<392x128xbf16>
    %cst_13 = arith.constant dense<0.000000e+00> : vector<392x128xf32>
    %19 = tpu.matmul %18, %0, %cst_13 {dimension_numbers = #tpu.dot_dimension_numbers<[1], [0], [0], [1], [0, 0, 1, 1], [], []>} : vector<392x128xbf16>, vector<128x128xbf16>, vector<392x128xf32> -> vector<392x128xf32>
    %20 = vector.broadcast %1 : vector<1x128xf32> to vector<392x128xf32>
    %21 = arith.addf %19, %20 : vector<392x128xf32>
    %cst_14 = arith.constant 0.000000e+00 : f32
    %22 = vector.broadcast %cst_14 : f32 to vector<392x128xf32>
    %23 = arith.maximumf %21, %22 : vector<392x128xf32>
    %c3 = arith.constant 3 : index
    %c0_15 = arith.constant 0 : index
    %c0_16 = arith.constant 0 : index
    %24 = vector.load %arg1[%c3, %c0_15, %c0_16] : memref<4x392x128xbf16, #tpu.memory_space<vmem>>, vector<1x392x128xbf16>
    %25 = vector.shape_cast %24 : vector<1x392x128xbf16> to vector<392x128xbf16>
    %cst_17 = arith.constant dense<0.000000e+00> : vector<392x128xf32>
    %26 = tpu.matmul %25, %0, %cst_17 {dimension_numbers = #tpu.dot_dimension_numbers<[1], [0], [0], [1], [0, 0, 1, 1], [], []>} : vector<392x128xbf16>, vector<128x128xbf16>, vector<392x128xf32> -> vector<392x128xf32>
    %27 = vector.broadcast %1 : vector<1x128xf32> to vector<392x128xf32>
    %28 = arith.addf %26, %27 : vector<392x128xf32>
    %cst_18 = arith.constant 0.000000e+00 : f32
    %29 = vector.broadcast %cst_18 : f32 to vector<392x128xf32>
    %30 = arith.maximumf %28, %29 : vector<392x128xf32>
    %31 = arith.maximumf %23, %30 : vector<392x128xf32>
    %32 = arith.maximumf %16, %31 : vector<392x128xf32>
    %c0_19 = arith.constant 0 : index
    %c0_20 = arith.constant 0 : index
    %33 = vector.load %arg4[%c0_19, %c0_20] : memref<392x128xf32, #tpu.memory_space<vmem>>, vector<392x128xf32>
    tpu.vector_store %arg4[%c0_19, %c0_20], %32 {strides = array<i32>} : memref<392x128xf32, #tpu.memory_space<vmem>>, vector<392x128xf32>,
    return
  }
  func.func @transform_0(%arg0: i32) -> (i32, i32, i32) {
    %c0_i32 = arith.constant 0 : i32
    %c0_i32_0 = arith.constant 0 : i32
    %c0_i32_1 = arith.constant 0 : i32
    %c0_i32_2 = arith.constant 0 : i32
    return %c0_i32, %c0_i32_0, %c0_i32_1 : i32, i32, i32
  }
  func.func @transform_1(%arg0: i32) -> (i32, i32) {
    %c0_i32 = arith.constant 0 : i32
    %c0_i32_0 = arith.constant 0 : i32
    %c0_i32_1 = arith.constant 0 : i32
    return %c0_i32, %c0_i32_0 : i32, i32
  }
  func.func @transform_2(%arg0: i32) -> (i32, i32) {
    %c0_i32 = arith.constant 0 : i32
    %c0_i32_0 = arith.constant 0 : i32
    %c0_i32_1 = arith.constant 0 : i32
    return %c0_i32, %c0_i32_0 : i32, i32
  }
  func.func @transform_3(%arg0: i32) -> (i32, i32) {
    %c0_i32 = arith.constant 0 : i32
    %c0_i32_0 = arith.constant 0 : i32
    %c0_i32_1 = arith.constant 0 : i32
    return %c0_i32, %c0_i32_0 : i32, i32
  }
}

module attributes {stable_mosaic.version = 11 : i64} {
  func.func @_conv_relu_pool_kernel(%arg0: i32, %arg1: memref<4x50x256xbf16, #tpu.memory_space<vmem>>, %arg2: memref<256x128xbf16, #tpu.memory_space<vmem>>, %arg3: memref<1x128xf32, #tpu.memory_space<vmem>>, %arg4: memref<50x128xf32, #tpu.memory_space<vmem>>) attributes {dimension_semantics = [#tpu.dimension_semantics<arbitrary>], iteration_bounds = array<i64: 1>, scalar_prefetch = 0 : i64, scratch_operands = 0 : i64, tpu.core_type = #tpu.core_type<tc>, window_params = [{pipeline_mode = #tpu.pipeline_mode<synchronous>, transform_indices = @transform_0, window_bounds = array<i64: 4, 50, 256>}, {pipeline_mode = #tpu.pipeline_mode<synchronous>, transform_indices = @transform_1, window_bounds = array<i64: 256, 128>}, {pipeline_mode = #tpu.pipeline_mode<synchronous>, transform_indices = @transform_2, window_bounds = array<i64: 1, 128>}, {pipeline_mode = #tpu.pipeline_mode<synchronous>, transform_indices = @transform_3, window_bounds = array<i64: 50, 128>}]} {
    %c0 = arith.constant 0 : index
    %c0_0 = arith.constant 0 : index
    %0 = vector.load %arg2[%c0, %c0_0] : memref<256x128xbf16, #tpu.memory_space<vmem>>, vector<256x128xbf16>
    %c0_1 = arith.constant 0 : index
    %c0_2 = arith.constant 0 : index
    %1 = vector.load %arg3[%c0_1, %c0_2] : memref<1x128xf32, #tpu.memory_space<vmem>>, vector<1x128xf32>
    %c0_3 = arith.constant 0 : index
    %c0_4 = arith.constant 0 : index
    %c0_5 = arith.constant 0 : index
    %2 = vector.load %arg1[%c0_3, %c0_4, %c0_5] : memref<4x50x256xbf16, #tpu.memory_space<vmem>>, vector<1x50x256xbf16>
    %3 = vector.shape_cast %2 : vector<1x50x256xbf16> to vector<50x256xbf16>
    %cst = arith.constant dense<0.000000e+00> : vector<50x128xf32>
    %4 = tpu.matmul %3, %0, %cst {dimension_numbers = #tpu.dot_dimension_numbers<[1], [0], [0], [1], [0, 0, 1, 1], [], []>} : vector<50x256xbf16>, vector<256x128xbf16>, vector<50x128xf32> -> vector<50x128xf32>
    %5 = vector.broadcast %1 : vector<1x128xf32> to vector<50x128xf32>
    %6 = arith.addf %4, %5 : vector<50x128xf32>
    %cst_6 = arith.constant 0.000000e+00 : f32
    %7 = vector.broadcast %cst_6 : f32 to vector<50x128xf32>
    %8 = arith.maximumf %6, %7 : vector<50x128xf32>
    %c1 = arith.constant 1 : index
    %c0_7 = arith.constant 0 : index
    %c0_8 = arith.constant 0 : index
    %9 = vector.load %arg1[%c1, %c0_7, %c0_8] : memref<4x50x256xbf16, #tpu.memory_space<vmem>>, vector<1x50x256xbf16>
    %10 = vector.shape_cast %9 : vector<1x50x256xbf16> to vector<50x256xbf16>
    %cst_9 = arith.constant dense<0.000000e+00> : vector<50x128xf32>
    %11 = tpu.matmul %10, %0, %cst_9 {dimension_numbers = #tpu.dot_dimension_numbers<[1], [0], [0], [1], [0, 0, 1, 1], [], []>} : vector<50x256xbf16>, vector<256x128xbf16>, vector<50x128xf32> -> vector<50x128xf32>
    %12 = vector.broadcast %1 : vector<1x128xf32> to vector<50x128xf32>
    %13 = arith.addf %11, %12 : vector<50x128xf32>
    %cst_10 = arith.constant 0.000000e+00 : f32
    %14 = vector.broadcast %cst_10 : f32 to vector<50x128xf32>
    %15 = arith.maximumf %13, %14 : vector<50x128xf32>
    %16 = arith.maximumf %8, %15 : vector<50x128xf32>
    %c2 = arith.constant 2 : index
    %c0_11 = arith.constant 0 : index
    %c0_12 = arith.constant 0 : index
    %17 = vector.load %arg1[%c2, %c0_11, %c0_12] : memref<4x50x256xbf16, #tpu.memory_space<vmem>>, vector<1x50x256xbf16>
    %18 = vector.shape_cast %17 : vector<1x50x256xbf16> to vector<50x256xbf16>
    %cst_13 = arith.constant dense<0.000000e+00> : vector<50x128xf32>
    %19 = tpu.matmul %18, %0, %cst_13 {dimension_numbers = #tpu.dot_dimension_numbers<[1], [0], [0], [1], [0, 0, 1, 1], [], []>} : vector<50x256xbf16>, vector<256x128xbf16>, vector<50x128xf32> -> vector<50x128xf32>
    %20 = vector.broadcast %1 : vector<1x128xf32> to vector<50x128xf32>
    %21 = arith.addf %19, %20 : vector<50x128xf32>
    %cst_14 = arith.constant 0.000000e+00 : f32
    %22 = vector.broadcast %cst_14 : f32 to vector<50x128xf32>
    %23 = arith.maximumf %21, %22 : vector<50x128xf32>
    %c3 = arith.constant 3 : index
    %c0_15 = arith.constant 0 : index
    %c0_16 = arith.constant 0 : index
    %24 = vector.load %arg1[%c3, %c0_15, %c0_16] : memref<4x50x256xbf16, #tpu.memory_space<vmem>>, vector<1x50x256xbf16>
    %25 = vector.shape_cast %24 : vector<1x50x256xbf16> to vector<50x256xbf16>
    %cst_17 = arith.constant dense<0.000000e+00> : vector<50x128xf32>
    %26 = tpu.matmul %25, %0, %cst_17 {dimension_numbers = #tpu.dot_dimension_numbers<[1], [0], [0], [1], [0, 0, 1, 1], [], []>} : vector<50x256xbf16>, vector<256x128xbf16>, vector<50x128xf32> -> vector<50x128xf32>
    %27 = vector.broadcast %1 : vector<1x128xf32> to vector<50x128xf32>
    %28 = arith.addf %26, %27 : vector<50x128xf32>
    %cst_18 = arith.constant 0.000000e+00 : f32
    %29 = vector.broadcast %cst_18 : f32 to vector<50x128xf32>
    %30 = arith.maximumf %28, %29 : vector<50x128xf32>
    %31 = arith.maximumf %23, %30 : vector<50x128xf32>
    %32 = arith.maximumf %16, %31 : vector<50x128xf32>
    %c0_19 = arith.constant 0 : index
    %c0_20 = arith.constant 0 : index
    %33 = vector.load %arg4[%c0_19, %c0_20] : memref<50x128xf32, #tpu.memory_space<vmem>>, vector<50x128xf32>
    tpu.vector_store %arg4[%c0_19, %c0_20], %32 {strides = array<i32>} : memref<50x128xf32, #tpu.memory_space<vmem>>, vector<50x128xf32>,
    return
  }
  func.func @transform_0(%arg0: i32) -> (i32, i32, i32) {
    %c0_i32 = arith.constant 0 : i32
    %c0_i32_0 = arith.constant 0 : i32
    %c0_i32_1 = arith.constant 0 : i32
    %c0_i32_2 = arith.constant 0 : i32
    return %c0_i32, %c0_i32_0, %c0_i32_1 : i32, i32, i32
  }
  func.func @transform_1(%arg0: i32) -> (i32, i32) {
    %c0_i32 = arith.constant 0 : i32
    %c0_i32_0 = arith.constant 0 : i32
    %c0_i32_1 = arith.constant 0 : i32
    return %c0_i32, %c0_i32_0 : i32, i32
  }
  func.func @transform_2(%arg0: i32) -> (i32, i32) {
    %c0_i32 = arith.constant 0 : i32
    %c0_i32_0 = arith.constant 0 : i32
    %c0_i32_1 = arith.constant 0 : i32
    return %c0_i32, %c0_i32_0 : i32, i32
  }
  func.func @transform_3(%arg0: i32) -> (i32, i32) {
    %c0_i32 = arith.constant 0 : i32
    %c0_i32_0 = arith.constant 0 : i32
    %c0_i32_1 = arith.constant 0 : i32
    return %c0_i32, %c0_i32_0 : i32, i32
  }
}

module attributes {stable_mosaic.version = 11 : i64} {
  func.func @_fc_block_kernel(%arg0: i32, %arg1: memref<2x400xbf16, #tpu.memory_space<vmem>>, %arg2: memref<400x128xbf16, #tpu.memory_space<vmem>>, %arg3: memref<1x128xf32, #tpu.memory_space<vmem>>, %arg4: memref<128x128xbf16, #tpu.memory_space<vmem>>, %arg5: memref<1x128xf32, #tpu.memory_space<vmem>>, %arg6: memref<128x128xbf16, #tpu.memory_space<vmem>>, %arg7: memref<1x128xf32, #tpu.memory_space<vmem>>, %arg8: memref<2x128xf32, #tpu.memory_space<vmem>>) attributes {dimension_semantics = [#tpu.dimension_semantics<arbitrary>], iteration_bounds = array<i64: 1>, scalar_prefetch = 0 : i64, scratch_operands = 0 : i64, tpu.core_type = #tpu.core_type<tc>, window_params = [{pipeline_mode = #tpu.pipeline_mode<synchronous>, transform_indices = @transform_0, window_bounds = array<i64: 2, 400>}, {pipeline_mode = #tpu.pipeline_mode<synchronous>, transform_indices = @transform_1, window_bounds = array<i64: 400, 128>}, {pipeline_mode = #tpu.pipeline_mode<synchronous>, transform_indices = @transform_2, window_bounds = array<i64: 1, 128>}, {pipeline_mode = #tpu.pipeline_mode<synchronous>, transform_indices = @transform_3, window_bounds = array<i64: 128, 128>}, {pipeline_mode = #tpu.pipeline_mode<synchronous>, transform_indices = @transform_4, window_bounds = array<i64: 1, 128>}, {pipeline_mode = #tpu.pipeline_mode<synchronous>, transform_indices = @transform_5, window_bounds = array<i64: 128, 128>}, {pipeline_mode = #tpu.pipeline_mode<synchronous>, transform_indices = @transform_6, window_bounds = array<i64: 1, 128>}, {pipeline_mode = #tpu.pipeline_mode<synchronous>, transform_indices = @transform_7, window_bounds = array<i64: 2, 128>}]} {
    %c0 = arith.constant 0 : index
    %c0_0 = arith.constant 0 : index
    %0 = vector.load %arg1[%c0, %c0_0] : memref<2x400xbf16, #tpu.memory_space<vmem>>, vector<2x400xbf16>
    %c0_1 = arith.constant 0 : index
    %c0_2 = arith.constant 0 : index
    %1 = vector.load %arg2[%c0_1, %c0_2] : memref<400x128xbf16, #tpu.memory_space<vmem>>, vector<400x128xbf16>
    %cst = arith.constant dense<0.000000e+00> : vector<2x128xf32>
    %2 = tpu.matmul %0, %1, %cst {dimension_numbers = #tpu.dot_dimension_numbers<[1], [0], [0], [1], [0, 0, 1, 1], [], []>} : vector<2x400xbf16>, vector<400x128xbf16>, vector<2x128xf32> -> vector<2x128xf32>
    %c0_3 = arith.constant 0 : index
    %c0_4 = arith.constant 0 : index
    %3 = vector.load %arg3[%c0_3, %c0_4] : memref<1x128xf32, #tpu.memory_space<vmem>>, vector<1x128xf32>
    %4 = vector.broadcast %3 : vector<1x128xf32> to vector<2x128xf32>
    %5 = arith.addf %2, %4 : vector<2x128xf32>
    %cst_5 = arith.constant 0.000000e+00 : f32
    %6 = vector.broadcast %cst_5 : f32 to vector<2x128xf32>
    %7 = arith.maximumf %5, %6 : vector<2x128xf32>
    %8 = arith.truncf %7 : vector<2x128xf32> to vector<2x128xbf16>
    %c0_6 = arith.constant 0 : index
    %c0_7 = arith.constant 0 : index
    %9 = vector.load %arg4[%c0_6, %c0_7] : memref<128x128xbf16, #tpu.memory_space<vmem>>, vector<128x128xbf16>
    %cst_8 = arith.constant dense<0.000000e+00> : vector<2x128xf32>
    %10 = tpu.matmul %8, %9, %cst_8 {dimension_numbers = #tpu.dot_dimension_numbers<[1], [0], [0], [1], [0, 0, 1, 1], [], []>} : vector<2x128xbf16>, vector<128x128xbf16>, vector<2x128xf32> -> vector<2x128xf32>
    %c0_9 = arith.constant 0 : index
    %c0_10 = arith.constant 0 : index
    %11 = vector.load %arg5[%c0_9, %c0_10] : memref<1x128xf32, #tpu.memory_space<vmem>>, vector<1x128xf32>
    %12 = vector.broadcast %11 : vector<1x128xf32> to vector<2x128xf32>
    %13 = arith.addf %10, %12 : vector<2x128xf32>
    %cst_11 = arith.constant 0.000000e+00 : f32
    %14 = vector.broadcast %cst_11 : f32 to vector<2x128xf32>
    %15 = arith.maximumf %13, %14 : vector<2x128xf32>
    %16 = arith.truncf %15 : vector<2x128xf32> to vector<2x128xbf16>
    %c0_12 = arith.constant 0 : index
    %c0_13 = arith.constant 0 : index
    %17 = vector.load %arg6[%c0_12, %c0_13] : memref<128x128xbf16, #tpu.memory_space<vmem>>, vector<128x128xbf16>
    %cst_14 = arith.constant dense<0.000000e+00> : vector<2x128xf32>
    %18 = tpu.matmul %16, %17, %cst_14 {dimension_numbers = #tpu.dot_dimension_numbers<[1], [0], [0], [1], [0, 0, 1, 1], [], []>} : vector<2x128xbf16>, vector<128x128xbf16>, vector<2x128xf32> -> vector<2x128xf32>
    %c0_15 = arith.constant 0 : index
    %c0_16 = arith.constant 0 : index
    %19 = vector.load %arg7[%c0_15, %c0_16] : memref<1x128xf32, #tpu.memory_space<vmem>>, vector<1x128xf32>
    %20 = vector.broadcast %19 : vector<1x128xf32> to vector<2x128xf32>
    %21 = arith.addf %18, %20 : vector<2x128xf32>
    %c0_17 = arith.constant 0 : index
    %c0_18 = arith.constant 0 : index
    %22 = vector.load %arg8[%c0_17, %c0_18] : memref<2x128xf32, #tpu.memory_space<vmem>>, vector<2x128xf32>
    tpu.vector_store %arg8[%c0_17, %c0_18], %21 {strides = array<i32>} : memref<2x128xf32, #tpu.memory_space<vmem>>, vector<2x128xf32>,
    return
  }
  func.func @transform_0(%arg0: i32) -> (i32, i32) {
    %c0_i32 = arith.constant 0 : i32
    %c0_i32_0 = arith.constant 0 : i32
    %c0_i32_1 = arith.constant 0 : i32
    return %c0_i32, %c0_i32_0 : i32, i32
  }
  func.func @transform_1(%arg0: i32) -> (i32, i32) {
    %c0_i32 = arith.constant 0 : i32
    %c0_i32_0 = arith.constant 0 : i32
    %c0_i32_1 = arith.constant 0 : i32
    return %c0_i32, %c0_i32_0 : i32, i32
  }
  func.func @transform_2(%arg0: i32) -> (i32, i32) {
    %c0_i32 = arith.constant 0 : i32
    %c0_i32_0 = arith.constant 0 : i32
    %c0_i32_1 = arith.constant 0 : i32
    return %c0_i32, %c0_i32_0 : i32, i32
  }
  func.func @transform_3(%arg0: i32) -> (i32, i32) {
    %c0_i32 = arith.constant 0 : i32
    %c0_i32_0 = arith.constant 0 : i32
    %c0_i32_1 = arith.constant 0 : i32
    return %c0_i32, %c0_i32_0 : i32, i32
  }
  func.func @transform_4(%arg0: i32) -> (i32, i32) {
    %c0_i32 = arith.constant 0 : i32
    %c0_i32_0 = arith.constant 0 : i32
    %c0_i32_1 = arith.constant 0 : i32
    return %c0_i32, %c0_i32_0 : i32, i32
  }
  func.func @transform_5(%arg0: i32) -> (i32, i32) {
    %c0_i32 = arith.constant 0 : i32
    %c0_i32_0 = arith.constant 0 : i32
    %c0_i32_1 = arith.constant 0 : i32
    return %c0_i32, %c0_i32_0 : i32, i32
  }
  func.func @transform_6(%arg0: i32) -> (i32, i32) {
    %c0_i32 = arith.constant 0 : i32
    %c0_i32_0 = arith.constant 0 : i32
    %c0_i32_1 = arith.constant 0 : i32
    return %c0_i32, %c0_i32_0 : i32, i32
  }
  func.func @transform_7(%arg0: i32) -> (i32, i32) {
    %c0_i32 = arith.constant 0 : i32
    %c0_i32_0 = arith.constant 0 : i32
    %c0_i32_1 = arith.constant 0 : i32
    return %c0_i32, %c0_i32_0 : i32, i32
  }
}

</mosaic_0001>

<llo_original>
// kernel: lenet5_forward.3
$region0: #{lenet5_forward.3}
  #allocation0 [shape = 'u32[]', space=smem, size = 0x4, offset = 0x4, fixed_abs, tag = 'smem constant byte address 0x4 - core index']
  #allocation1 [shape = 'u32[144,128]{1,0:T(1,128)}', space=vmem, size = 0x12000, scoped, tag = 'internal scratch']
  %s0 = inlined_call_operand.vmem [shape: bf16[4,392,128], index: 0, kind: input, shape index: {}]
  %s1 = inlined_call_operand.vmem [shape: bf16[128,128], index: 1, kind: input, shape index: {}]
  %s2 = inlined_call_operand.vmem [shape: f32[1,128], index: 2, kind: input, shape index: {}]
  %s3 = inlined_call_operand.vmem [shape: f32[392,128], index: 3, kind: output, shape index: {}]
  %s4 = sld [smem:[#allocation0]]
  $region22: #{lenet5_forward.3} parent=0
    _
  %s6 = ssub.s32 1, %s4
  %s7 = scalar_select 0, %s6, %s4
  // Predicated region
  $region2: #{lenet5_forward.3} parent=0 // pred_check
    _
  $region3: #{lenet5_forward.3} parent=0 // pred_check_branch
    %9 = sbr.rel (0) target = $region5
  $region4: #{lenet5_forward.3} parent=0 // pred_region
    _
  $region5: #{lenet5_forward.3} parent=0 // pred_fallthru
    _
  // Predicated region
  $region6: #{lenet5_forward.3} parent=0 // pred_check
    _
  $region7: #{lenet5_forward.3} parent=0 // pred_check_branch
    %11 = sbr.rel (0) target = $region9
  $region8: #{lenet5_forward.3} parent=0 // pred_region
    _
  $region9: #{lenet5_forward.3} parent=0 // pred_fallthru
    _
  // Predicated region
  $region10: #{lenet5_forward.3} parent=0 // pred_check
    _
  $region11: #{lenet5_forward.3} parent=0 // pred_check_branch
    %13 = sbr.rel (0) target = $region13
  $region12: #{lenet5_forward.3} parent=0 // pred_region
    _
  $region13: #{lenet5_forward.3} parent=0 // pred_fallthru
    _
  %v15 = vld [vmem:[%s1] sm:$0xf]
  %v16 = vld [vmem:[%s1 + $0x4] sm:$0xf]
  %v17 = vld [vmem:[%s1 + $0x8] sm:$0xf]
  %v18 = vld [vmem:[%s1 + $0xc] sm:$0xf]
  %v19 = vld [vmem:[%s1 + $0x10] sm:$0xf]
  %v20 = vld [vmem:[%s1 + $0x14] sm:$0xf]
  %v21 = vld [vmem:[%s1 + $0x18] sm:$0xf]
  %v22 = vld [vmem:[%s1 + $0x1c] sm:$0xf]
  %v23 = vld [vmem:[%s1 + $0x20] sm:$0xf]
  %v24 = vld [vmem:[%s1 + $0x24] sm:$0xf]
  %v25 = vld [vmem:[%s1 + $0x28] sm:$0xf]
  %v26 = vld [vmem:[%s1 + $0x2c] sm:$0xf]
  %v27 = vld [vmem:[%s1 + $0x30] sm:$0xf]
  %v28 = vld [vmem:[%s1 + $0x34] sm:$0xf]
  %v29 = vld [vmem:[%s1 + $0x38] sm:$0xf]
  %v30 = vld [vmem:[%s1 + $0x3c] sm:$0xf]
  %v31 = vld [vmem:[%s2] sm:$0x1]
  %v32 = vld [vmem:[%s0] sm:$0xf]
  %v33 = vld [vmem:[%s0 + $0x4] sm:$0xf]
  %v34 = vld [vmem:[%s0 + $0x8] sm:$0xf]
  %v35 = vld [vmem:[%s0 + $0xc] sm:$0xf]
  %v36 = vld [vmem:[%s0 + $0x10] sm:$0xf]
  %v37 = vld [vmem:[%s0 + $0x14] sm:$0xf]
  %v38 = vld [vmem:[%s0 + $0x18] sm:$0xf]
  %v39 = vld [vmem:[%s0 + $0x1c] sm:$0xf]
  %v40 = vld [vmem:[%s0 + $0x20] sm:$0xf]
  %v41 = vld [vmem:[%s0 + $0x24] sm:$0xf]
  %v42 = vld [vmem:[%s0 + $0x28] sm:$0xf]
  %v43 = vld [vmem:[%s0 + $0x2c] sm:$0xf]
  %v44 = vld [vmem:[%s0 + $0x30] sm:$0xf]
  %v45 = vld [vmem:[%s0 + $0x34] sm:$0xf]
  %v46 = vld [vmem:[%s0 + $0x38] sm:$0xf]
  %v47 = vld [vmem:[%s0 + $0x3c] sm:$0xf]
  %v48 = vld [vmem:[%s0 + $0x40] sm:$0xf]
  %v49 = vld [vmem:[%s0 + $0x44] sm:$0xf]
  %v50 = vld [vmem:[%s0 + $0x48] sm:$0xf]
  %v51 = vld [vmem:[%s0 + $0x4c] sm:$0xf]
  %v52 = vld [vmem:[%s0 + $0x50] sm:$0xf]
  %v53 = vld [vmem:[%s0 + $0x54] sm:$0xf]
  %v54 = vld [vmem:[%s0 + $0x58] sm:$0xf]
  %v55 = vld [vmem:[%s0 + $0x5c] sm:$0xf]
  %v56 = vld [vmem:[%s0 + $0x60] sm:$0xf]
  %v57 = vld [vmem:[%s0 + $0x64] sm:$0xf]
  %v58 = vld [vmem:[%s0 + $0x68] sm:$0xf]
  %v59 = vld [vmem:[%s0 + $0x6c] sm:$0xf]
  %v60 = vld [vmem:[%s0 + $0x70] sm:$0xf]
  %v61 = vld [vmem:[%s0 + $0x74] sm:$0xf]
  %v62 = vld [vmem:[%s0 + $0x78] sm:$0xf]
  %v63 = vld [vmem:[%s0 + $0x7c] sm:$0xf]
  %v64 = vld [vmem:[%s0 + $0x80] sm:$0xf]
  %v65 = vld [vmem:[%s0 + $0x84] sm:$0xf]
  %v66 = vld [vmem:[%s0 + $0x88] sm:$0xf]
  %v67 = vld [vmem:[%s0 + $0x8c] sm:$0xf]
  %v68 = vld [vmem:[%s0 + $0x90] sm:$0xf]
  %v69 = vld [vmem:[%s0 + $0x94] sm:$0xf]
  %v70 = vld [vmem:[%s0 + $0x98] sm:$0xf]
  %v71 = vld [vmem:[%s0 + $0x9c] sm:$0xf]
  %v72 = vld [vmem:[%s0 + $0xa0] sm:$0xf]
  %v73 = vld [vmem:[%s0 + $0xa4] sm:$0xf]
  %v74 = vld [vmem:[%s0 + $0xa8] sm:$0xf]
  %v75 = vld [vmem:[%s0 + $0xac] sm:$0xf]
  %v76 = vld [vmem:[%s0 + $0xb0] sm:$0xf]
  %v77 = vld [vmem:[%s0 + $0xb4] sm:$0xf]
  %v78 = vld [vmem:[%s0 + $0xb8] sm:$0xf]
  %v79 = vld [vmem:[%s0 + $0xbc] sm:$0xf]
  %v80 = vld [vmem:[%s0 + $0xc0] sm:$0xf]
  %v82 = vlaneseq
  %v83 = vshrl.u32 %v82, 7
  %v84 = vsub.s32 0, %v83
  %v85 = vrot.slane %v31, %v84
  %v136 = vunpack.c.l.b16 %v32
  %v137 = vunpack.c.l.b16 %v33
  %v138 = vunpack.c.l.b16 %v34
  %v139 = vunpack.c.l.b16 %v35
  %v140 = vunpack.c.l.b16 %v36
  %v141 = vunpack.c.l.b16 %v37
  %v142 = vunpack.c.l.b16 %v38
  %v143 = vunpack.c.l.b16 %v39
  %v144 = vunpack.c.l.b16 %v40
  %v145 = vunpack.c.l.b16 %v41
  %v146 = vunpack.c.l.b16 %v42
  %v147 = vunpack.c.l.b16 %v43
  %v148 = vunpack.c.l.b16 %v44
  %v149 = vunpack.c.l.b16 %v45
  %v150 = vunpack.c.l.b16 %v46
  %v151 = vunpack.c.l.b16 %v47
  %v152 = vunpack.c.l.b16 %v48
  %v153 = vunpack.c.l.b16 %v49
  %v154 = vunpack.c.l.b16 %v50
  %v155 = vunpack.c.l.b16 %v51
  %v156 = vunpack.c.l.b16 %v52
  %v157 = vunpack.c.l.b16 %v53
  %v158 = vunpack.c.l.b16 %v54
  %v159 = vunpack.c.l.b16 %v55
  %v160 = vunpack.c.l.b16 %v56
  %v161 = vunpack.c.l.b16 %v57
  %v162 = vunpack.c.l.b16 %v58
  %v163 = vunpack.c.l.b16 %v59
  %v164 = vunpack.c.l.b16 %v60
  %v165 = vunpack.c.l.b16 %v61
  %v166 = vunpack.c.l.b16 %v62
  %v167 = vunpack.c.l.b16 %v63
  %v168 = vunpack.c.l.b16 %v64
  %v169 = vunpack.c.l.b16 %v65
  %v170 = vunpack.c.l.b16 %v66
  %v171 = vunpack.c.l.b16 %v67
  %v172 = vunpack.c.l.b16 %v68
  %v173 = vunpack.c.l.b16 %v69
  %v174 = vunpack.c.l.b16 %v70
  %v175 = vunpack.c.l.b16 %v71
  %v176 = vunpack.c.l.b16 %v72
  %v177 = vunpack.c.l.b16 %v73
  %v178 = vunpack.c.l.b16 %v74
  %v179 = vunpack.c.l.b16 %v75
  %v180 = vunpack.c.l.b16 %v76
  %v181 = vunpack.c.l.b16 %v77
  %v182 = vunpack.c.l.b16 %v78
  %v183 = vunpack.c.l.b16 %v79
  %v184 = vunpack.c.l.b16 %v80
  %v185 = vpack.c.b16 %v137, %v136
  %v186 = vpack.c.b16 %v139, %v138
  %v187 = vpack.c.b16 %v141, %v140
  %v188 = vpack.c.b16 %v143, %v142
  %v189 = vpack.c.b16 %v145, %v144
  %v190 = vpack.c.b16 %v147, %v146
  %v191 = vpack.c.b16 %v149, %v148
  %v192 = vpack.c.b16 %v151, %v150
  %v193 = vpack.c.b16 %v153, %v152
  %v194 = vpack.c.b16 %v155, %v154
  %v195 = vpack.c.b16 %v157, %v156
  %v196 = vpack.c.b16 %v159, %v158
  %v197 = vpack.c.b16 %v161, %v160
  %v198 = vpack.c.b16 %v163, %v162
  %v199 = vpack.c.b16 %v165, %v164
  %v200 = vpack.c.b16 %v167, %v166
  %v201 = vpack.c.b16 %v169, %v168
  %v202 = vpack.c.b16 %v171, %v170
  %v203 = vpack.c.b16 %v173, %v172
  %v204 = vpack.c.b16 %v175, %v174
  %v205 = vpack.c.b16 %v177, %v176
  %v206 = vpack.c.b16 %v179, %v178
  %v207 = vpack.c.b16 %v181, %v180
  %v208 = vpack.c.b16 %v183, %v182
  %v209 = vpack.c.b16 %v184, %v184
  %v251 = vunpack.c.l.b16 %v15
  %v252 = vunpack.c.l.b16 %v16
  %v253 = vunpack.c.l.b16 %v17
  %v254 = vunpack.c.l.b16 %v18
  %v255 = vunpack.c.l.b16 %v19
  %v256 = vunpack.c.l.b16 %v20
  %v257 = vunpack.c.l.b16 %v21
  %v258 = vunpack.c.l.b16 %v22
  %v259 = vunpack.c.l.b16 %v23
  %v260 = vunpack.c.l.b16 %v24
  %v261 = vunpack.c.l.b16 %v25
  %v262 = vunpack.c.l.b16 %v26
  %v263 = vunpack.c.l.b16 %v27
  %v264 = vunpack.c.l.b16 %v28
  %v265 = vunpack.c.l.b16 %v29
  %v266 = vunpack.c.l.b16 %v30
  %v267 = vpack.c.b16 %v252, %v251
  %v268 = vpack.c.b16 %v254, %v253
  %v269 = vpack.c.b16 %v256, %v255
  %v270 = vpack.c.b16 %v258, %v257
  %v271 = vpack.c.b16 %v260, %v259
  %v272 = vpack.c.b16 %v262, %v261
  %v273 = vpack.c.b16 %v264, %v263
  %v274 = vpack.c.b16 %v266, %v265
  %283 = vmatprep.subr.bf16.mxu0 0
  %284 = vmatpush1.bf16.msra.mxu0 %v267
  %285 = vmatprep.subr.bf16.mxu0 0
  %286 = vmatpush1.bf16.msra.mxu0 %v268
  %287 = vmatprep.subr.bf16.mxu0 0
  %288 = vmatpush1.bf16.msra.mxu0 %v269
  %289 = vmatprep.subr.bf16.mxu0 0
  %290 = vmatpush1.bf16.msra.mxu0 %v270
  %291 = vmatprep.subr.bf16.mxu0 0
  %292 = vmatpush1.bf16.msra.mxu0 %v271
  %293 = vmatprep.subr.bf16.mxu0 0
  %294 = vmatpush1.bf16.msra.mxu0 %v272
  %295 = vmatprep.subr.bf16.mxu0 0
  %296 = vmatpush1.bf16.msra.mxu0 %v273
  %297 = vmatprep.subr.bf16.mxu0 0
  %298 = vmatpush1.bf16.msra.mxu0 %v274
  %299 = vmatprep.subr.bf16.mxu0 0
  %300 = vmatpush1.bf16.msra.mxu0 0
  %301 = vmatprep.subr.bf16.mxu0 0
  %302 = vmatpush1.bf16.msra.mxu0 0
  %303 = vmatprep.subr.bf16.mxu0 0
  %304 = vmatpush1.bf16.msra.mxu0 0
  %305 = vmatprep.subr.bf16.mxu0 0
  %306 = vmatpush1.bf16.msra.mxu0 0
  %307 = vmatprep.subr.bf16.mxu0 0
  %308 = vmatpush1.bf16.msra.mxu0 0
  %309 = vmatprep.subr.bf16.mxu0 0
  %310 = vmatpush1.bf16.msra.mxu0 0
  %311 = vmatprep.subr.bf16.mxu0 0
  %312 = vmatpush1.bf16.msra.mxu0 0
  %313 = vmatprep.subr.bf16.mxu0 0
  %314 = vmatpush1.bf16.msra.mxu0 0
  %315 = vmatprep.mubr.bf16.mxu0 0
  %316 = vmatmul.mubr.bf16.gmra.mrb[0].mxu0 %v185
  %v317 = vpop.f32.mrb[0].mxu0
  %v318 = vadd.f32 %v85, %v317
  %v319 = vpop.f32.mrb[0].mxu0
  %v320 = vpop.f32.mrb[0].mxu0
  %v321 = vadd.f32 %v85, %v320
  %v322 = vpop.f32.mrb[0].mxu0
  %323 = vmatprep.mubr.bf16.mxu0 0
  %324 = vmatmul.mubr.bf16.gmra.mrb[0].mxu0 %v186
  %v325 = vpop.f32.mrb[0].mxu0
  %v326 = vadd.f32 %v85, %v325
  %v327 = vpop.f32.mrb[0].mxu0
  %v328 = vpop.f32.mrb[0].mxu0
  %v329 = vadd.f32 %v85, %v328
  %v330 = vpop.f32.mrb[0].mxu0
  %331 = vmatprep.mubr.bf16.mxu0 0
  %332 = vmatmul.mubr.bf16.gmra.mrb[0].mxu0 %v187
  %v333 = vpop.f32.mrb[0].mxu0
  %v334 = vadd.f32 %v85, %v333
  %v335 = vpop.f32.mrb[0].mxu0
  %v336 = vpop.f32.mrb[0].mxu0
  %v337 = vadd.f32 %v85, %v336
  %v338 = vpop.f32.mrb[0].mxu0
  %339 = vmatprep.mubr.bf16.mxu0 0
  %340 = vmatmul.mubr.bf16.gmra.mrb[0].mxu0 %v188
  %v341 = vpop.f32.mrb[0].mxu0
  %v342 = vadd.f32 %v85, %v341
  %v343 = vpop.f32.mrb[0].mxu0
  %v344 = vpop.f32.mrb[0].mxu0
  %v345 = vadd.f32 %v85, %v344
  %v346 = vpop.f32.mrb[0].mxu0
  %347 = vmatprep.mubr.bf16.mxu0 0
  %348 = vmatmul.mubr.bf16.gmra.mrb[0].mxu0 %v189
  %v349 = vpop.f32.mrb[0].mxu0
  %v350 = vadd.f32 %v85, %v349
  %v351 = vpop.f32.mrb[0].mxu0
  %v352 = vpop.f32.mrb[0].mxu0
  %v353 = vadd.f32 %v85, %v352
  %v354 = vpop.f32.mrb[0].mxu0
  %355 = vmatprep.mubr.bf16.mxu0 0
  %356 = vmatmul.mubr.bf16.gmra.mrb[0].mxu0 %v190
  %v357 = vpop.f32.mrb[0].mxu0
  %v358 = vadd.f32 %v85, %v357
  %v359 = vpop.f32.mrb[0].mxu0
  %v360 = vpop.f32.mrb[0].mxu0
  %v361 = vadd.f32 %v85, %v360
  %v362 = vpop.f32.mrb[0].mxu0
  %363 = vmatprep.mubr.bf16.mxu0 0
  %364 = vmatmul.mubr.bf16.gmra.mrb[0].mxu0 %v191
  %v365 = vpop.f32.mrb[0].mxu0
  %v366 = vadd.f32 %v85, %v365
  %v367 = vpop.f32.mrb[0].mxu0
  %v368 = vpop.f32.mrb[0].mxu0
  %v369 = vadd.f32 %v85, %v368
  %v370 = vpop.f32.mrb[0].mxu0
  %371 = vmatprep.mubr.bf16.mxu0 0
  %372 = vmatmul.mubr.bf16.gmra.mrb[0].mxu0 %v192
  %v373 = vpop.f32.mrb[0].mxu0
  %v374 = vadd.f32 %v85, %v373
  %v375 = vpop.f32.mrb[0].mxu0
  %v376 = vpop.f32.mrb[0].mxu0
  %v377 = vadd.f32 %v85, %v376
  %v378 = vpop.f32.mrb[0].mxu0
  %379 = vmatprep.mubr.bf16.mxu0 0
  %380 = vmatmul.mubr.bf16.gmra.mrb[0].mxu0 %v193
  %v381 = vpop.f32.mrb[0].mxu0
  %v382 = vadd.f32 %v85, %v381
  %v383 = vpop.f32.mrb[0].mxu0
  %v384 = vpop.f32.mrb[0].mxu0
  %v385 = vadd.f32 %v85, %v384
  %v386 = vpop.f32.mrb[0].mxu0
  %387 = vmatprep.mubr.bf16.mxu0 0
  %388 = vmatmul.mubr.bf16.gmra.mrb[0].mxu0 %v194
  %v389 = vpop.f32.mrb[0].mxu0
  %v390 = vadd.f32 %v85, %v389
  %v391 = vpop.f32.mrb[0].mxu0
  %v392 = vpop.f32.mrb[0].mxu0
  %v393 = vadd.f32 %v85, %v392
  %v394 = vpop.f32.mrb[0].mxu0
  %395 = vmatprep.mubr.bf16.mxu0 0
  %396 = vmatmul.mubr.bf16.gmra.mrb[0].mxu0 %v195
  %v397 = vpop.f32.mrb[0].mxu0
  %v398 = vadd.f32 %v85, %v397
  %v399 = vpop.f32.mrb[0].mxu0
  %v400 = vpop.f32.mrb[0].mxu0
  %v401 = vadd.f32 %v85, %v400
  %v402 = vpop.f32.mrb[0].mxu0
  %403 = vmatprep.mubr.bf16.mxu0 0
  %404 = vmatmul.mubr.bf16.gmra.mrb[0].mxu0 %v196
  %v405 = vpop.f32.mrb[0].mxu0
  %v406 = vadd.f32 %v85, %v405
  %v407 = vpop.f32.mrb[0].mxu0
  %v408 = vpop.f32.mrb[0].mxu0
  %v409 = vadd.f32 %v85, %v408
  %v410 = vpop.f32.mrb[0].mxu0
  %411 = vmatprep.mubr.bf16.mxu0 0
  %412 = vmatmul.mubr.bf16.gmra.mrb[0].mxu0 %v197
  %v413 = vpop.f32.mrb[0].mxu0
  %v414 = vadd.f32 %v85, %v413
  %v415 = vpop.f32.mrb[0].mxu0
  %v416 = vpop.f32.mrb[0].mxu0
  %v417 = vadd.f32 %v85, %v416
  %v418 = vpop.f32.mrb[0].mxu0
  %419 = vmatprep.mubr.bf16.mxu0 0
  %420 = vmatmul.mubr.bf16.gmra.mrb[0].mxu0 %v198
  %v421 = vpop.f32.mrb[0].mxu0
  %v422 = vadd.f32 %v85, %v421
  %v423 = vpop.f32.mrb[0].mxu0
  %v424 = vpop.f32.mrb[0].mxu0
  %v425 = vadd.f32 %v85, %v424
  %v426 = vpop.f32.mrb[0].mxu0
  %427 = vmatprep.mubr.bf16.mxu0 0
  %428 = vmatmul.mubr.bf16.gmra.mrb[0].mxu0 %v199
  %v429 = vpop.f32.mrb[0].mxu0
  %v430 = vadd.f32 %v85, %v429
  %v431 = vpop.f32.mrb[0].mxu0
  %v432 = vpop.f32.mrb[0].mxu0
  %v433 = vadd.f32 %v85, %v432
  %v434 = vpop.f32.mrb[0].mxu0
  %435 = vmatprep.mubr.bf16.mxu0 0
  %436 = vmatmul.mubr.bf16.gmra.mrb[0].mxu0 %v200
  %v437 = vpop.f32.mrb[0].mxu0
  %v438 = vadd.f32 %v85, %v437
  %v439 = vpop.f32.mrb[0].mxu0
  %v440 = vpop.f32.mrb[0].mxu0
  %v441 = vadd.f32 %v85, %v440
  %v442 = vpop.f32.mrb[0].mxu0
  %443 = vmatprep.mubr.bf16.mxu0 0
  %444 = vmatmul.mubr.bf16.gmra.mrb[0].mxu0 %v201
  %v445 = vpop.f32.mrb[0].mxu0
  %v446 = vadd.f32 %v85, %v445
  %v447 = vpop.f32.mrb[0].mxu0
  %v448 = vpop.f32.mrb[0].mxu0
  %v449 = vadd.f32 %v85, %v448
  %v450 = vpop.f32.mrb[0].mxu0
  %451 = vmatprep.mubr.bf16.mxu0 0
  %452 = vmatmul.mubr.bf16.gmra.mrb[0].mxu0 %v202
  %v453 = vpop.f32.mrb[0].mxu0
  %v454 = vadd.f32 %v85, %v453
  %v455 = vpop.f32.mrb[0].mxu0
  %v456 = vpop.f32.mrb[0].mxu0
  %v457 = vadd.f32 %v85, %v456
  %v458 = vpop.f32.mrb[0].mxu0
  %459 = vmatprep.mubr.bf16.mxu0 0
  %460 = vmatmul.mubr.bf16.gmra.mrb[0].mxu0 %v203
  %v461 = vpop.f32.mrb[0].mxu0
  %v462 = vadd.f32 %v85, %v461
  %v463 = vpop.f32.mrb[0].mxu0
  %v464 = vpop.f32.mrb[0].mxu0
  %v465 = vadd.f32 %v85, %v464
  %v466 = vpop.f32.mrb[0].mxu0
  %467 = vmatprep.mubr.bf16.mxu0 0
  %468 = vmatmul.mubr.bf16.gmra.mrb[0].mxu0 %v204
  %v469 = vpop.f32.mrb[0].mxu0
  %v470 = vadd.f32 %v85, %v469
  %v471 = vpop.f32.mrb[0].mxu0
  %v472 = vpop.f32.mrb[0].mxu0
  %v473 = vadd.f32 %v85, %v472
  %v474 = vpop.f32.mrb[0].mxu0
  %475 = vmatprep.mubr.bf16.mxu0 0
  %476 = vmatmul.mubr.bf16.gmra.mrb[0].mxu0 %v205
  %v477 = vpop.f32.mrb[0].mxu0
  %v478 = vadd.f32 %v85, %v477
  %v479 = vpop.f32.mrb[0].mxu0
  %v480 = vpop.f32.mrb[0].mxu0
  %v481 = vadd.f32 %v85, %v480
  %v482 = vpop.f32.mrb[0].mxu0
  %483 = vmatprep.mubr.bf16.mxu0 0
  %484 = vmatmul.mubr.bf16.gmra.mrb[0].mxu0 %v206
  %v485 = vpop.f32.mrb[0].mxu0
  %v486 = vadd.f32 %v85, %v485
  %v487 = vpop.f32.mrb[0].mxu0
  %v488 = vpop.f32.mrb[0].mxu0
  %v489 = vadd.f32 %v85, %v488
  %v490 = vpop.f32.mrb[0].mxu0
  %491 = vmatprep.mubr.bf16.mxu0 0
  %492 = vmatmul.mubr.bf16.gmra.mrb[0].mxu0 %v207
  %v493 = vpop.f32.mrb[0].mxu0
  %v494 = vadd.f32 %v85, %v493
  %v495 = vpop.f32.mrb[0].mxu0
  %v496 = vpop.f32.mrb[0].mxu0
  %v497 = vadd.f32 %v85, %v496
  %v498 = vpop.f32.mrb[0].mxu0
  %499 = vmatprep.mubr.bf16.mxu0 0
  %500 = vmatmul.mubr.bf16.gmra.mrb[0].mxu0 %v208
  %v501 = vpop.f32.mrb[0].mxu0
  %v502 = vadd.f32 %v85, %v501
  %v503 = vpop.f32.mrb[0].mxu0
  %v504 = vpop.f32.mrb[0].mxu0
  %v505 = vadd.f32 %v85, %v504
  %v506 = vpop.f32.mrb[0].mxu0
  %507 = vmatprep.mubr.bf16.mxu0 0
  %508 = vmatmul.mubr.bf16.gmra.mrb[0].mxu0 %v209
  %v509 = vpop.f32.mrb[0].mxu0
  %v510 = vadd.f32 %v85, %v509
  %v511 = vpop.f32.mrb[0].mxu0
  %v512 = vpop.f32.mrb[0].mxu0
  %v513 = vpop.f32.mrb[0].mxu0
  %514 = vdwg.mxu0
  %v515 = vmax.f32 %v318, 0.0
  %v516 = vmax.f32 %v321, 0.0
  %v517 = vmax.f32 %v326, 0.0
  %v518 = vmax.f32 %v329, 0.0
  %v519 = vmax.f32 %v334, 0.0
  %v520 = vmax.f32 %v337, 0.0
  %v521 = vmax.f32 %v342, 0.0
  %v522 = vmax.f32 %v345, 0.0
  %v523 = vmax.f32 %v350, 0.0
  %v524 = vmax.f32 %v353, 0.0
  %v525 = vmax.f32 %v358, 0.0
  %v526 = vmax.f32 %v361, 0.0
  %v527 = vmax.f32 %v366, 0.0
  %v528 = vmax.f32 %v369, 0.0
  %v529 = vmax.f32 %v374, 0.0
  %v530 = vmax.f32 %v377, 0.0
  %v531 = vmax.f32 %v382, 0.0
  %v532 = vmax.f32 %v385, 0.0
  %v533 = vmax.f32 %v390, 0.0
  %v534 = vmax.f32 %v393, 0.0
  %v535 = vmax.f32 %v398, 0.0
  %v536 = vmax.f32 %v401, 0.0
  %v537 = vmax.f32 %v406, 0.0
  %v538 = vmax.f32 %v409, 0.0
  %v539 = vmax.f32 %v414, 0.0
  %v540 = vmax.f32 %v417, 0.0
  %v541 = vmax.f32 %v422, 0.0
  %v542 = vmax.f32 %v425, 0.0
  %v543 = vmax.f32 %v430, 0.0
  %v544 = vmax.f32 %v433, 0.0
  %v545 = vmax.f32 %v438, 0.0
  %v546 = vmax.f32 %v441, 0.0
  %v547 = vmax.f32 %v446, 0.0
  %v548 = vmax.f32 %v449, 0.0
  %v549 = vmax.f32 %v454, 0.0
  %v550 = vmax.f32 %v457, 0.0
  %v551 = vmax.f32 %v462, 0.0
  %v552 = vmax.f32 %v465, 0.0
  %v553 = vmax.f32 %v470, 0.0
  %v554 = vmax.f32 %v473, 0.0
  %v555 = vmax.f32 %v478, 0.0
  %v556 = vmax.f32 %v481, 0.0
  %v557 = vmax.f32 %v486, 0.0
  %v558 = vmax.f32 %v489, 0.0
  %v559 = vmax.f32 %v494, 0.0
  %v560 = vmax.f32 %v497, 0.0
  %v561 = vmax.f32 %v502, 0.0
  %v562 = vmax.f32 %v505, 0.0
  %v563 = vmax.f32 %v510, 0.0
  %s564 = scalar_lea.vmem %s0, 196
  %v565 = vld [vmem:[%s564] sm:$0xf]
  %v566 = vld [vmem:[%s564 + $0x4] sm:$0xf]
  %v567 = vld [vmem:[%s564 + $0x8] sm:$0xf]
  %v568 = vld [vmem:[%s564 + $0xc] sm:$0xf]
  %v569 = vld [vmem:[%s564 + $0x10] sm:$0xf]
  %v570 = vld [vmem:[%s564 + $0x14] sm:$0xf]
  %v571 = vld [vmem:[%s564 + $0x18] sm:$0xf]
  %v572 = vld [vmem:[%s564 + $0x1c] sm:$0xf]
  %v573 = vld [vmem:[%s564 + $0x20] sm:$0xf]
  %v574 = vld [vmem:[%s564 + $0x24] sm:$0xf]
  %v575 = vld [vmem:[%s564 + $0x28] sm:$0xf]
  %v576 = vld [vmem:[%s564 + $0x2c] sm:$0xf]
  %v577 = vld [vmem:[%s564 + $0x30] sm:$0xf]
  %v578 = vld [vmem:[%s564 + $0x34] sm:$0xf]
  %v579 = vld [vmem:[%s564 + $0x38] sm:$0xf]
  %v580 = vld [vmem:[%s564 + $0x3c] sm:$0xf]
  %v581 = vld [vmem:[%s564 + $0x40] sm:$0xf]
  %v582 = vld [vmem:[%s564 + $0x44] sm:$0xf]
  %v583 = vld [vmem:[%s564 + $0x48] sm:$0xf]
  %v584 = vld [vmem:[%s564 + $0x4c] sm:$0xf]
  %v585 = vld [vmem:[%s564 + $0x50] sm:$0xf]
  %v586 = vld [vmem:[%s564 + $0x54] sm:$0xf]
  %v587 = vld [vmem:[%s564 + $0x58] sm:$0xf]
  %v588 = vld [vmem:[%s564 + $0x5c] sm:$0xf]
  %v589 = vld [vmem:[%s564 + $0x60] sm:$0xf]
  %v590 = vld [vmem:[%s564 + $0x64] sm:$0xf]
  %v591 = vld [vmem:[%s564 + $0x68] sm:$0xf]
  %v592 = vld [vmem:[%s564 + $0x6c] sm:$0xf]
  %v593 = vld [vmem:[%s564 + $0x70] sm:$0xf]
  %v594 = vld [vmem:[%s564 + $0x74] sm:$0xf]
  %v595 = vld [vmem:[%s564 + $0x78] sm:$0xf]
  %v596 = vld [vmem:[%s564 + $0x7c] sm:$0xf]
  %v597 = vld [vmem:[%s564 + $0x80] sm:$0xf]
  %v598 = vld [vmem:[%s564 + $0x84] sm:$0xf]
  %v599 = vld [vmem:[%s564 + $0x88] sm:$0xf]
  %v600 = vld [vmem:[%s564 + $0x8c] sm:$0xf]
  %v601 = vld [vmem:[%s564 + $0x90] sm:$0xf]
  %v602 = vld [vmem:[%s564 + $0x94] sm:$0xf]
  %v603 = vld [vmem:[%s564 + $0x98] sm:$0xf]
  %v604 = vld [vmem:[%s564 + $0x9c] sm:$0xf]
  %v605 = vld [vmem:[%s564 + $0xa0] sm:$0xf]
  %v606 = vld [vmem:[%s564 + $0xa4] sm:$0xf]
  %v607 = vld [vmem:[%s564 + $0xa8] sm:$0xf]
  %v608 = vld [vmem:[%s564 + $0xac] sm:$0xf]
  %v609 = vld [vmem:[%s564 + $0xb0] sm:$0xf]
  %v610 = vld [vmem:[%s564 + $0xb4] sm:$0xf]
  %v611 = vld [vmem:[%s564 + $0xb8] sm:$0xf]
  %v612 = vld [vmem:[%s564 + $0xbc] sm:$0xf]
  %v613 = vld [vmem:[%s564 + $0xc0] sm:$0xf]
  %v663 = vunpack.c.l.b16 %v565
  %v664 = vunpack.c.l.b16 %v566
  %v665 = vunpack.c.l.b16 %v567
  %v666 = vunpack.c.l.b16 %v568
  %v667 = vunpack.c.l.b16 %v569
  %v668 = vunpack.c.l.b16 %v570
  %v669 = vunpack.c.l.b16 %v571
  %v670 = vunpack.c.l.b16 %v572
  %v671 = vunpack.c.l.b16 %v573
  %v672 = vunpack.c.l.b16 %v574
  %v673 = vunpack.c.l.b16 %v575
  %v674 = vunpack.c.l.b16 %v576
  %v675 = vunpack.c.l.b16 %v577
  %v676 = vunpack.c.l.b16 %v578
  %v677 = vunpack.c.l.b16 %v579
  %v678 = vunpack.c.l.b16 %v580
  %v679 = vunpack.c.l.b16 %v581
  %v680 = vunpack.c.l.b16 %v582
  %v681 = vunpack.c.l.b16 %v583
  %v682 = vunpack.c.l.b16 %v584
  %v683 = vunpack.c.l.b16 %v585
  %v684 = vunpack.c.l.b16 %v586
  %v685 = vunpack.c.l.b16 %v587
  %v686 = vunpack.c.l.b16 %v588
  %v687 = vunpack.c.l.b16 %v589
  %v688 = vunpack.c.l.b16 %v590
  %v689 = vunpack.c.l.b16 %v591
  %v690 = vunpack.c.l.b16 %v592
  %v691 = vunpack.c.l.b16 %v593
  %v692 = vunpack.c.l.b16 %v594
  %v693 = vunpack.c.l.b16 %v595
  %v694 = vunpack.c.l.b16 %v596
  %v695 = vunpack.c.l.b16 %v597
  %v696 = vunpack.c.l.b16 %v598
  %v697 = vunpack.c.l.b16 %v599
  %v698 = vunpack.c.l.b16 %v600
  %v699 = vunpack.c.l.b16 %v601
  %v700 = vunpack.c.l.b16 %v602
  %v701 = vunpack.c.l.b16 %v603
  %v702 = vunpack.c.l.b16 %v604
  %v703 = vunpack.c.l.b16 %v605
  %v704 = vunpack.c.l.b16 %v606
  %v705 = vunpack.c.l.b16 %v607
  %v706 = vunpack.c.l.b16 %v608
  %v707 = vunpack.c.l.b16 %v609
  %v708 = vunpack.c.l.b16 %v610
  %v709 = vunpack.c.l.b16 %v611
  %v710 = vunpack.c.l.b16 %v612
  %v711 = vunpack.c.l.b16 %v613
  %v712 = vpack.c.b16 %v664, %v663
  %v713 = vpack.c.b16 %v666, %v665
  %v714 = vpack.c.b16 %v668, %v667
  %v715 = vpack.c.b16 %v670, %v669
  %v716 = vpack.c.b16 %v672, %v671
  %v717 = vpack.c.b16 %v674, %v673
  %v718 = vpack.c.b16 %v676, %v675
  %v719 = vpack.c.b16 %v678, %v677
  %v720 = vpack.c.b16 %v680, %v679
  %v721 = vpack.c.b16 %v682, %v681
  %v722 = vpack.c.b16 %v684, %v683
  %v723 = vpack.c.b16 %v686, %v685
  %v724 = vpack.c.b16 %v688, %v687
  %v725 = vpack.c.b16 %v690, %v689
  %v726 = vpack.c.b16 %v692, %v691
  %v727 = vpack.c.b16 %v694, %v693
  %v728 = vpack.c.b16 %v696, %v695
  %v729 = vpack.c.b16 %v698, %v697
  %v730 = vpack.c.b16 %v700, %v699
  %v731 = vpack.c.b16 %v702, %v701
  %v732 = vpack.c.b16 %v704, %v703
  %v733 = vpack.c.b16 %v706, %v705
  %v734 = vpack.c.b16 %v708, %v707
  %v735 = vpack.c.b16 %v710, %v709
  %v736 = vpack.c.b16 %v711, %v711
  %762 = vmatprep.subr.bf16.mxu0 0
  %763 = vmatpush1.bf16.msra.mxu0 %v267
  %764 = vmatprep.subr.bf16.mxu0 0
  %765 = vmatpush1.bf16.msra.mxu0 %v268
  %766 = vmatprep.subr.bf16.mxu0 0
  %767 = vmatpush1.bf16.msra.mxu0 %v269
  %768 = vmatprep.subr.bf16.mxu0 0
  %769 = vmatpush1.bf16.msra.mxu0 %v270
  %770 = vmatprep.subr.bf16.mxu0 0
  %771 = vmatpush1.bf16.msra.mxu0 %v271
  %772 = vmatprep.subr.bf16.mxu0 0
  %773 = vmatpush1.bf16.msra.mxu0 %v272
  %774 = vmatprep.subr.bf16.mxu0 0
  %775 = vmatpush1.bf16.msra.mxu0 %v273
  %776 = vmatprep.subr.bf16.mxu0 0
  %777 = vmatpush1.bf16.msra.mxu0 %v274
  %778 = vmatprep.subr.bf16.mxu0 0
  %779 = vmatpush1.bf16.msra.mxu0 0
  %780 = vmatprep.subr.bf16.mxu0 0
  %781 = vmatpush1.bf16.msra.mxu0 0
  %782 = vmatprep.subr.bf16.mxu0 0
  %783 = vmatpush1.bf16.msra.mxu0 0
  %784 = vmatprep.subr.bf16.mxu0 0
  %785 = vmatpush1.bf16.msra.mxu0 0
  %786 = vmatprep.subr.bf16.mxu0 0
  %787 = vmatpush1.bf16.msra.mxu0 0
  %788 = vmatprep.subr.bf16.mxu0 0
  %789 = vmatpush1.bf16.msra.mxu0 0
  %790 = vmatprep.subr.bf16.mxu0 0
  %791 = vmatpush1.bf16.msra.mxu0 0
  %792 = vmatprep.subr.bf16.mxu0 0
  %793 = vmatpush1.bf16.msra.mxu0 0
  %794 = vmatprep.mubr.bf16.mxu0 0
  %795 = vmatmul.mubr.bf16.gmra.mrb[0].mxu0 %v712
  %v796 = vpop.f32.mrb[0].mxu0
  %v797 = vadd.f32 %v85, %v796
  %v798 = vpop.f32.mrb[0].mxu0
  %v799 = vpop.f32.mrb[0].mxu0
  %v800 = vadd.f32 %v85, %v799
  %v801 = vpop.f32.mrb[0].mxu0
  %802 = vmatprep.mubr.bf16.mxu0 0
  %803 = vmatmul.mubr.bf16.gmra.mrb[0].mxu0 %v713
  %v804 = vpop.f32.mrb[0].mxu0
  %v805 = vadd.f32 %v85, %v804
  %v806 = vpop.f32.mrb[0].mxu0
  %v807 = vpop.f32.mrb[0].mxu0
  %v808 = vadd.f32 %v85, %v807
  %v809 = vpop.f32.mrb[0].mxu0
  %810 = vmatprep.mubr.bf16.mxu0 0
  %811 = vmatmul.mubr.bf16.gmra.mrb[0].mxu0 %v714
  %v812 = vpop.f32.mrb[0].mxu0
  %v813 = vadd.f32 %v85, %v812
  %v814 = vpop.f32.mrb[0].mxu0
  %v815 = vpop.f32.mrb[0].mxu0
  %v816 = vadd.f32 %v85, %v815
  %v817 = vpop.f32.mrb[0].mxu0
  %818 = vmatprep.mubr.bf16.mxu0 0
  %819 = vmatmul.mubr.bf16.gmra.mrb[0].mxu0 %v715
  %v820 = vpop.f32.mrb[0].mxu0
  %v821 = vadd.f32 %v85, %v820
  %v822 = vpop.f32.mrb[0].mxu0
  %v823 = vpop.f32.mrb[0].mxu0
  %v824 = vadd.f32 %v85, %v823
  %v825 = vpop.f32.mrb[0].mxu0
  %826 = vmatprep.mubr.bf16.mxu0 0
  %827 = vmatmul.mubr.bf16.gmra.mrb[0].mxu0 %v716
  %v828 = vpop.f32.mrb[0].mxu0
  %v829 = vadd.f32 %v85, %v828
  %v830 = vpop.f32.mrb[0].mxu0
  %v831 = vpop.f32.mrb[0].mxu0
  %v832 = vadd.f32 %v85, %v831
  %v833 = vpop.f32.mrb[0].mxu0
  %834 = vmatprep.mubr.bf16.mxu0 0
  %835 = vmatmul.mubr.bf16.gmra.mrb[0].mxu0 %v717
  %v836 = vpop.f32.mrb[0].mxu0
  %v837 = vadd.f32 %v85, %v836
  %v838 = vpop.f32.mrb[0].mxu0
  %v839 = vpop.f32.mrb[0].mxu0
  %v840 = vadd.f32 %v85, %v839
  %v841 = vpop.f32.mrb[0].mxu0
  %842 = vmatprep.mubr.bf16.mxu0 0
  %843 = vmatmul.mubr.bf16.gmra.mrb[0].mxu0 %v718
  %v844 = vpop.f32.mrb[0].mxu0
  %v845 = vadd.f32 %v85, %v844
  %v846 = vpop.f32.mrb[0].mxu0
  %v847 = vpop.f32.mrb[0].mxu0
  %v848 = vadd.f32 %v85, %v847
  %v849 = vpop.f32.mrb[0].mxu0
  %850 = vmatprep.mubr.bf16.mxu0 0
  %851 = vmatmul.mubr.bf16.gmra.mrb[0].mxu0 %v719
  %v852 = vpop.f32.mrb[0].mxu0
  %v853 = vadd.f32 %v85, %v852
  %v854 = vpop.f32.mrb[0].mxu0
  %v855 = vpop.f32.mrb[0].mxu0
  %v856 = vadd.f32 %v85, %v855
  %v857 = vpop.f32.mrb[0].mxu0
  %858 = vmatprep.mubr.bf16.mxu0 0
  %859 = vmatmul.mubr.bf16.gmra.mrb[0].mxu0 %v720
  %v860 = vpop.f32.mrb[0].mxu0
  %v861 = vadd.f32 %v85, %v860
  %v862 = vpop.f32.mrb[0].mxu0
  %v863 = vpop.f32.mrb[0].mxu0
  %v864 = vadd.f32 %v85, %v863
  %v865 = vpop.f32.mrb[0].mxu0
  %866 = vmatprep.mubr.bf16.mxu0 0
  %867 = vmatmul.mubr.bf16.gmra.mrb[0].mxu0 %v721
  %v868 = vpop.f32.mrb[0].mxu0
  %v869 = vadd.f32 %v85, %v868
  %v870 = vpop.f32.mrb[0].mxu0
  %v871 = vpop.f32.mrb[0].mxu0
  %v872 = vadd.f32 %v85, %v871
  %v873 = vpop.f32.mrb[0].mxu0
  %874 = vmatprep.mubr.bf16.mxu0 0
  %875 = vmatmul.mubr.bf16.gmra.mrb[0].mxu0 %v722
  %v876 = vpop.f32.mrb[0].mxu0
  %v877 = vadd.f32 %v85, %v876
  %v878 = vpop.f32.mrb[0].mxu0
  %v879 = vpop.f32.mrb[0].mxu0
  %v880 = vadd.f32 %v85, %v879
  %v881 = vpop.f32.mrb[0].mxu0
  %882 = vmatprep.mubr.bf16.mxu0 0
  %883 = vmatmul.mubr.bf16.gmra.mrb[0].mxu0 %v723
  %v884 = vpop.f32.mrb[0].mxu0
  %v885 = vadd.f32 %v85, %v884
  %v886 = vpop.f32.mrb[0].mxu0
  %v887 = vpop.f32.mrb[0].mxu0
  %v888 = vadd.f32 %v85, %v887
  %v889 = vpop.f32.mrb[0].mxu0
  %890 = vmatprep.mubr.bf16.mxu0 0
  %891 = vmatmul.mubr.bf16.gmra.mrb[0].mxu0 %v724
  %v892 = vpop.f32.mrb[0].mxu0
  %v893 = vadd.f32 %v85, %v892
  %v894 = vpop.f32.mrb[0].mxu0
  %v895 = vpop.f32.mrb[0].mxu0
  %v896 = vadd.f32 %v85, %v895
  %v897 = vpop.f32.mrb[0].mxu0
  %898 = vmatprep.mubr.bf16.mxu0 0
  %899 = vmatmul.mubr.bf16.gmra.mrb[0].mxu0 %v725
  %v900 = vpop.f32.mrb[0].mxu0
  %v901 = vadd.f32 %v85, %v900
  %v902 = vpop.f32.mrb[0].mxu0
  %v903 = vpop.f32.mrb[0].mxu0
  %v904 = vadd.f32 %v85, %v903
  %v905 = vpop.f32.mrb[0].mxu0
  %906 = vmatprep.mubr.bf16.mxu0 0
  %907 = vmatmul.mubr.bf16.gmra.mrb[0].mxu0 %v726
  %v908 = vpop.f32.mrb[0].mxu0
  %v909 = vadd.f32 %v85, %v908
  %v910 = vpop.f32.mrb[0].mxu0
  %v911 = vpop.f32.mrb[0].mxu0
  %v912 = vadd.f32 %v85, %v911
  %v913 = vpop.f32.mrb[0].mxu0
  %914 = vmatprep.mubr.bf16.mxu0 0
  %915 = vmatmul.mubr.bf16.gmra.mrb[0].mxu0 %v727
  %v916 = vpop.f32.mrb[0].mxu0
  %v917 = vadd.f32 %v85, %v916
  %v918 = vpop.f32.mrb[0].mxu0
  %v919 = vpop.f32.mrb[0].mxu0
  %v920 = vadd.f32 %v85, %v919
  %v921 = vpop.f32.mrb[0].mxu0
  %922 = vmatprep.mubr.bf16.mxu0 0
  %923 = vmatmul.mubr.bf16.gmra.mrb[0].mxu0 %v728
  %v924 = vpop.f32.mrb[0].mxu0
  %v925 = vadd.f32 %v85, %v924
  %v926 = vpop.f32.mrb[0].mxu0
  %v927 = vpop.f32.mrb[0].mxu0
  %v928 = vadd.f32 %v85, %v927
  %v929 = vpop.f32.mrb[0].mxu0
  %930 = vmatprep.mubr.bf16.mxu0 0
  %931 = vmatmul.mubr.bf16.gmra.mrb[0].mxu0 %v729
  %v932 = vpop.f32.mrb[0].mxu0
  %v933 = vadd.f32 %v85, %v932
  %v934 = vpop.f32.mrb[0].mxu0
  %v935 = vpop.f32.mrb[0].mxu0
  %v936 = vadd.f32 %v85, %v935
  %v937 = vpop.f32.mrb[0].mxu0
  %938 = vmatprep.mubr.bf16.mxu0 0
  %939 = vmatmul.mubr.bf16.gmra.mrb[0].mxu0 %v730
  %v940 = vpop.f32.mrb[0].mxu0
  %v941 = vadd.f32 %v85, %v940
  %v942 = vpop.f32.mrb[0].mxu0
  %v943 = vpop.f32.mrb[0].mxu0
  %v944 = vadd.f32 %v85, %v943
  %v945 = vpop.f32.mrb[0].mxu0
  %946 = vmatprep.mubr.bf16.mxu0 0
  %947 = vmatmul.mubr.bf16.gmra.mrb[0].mxu0 %v731
  %v948 = vpop.f32.mrb[0].mxu0
  %v949 = vadd.f32 %v85, %v948
  %v950 = vpop.f32.mrb[0].mxu0
  %v951 = vpop.f32.mrb[0].mxu0
  %v952 = vadd.f32 %v85, %v951
  %v953 = vpop.f32.mrb[0].mxu0
  %954 = vmatprep.mubr.bf16.mxu0 0
  %955 = vmatmul.mubr.bf16.gmra.mrb[0].mxu0 %v732
  %v956 = vpop.f32.mrb[0].mxu0
  %v957 = vadd.f32 %v85, %v956
  %v958 = vpop.f32.mrb[0].mxu0
  %v959 = vpop.f32.mrb[0].mxu0
  %v960 = vadd.f32 %v85, %v959
  %v961 = vpop.f32.mrb[0].mxu0
  %962 = vmatprep.mubr.bf16.mxu0 0
  %963 = vmatmul.mubr.bf16.gmra.mrb[0].mxu0 %v733
  %v964 = vpop.f32.mrb[0].mxu0
  %v965 = vadd.f32 %v85, %v964
  %v966 = vpop.f32.mrb[0].mxu0
  %v967 = vpop.f32.mrb[0].mxu0
  %v968 = vadd.f32 %v85, %v967
  %v969 = vpop.f32.mrb[0].mxu0
  %970 = vmatprep.mubr.bf16.mxu0 0
  %971 = vmatmul.mubr.bf16.gmra.mrb[0].mxu0 %v734
  %v972 = vpop.f32.mrb[0].mxu0
  %v973 = vadd.f32 %v85, %v972
  %v974 = vpop.f32.mrb[0].mxu0
  %v975 = vpop.f32.mrb[0].mxu0
  %v976 = vadd.f32 %v85, %v975
  %v977 = vpop.f32.mrb[0].mxu0
  %978 = vmatprep.mubr.bf16.mxu0 0
  %979 = vmatmul.mubr.bf16.gmra.mrb[0].mxu0 %v735
  %v980 = vpop.f32.mrb[0].mxu0
  %v981 = vadd.f32 %v85, %v980
  %v982 = vpop.f32.mrb[0].mxu0
  %v983 = vpop.f32.mrb[0].mxu0
  %v984 = vadd.f32 %v85, %v983
  %v985 = vpop.f32.mrb[0].mxu0
  %986 = vmatprep.mubr.bf16.mxu0 0
  %987 = vmatmul.mubr.bf16.gmra.mrb[0].mxu0 %v736
  %v988 = vpop.f32.mrb[0].mxu0
  %v989 = vadd.f32 %v85, %v988
  %v990 = vpop.f32.mrb[0].mxu0
  %v991 = vpop.f32.mrb[0].mxu0
  %v992 = vpop.f32.mrb[0].mxu0
  %993 = vdwg.mxu0
  %v994 = vmax.f32 %v797, 0.0
  %v995 = vmax.f32 %v800, 0.0
  %v996 = vmax.f32 %v805, 0.0
  %v997 = vmax.f32 %v808, 0.0
  %v998 = vmax.f32 %v813, 0.0
  %v999 = vmax.f32 %v816, 0.0
  %v1000 = vmax.f32 %v821, 0.0
  %v1001 = vmax.f32 %v824, 0.0
  %v1002 = vmax.f32 %v829, 0.0
  %v1003 = vmax.f32 %v832, 0.0
  %v1004 = vmax.f32 %v837, 0.0
  %v1005 = vmax.f32 %v840, 0.0
  %v1006 = vmax.f32 %v845, 0.0
  %v1007 = vmax.f32 %v848, 0.0
  %v1008 = vmax.f32 %v853, 0.0
  %v1009 = vmax.f32 %v856, 0.0
  %v1010 = vmax.f32 %v861, 0.0
  %v1011 = vmax.f32 %v864, 0.0
  %v1012 = vmax.f32 %v869, 0.0
  %v1013 = vmax.f32 %v872, 0.0
  %v1014 = vmax.f32 %v877, 0.0
  %v1015 = vmax.f32 %v880, 0.0
  %v1016 = vmax.f32 %v885, 0.0
  %v1017 = vmax.f32 %v888, 0.0
  %v1018 = vmax.f32 %v893, 0.0
  %v1019 = vmax.f32 %v896, 0.0
  %v1020 = vmax.f32 %v901, 0.0
  %v1021 = vmax.f32 %v904, 0.0
  %v1022 = vmax.f32 %v909, 0.0
  %v1023 = vmax.f32 %v912, 0.0
  %v1024 = vmax.f32 %v917, 0.0
  %v1025 = vmax.f32 %v920, 0.0
  %v1026 = vmax.f32 %v925, 0.0
  %v1027 = vmax.f32 %v928, 0.0
  %v1028 = vmax.f32 %v933, 0.0
  %v1029 = vmax.f32 %v936, 0.0
  %v1030 = vmax.f32 %v941, 0.0
  %v1031 = vmax.f32 %v944, 0.0
  %v1032 = vmax.f32 %v949, 0.0
  %v1033 = vmax.f32 %v952, 0.0
  %v1034 = vmax.f32 %v957, 0.0
  %v1035 = vmax.f32 %v960, 0.0
  %v1036 = vmax.f32 %v965, 0.0
  %v1037 = vmax.f32 %v968, 0.0
  %v1038 = vmax.f32 %v973, 0.0
  %v1039 = vmax.f32 %v976, 0.0
  %v1040 = vmax.f32 %v981, 0.0
  %v1041 = vmax.f32 %v984, 0.0
  %v1042 = vmax.f32 %v989, 0.0
  %v1043 = vmax.f32 %v515, %v994
  %v1044 = vmax.f32 %v516, %v995
  %v1045 = vmax.f32 %v517, %v996
  %v1046 = vmax.f32 %v518, %v997
  %v1047 = vmax.f32 %v519, %v998
  %v1048 = vmax.f32 %v520, %v999
  %v1049 = vmax.f32 %v521, %v1000
  %v1050 = vmax.f32 %v522, %v1001
  %v1051 = vmax.f32 %v523, %v1002
  %v1052 = vmax.f32 %v524, %v1003
  %v1053 = vmax.f32 %v525, %v1004
  %v1054 = vmax.f32 %v526, %v1005
  %v1055 = vmax.f32 %v527, %v1006
  %v1056 = vmax.f32 %v528, %v1007
  %v1057 = vmax.f32 %v529, %v1008
  %v1058 = vmax.f32 %v530, %v1009
  %v1059 = vmax.f32 %v531, %v1010
  %v1060 = vmax.f32 %v532, %v1011
  %v1061 = vmax.f32 %v533, %v1012
  %v1062 = vmax.f32 %v534, %v1013
  %v1063 = vmax.f32 %v535, %v1014
  %v1064 = vmax.f32 %v536, %v1015
  %v1065 = vmax.f32 %v537, %v1016
  %v1066 = vmax.f32 %v538, %v1017
  %v1067 = vmax.f32 %v539, %v1018
  %v1068 = vmax.f32 %v540, %v1019
  %v1069 = vmax.f32 %v541, %v1020
  %v1070 = vmax.f32 %v542, %v1021
  %v1071 = vmax.f32 %v543, %v1022
  %v1072 = vmax.f32 %v544, %v1023
  %v1073 = vmax.f32 %v545, %v1024
  %v1074 = vmax.f32 %v546, %v1025
  %v1075 = vmax.f32 %v547, %v1026
  %v1076 = vmax.f32 %v548, %v1027
  %v1077 = vmax.f32 %v549, %v1028
  %v1078 = vmax.f32 %v550, %v1029
  %v1079 = vmax.f32 %v551, %v1030
  %v1080 = vmax.f32 %v552, %v1031
  %v1081 = vmax.f32 %v553, %v1032
  %v1082 = vmax.f32 %v554, %v1033
  %v1083 = vmax.f32 %v555, %v1034
  %v1084 = vmax.f32 %v556, %v1035
  %v1085 = vmax.f32 %v557, %v1036
  %v1086 = vmax.f32 %v558, %v1037
  %v1087 = vmax.f32 %v559, %v1038
  %v1088 = vmax.f32 %v560, %v1039
  %v1089 = vmax.f32 %v561, %v1040
  %v1090 = vmax.f32 %v562, %v1041
  %v1091 = vmax.f32 %v563, %v1042
  %s1092 = scalar_lea.vmem %s0, 392
  %v1093 = vld [vmem:[%s1092] sm:$0xf]
  %v1094 = vld [vmem:[%s1092 + $0x4] sm:$0xf]
  %v1095 = vld [vmem:[%s1092 + $0x8] sm:$0xf]
  %v1096 = vld [vmem:[%s1092 + $0xc] sm:$0xf]
  %v1097 = vld [vmem:[%s1092 + $0x10] sm:$0xf]
  %v1098 = vld [vmem:[%s1092 + $0x14] sm:$0xf]
  %v1099 = vld [vmem:[%s1092 + $0x18] sm:$0xf]
  %v1100 = vld [vmem:[%s1092 + $0x1c] sm:$0xf]
  %v1101 = vld [vmem:[%s1092 + $0x20] sm:$0xf]
  %v1102 = vld [vmem:[%s1092 + $0x24] sm:$0xf]
  %v1103 = vld [vmem:[%s1092 + $0x28] sm:$0xf]
  %v1104 = vld [vmem:[%s1092 + $0x2c] sm:$0xf]
  %v1105 = vld [vmem:[%s1092 + $0x30] sm:$0xf]
  %v1106 = vld [vmem:[%s1092 + $0x34] sm:$0xf]
  %v1107 = vld [vmem:[%s1092 + $0x38] sm:$0xf]
  %v1108 = vld [vmem:[%s1092 + $0x3c] sm:$0xf]
  %v1109 = vld [vmem:[%s1092 + $0x40] sm:$0xf]
  %v1110 = vld [vmem:[%s1092 + $0x44] sm:$0xf]
  %v1111 = vld [vmem:[%s1092 + $0x48] sm:$0xf]
  %v1112 = vld [vmem:[%s1092 + $0x4c] sm:$0xf]
  %v1113 = vld [vmem:[%s1092 + $0x50] sm:$0xf]
  %v1114 = vld [vmem:[%s1092 + $0x54] sm:$0xf]
  %v1115 = vld [vmem:[%s1092 + $0x58] sm:$0xf]
  %v1116 = vld [vmem:[%s1092 + $0x5c] sm:$0xf]
  %v1117 = vld [vmem:[%s1092 + $0x60] sm:$0xf]
  %v1118 = vld [vmem:[%s1092 + $0x64] sm:$0xf]
  %v1119 = vld [vmem:[%s1092 + $0x68] sm:$0xf]
  %v1120 = vld [vmem:[%s1092 + $0x6c] sm:$0xf]
  %v1121 = vld [vmem:[%s1092 + $0x70] sm:$0xf]
  %v1122 = vld [vmem:[%s1092 + $0x74] sm:$0xf]
  %v1123 = vld [vmem:[%s1092 + $0x78] sm:$0xf]
  %v1124 = vld [vmem:[%s1092 + $0x7c] sm:$0xf]
  %v1125 = vld [vmem:[%s1092 + $0x80] sm:$0xf]
  %v1126 = vld [vmem:[%s1092 + $0x84] sm:$0xf]
  %v1127 = vld [vmem:[%s1092 + $0x88] sm:$0xf]
  %v1128 = vld [vmem:[%s1092 + $0x8c] sm:$0xf]
  %v1129 = vld [vmem:[%s1092 + $0x90] sm:$0xf]
  %v1130 = vld [vmem:[%s1092 + $0x94] sm:$0xf]
  %v1131 = vld [vmem:[%s1092 + $0x98] sm:$0xf]
  %v1132 = vld [vmem:[%s1092 + $0x9c] sm:$0xf]
  %v1133 = vld [vmem:[%s1092 + $0xa0] sm:$0xf]
  %v1134 = vld [vmem:[%s1092 + $0xa4] sm:$0xf]
  %v1135 = vld [vmem:[%s1092 + $0xa8] sm:$0xf]
  %v1136 = vld [vmem:[%s1092 + $0xac] sm:$0xf]
  %v1137 = vld [vmem:[%s1092 + $0xb0] sm:$0xf]
  %v1138 = vld [vmem:[%s1092 + $0xb4] sm:$0xf]
  %v1139 = vld [vmem:[%s1092 + $0xb8] sm:$0xf]
  %v1140 = vld [vmem:[%s1092 + $0xbc] sm:$0xf]
  %v1141 = vld [vmem:[%s1092 + $0xc0] sm:$0xf]
  %v1191 = vunpack.c.l.b16 %v1093
  %v1192 = vunpack.c.l.b16 %v1094
  %v1193 = vunpack.c.l.b16 %v1095
  %v1194 = vunpack.c.l.b16 %v1096
  %v1195 = vunpack.c.l.b16 %v1097
  %v1196 = vunpack.c.l.b16 %v1098
  %v1197 = vunpack.c.l.b16 %v1099
  %v1198 = vunpack.c.l.b16 %v1100
  %v1199 = vunpack.c.l.b16 %v1101
  %v1200 = vunpack.c.l.b16 %v1102
  %v1201 = vunpack.c.l.b16 %v1103
  %v1202 = vunpack.c.l.b16 %v1104
  %v1203 = vunpack.c.l.b16 %v1105
  %v1204 = vunpack.c.l.b16 %v1106
  %v1205 = vunpack.c.l.b16 %v1107
  %v1206 = vunpack.c.l.b16 %v1108
  %v1207 = vunpack.c.l.b16 %v1109
  %v1208 = vunpack.c.l.b16 %v1110
  %v1209 = vunpack.c.l.b16 %v1111
  %v1210 = vunpack.c.l.b16 %v1112
  %v1211 = vunpack.c.l.b16 %v1113
  %v1212 = vunpack.c.l.b16 %v1114
  %v1213 = vunpack.c.l.b16 %v1115
  %v1214 = vunpack.c.l.b16 %v1116
  %v1215 = vunpack.c.l.b16 %v1117
  %v1216 = vunpack.c.l.b16 %v1118
  %v1217 = vunpack.c.l.b16 %v1119
  %v1218 = vunpack.c.l.b16 %v1120
  %v1219 = vunpack.c.l.b16 %v1121
  %v1220 = vunpack.c.l.b16 %v1122
  %v1221 = vunpack.c.l.b16 %v1123
  %v1222 = vunpack.c.l.b16 %v1124
  %v1223 = vunpack.c.l.b16 %v1125
  %v1224 = vunpack.c.l.b16 %v1126
  %v1225 = vunpack.c.l.b16 %v1127
  %v1226 = vunpack.c.l.b16 %v1128
  %v1227 = vunpack.c.l.b16 %v1129
  %v1228 = vunpack.c.l.b16 %v1130
  %v1229 = vunpack.c.l.b16 %v1131
  %v1230 = vunpack.c.l.b16 %v1132
  %v1231 = vunpack.c.l.b16 %v1133
  %v1232 = vunpack.c.l.b16 %v1134
  %v1233 = vunpack.c.l.b16 %v1135
  %v1234 = vunpack.c.l.b16 %v1136
  %v1235 = vunpack.c.l.b16 %v1137
  %v1236 = vunpack.c.l.b16 %v1138
  %v1237 = vunpack.c.l.b16 %v1139
  %v1238 = vunpack.c.l.b16 %v1140
  %v1239 = vunpack.c.l.b16 %v1141
  %v1240 = vpack.c.b16 %v1192, %v1191
  %v1241 = vpack.c.b16 %v1194, %v1193
  %v1242 = vpack.c.b16 %v1196, %v1195
  %v1243 = vpack.c.b16 %v1198, %v1197
  %v1244 = vpack.c.b16 %v1200, %v1199
  %v1245 = vpack.c.b16 %v1202, %v1201
  %v1246 = vpack.c.b16 %v1204, %v1203
  %v1247 = vpack.c.b16 %v1206, %v1205
  %v1248 = vpack.c.b16 %v1208, %v1207
  %v1249 = vpack.c.b16 %v1210, %v1209
  %v1250 = vpack.c.b16 %v1212, %v1211
  %v1251 = vpack.c.b16 %v1214, %v1213
  %v1252 = vpack.c.b16 %v1216, %v1215
  %v1253 = vpack.c.b16 %v1218, %v1217
  %v1254 = vpack.c.b16 %v1220, %v1219
  %v1255 = vpack.c.b16 %v1222, %v1221
  %v1256 = vpack.c.b16 %v1224, %v1223
  %v1257 = vpack.c.b16 %v1226, %v1225
  %v1258 = vpack.c.b16 %v1228, %v1227
  %v1259 = vpack.c.b16 %v1230, %v1229
  %v1260 = vpack.c.b16 %v1232, %v1231
  %v1261 = vpack.c.b16 %v1234, %v1233
  %v1262 = vpack.c.b16 %v1236, %v1235
  %v1263 = vpack.c.b16 %v1238, %v1237
  %v1264 = vpack.c.b16 %v1239, %v1239
  %1290 = vmatprep.subr.bf16.mxu0 0
  %1291 = vmatpush1.bf16.msra.mxu0 %v267
  %1292 = vmatprep.subr.bf16.mxu0 0
  %1293 = vmatpush1.bf16.msra.mxu0 %v268
  %1294 = vmatprep.subr.bf16.mxu0 0
  %1295 = vmatpush1.bf16.msra.mxu0 %v269
  %1296 = vmatprep.subr.bf16.mxu0 0
  %1297 = vmatpush1.bf16.msra.mxu0 %v270
  %1298 = vmatprep.subr.bf16.mxu0 0
  %1299 = vmatpush1.bf16.msra.mxu0 %v271
  %1300 = vmatprep.subr.bf16.mxu0 0
  %1301 = vmatpush1.bf16.msra.mxu0 %v272
  %1302 = vmatprep.subr.bf16.mxu0 0
  %1303 = vmatpush1.bf16.msra.mxu0 %v273
  %1304 = vmatprep.subr.bf16.mxu0 0
  %1305 = vmatpush1.bf16.msra.mxu0 %v274
  %1306 = vmatprep.subr.bf16.mxu0 0
  %1307 = vmatpush1.bf16.msra.mxu0 0
  %1308 = vmatprep.subr.bf16.mxu0 0
  %1309 = vmatpush1.bf16.msra.mxu0 0
  %1310 = vmatprep.subr.bf16.mxu0 0
  %1311 = vmatpush1.bf16.msra.mxu0 0
  %1312 = vmatprep.subr.bf16.mxu0 0
  %1313 = vmatpush1.bf16.msra.mxu0 0
  %1314 = vmatprep.subr.bf16.mxu0 0
  %1315 = vmatpush1.bf16.msra.mxu0 0
  %1316 = vmatprep.subr.bf16.mxu0 0
  %1317 = vmatpush1.bf16.msra.mxu0 0
  %1318 = vmatprep.subr.bf16.mxu0 0
  %1319 = vmatpush1.bf16.msra.mxu0 0
  %1320 = vmatprep.subr.bf16.mxu0 0
  %1321 = vmatpush1.bf16.msra.mxu0 0
  %1322 = vmatprep.mubr.bf16.mxu0 0
  %1323 = vmatmul.mubr.bf16.gmra.mrb[0].mxu0 %v1240
  %v1324 = vpop.f32.mrb[0].mxu0
  %v1325 = vadd.f32 %v85, %v1324
  %v1326 = vpop.f32.mrb[0].mxu0
  %v1327 = vpop.f32.mrb[0].mxu0
  %v1328 = vadd.f32 %v85, %v1327
  %v1329 = vpop.f32.mrb[0].mxu0
  %1330 = vmatprep.mubr.bf16.mxu0 0
  %1331 = vmatmul.mubr.bf16.gmra.mrb[0].mxu0 %v1241
  %v1332 = vpop.f32.mrb[0].mxu0
  %v1333 = vadd.f32 %v85, %v1332
  %v1334 = vpop.f32.mrb[0].mxu0
  %v1335 = vpop.f32.mrb[0].mxu0
  %v1336 = vadd.f32 %v85, %v1335
  %v1337 = vpop.f32.mrb[0].mxu0
  %1338 = vmatprep.mubr.bf16.mxu0 0
  %1339 = vmatmul.mubr.bf16.gmra.mrb[0].mxu0 %v1242
  %v1340 = vpop.f32.mrb[0].mxu0
  %v1341 = vadd.f32 %v85, %v1340
  %v1342 = vpop.f32.mrb[0].mxu0
  %v1343 = vpop.f32.mrb[0].mxu0
  %v1344 = vadd.f32 %v85, %v1343
  %v1345 = vpop.f32.mrb[0].mxu0
  %1346 = vmatprep.mubr.bf16.mxu0 0
  %1347 = vmatmul.mubr.bf16.gmra.mrb[0].mxu0 %v1243
  %v1348 = vpop.f32.mrb[0].mxu0
  %v1349 = vadd.f32 %v85, %v1348
  %v1350 = vpop.f32.mrb[0].mxu0
  %v1351 = vpop.f32.mrb[0].mxu0
  %v1352 = vadd.f32 %v85, %v1351
  %v1353 = vpop.f32.mrb[0].mxu0
  %1354 = vmatprep.mubr.bf16.mxu0 0
  %1355 = vmatmul.mubr.bf16.gmra.mrb[0].mxu0 %v1244
  %v1356 = vpop.f32.mrb[0].mxu0
  %v1357 = vadd.f32 %v85, %v1356
  %v1358 = vpop.f32.mrb[0].mxu0
  %v1359 = vpop.f32.mrb[0].mxu0
  %v1360 = vadd.f32 %v85, %v1359
  %v1361 = vpop.f32.mrb[0].mxu0
  %1362 = vmatprep.mubr.bf16.mxu0 0
  %1363 = vmatmul.mubr.bf16.gmra.mrb[0].mxu0 %v1245
  %v1364 = vpop.f32.mrb[0].mxu0
  %v1365 = vadd.f32 %v85, %v1364
  %v1366 = vpop.f32.mrb[0].mxu0
  %v1367 = vpop.f32.mrb[0].mxu0
  %v1368 = vadd.f32 %v85, %v1367
  %v1369 = vpop.f32.mrb[0].mxu0
  %1370 = vmatprep.mubr.bf16.mxu0 0
  %1371 = vmatmul.mubr.bf16.gmra.mrb[0].mxu0 %v1246
  %v1372 = vpop.f32.mrb[0].mxu0
  %v1373 = vadd.f32 %v85, %v1372
  %v1374 = vpop.f32.mrb[0].mxu0
  %v1375 = vpop.f32.mrb[0].mxu0
  %v1376 = vadd.f32 %v85, %v1375
  %v1377 = vpop.f32.mrb[0].mxu0
  %1378 = vmatprep.mubr.bf16.mxu0 0
  %1379 = vmatmul.mubr.bf16.gmra.mrb[0].mxu0 %v1247
  %v1380 = vpop.f32.mrb[0].mxu0
  %v1381 = vadd.f32 %v85, %v1380
  %v1382 = vpop.f32.mrb[0].mxu0
  %v1383 = vpop.f32.mrb[0].mxu0
  %v1384 = vadd.f32 %v85, %v1383
  %v1385 = vpop.f32.mrb[0].mxu0
  %1386 = vmatprep.mubr.bf16.mxu0 0
  %1387 = vmatmul.mubr.bf16.gmra.mrb[0].mxu0 %v1248
  %v1388 = vpop.f32.mrb[0].mxu0
  %v1389 = vadd.f32 %v85, %v1388
  %v1390 = vpop.f32.mrb[0].mxu0
  %v1391 = vpop.f32.mrb[0].mxu0
  %v1392 = vadd.f32 %v85, %v1391
  %v1393 = vpop.f32.mrb[0].mxu0
  %1394 = vmatprep.mubr.bf16.mxu0 0
  %1395 = vmatmul.mubr.bf16.gmra.mrb[0].mxu0 %v1249
  %v1396 = vpop.f32.mrb[0].mxu0
  %v1397 = vadd.f32 %v85, %v1396
  %v1398 = vpop.f32.mrb[0].mxu0
  %v1399 = vpop.f32.mrb[0].mxu0
  %v1400 = vadd.f32 %v85, %v1399
  %v1401 = vpop.f32.mrb[0].mxu0
  %1402 = vmatprep.mubr.bf16.mxu0 0
  %1403 = vmatmul.mubr.bf16.gmra.mrb[0].mxu0 %v1250
  %v1404 = vpop.f32.mrb[0].mxu0
  %v1405 = vadd.f32 %v85, %v1404
  %v1406 = vpop.f32.mrb[0].mxu0
  %v1407 = vpop.f32.mrb[0].mxu0
  %v1408 = vadd.f32 %v85, %v1407
  %v1409 = vpop.f32.mrb[0].mxu0
  %1410 = vmatprep.mubr.bf16.mxu0 0
  %1411 = vmatmul.mubr.bf16.gmra.mrb[0].mxu0 %v1251
  %v1412 = vpop.f32.mrb[0].mxu0
  %v1413 = vadd.f32 %v85, %v1412
  %v1414 = vpop.f32.mrb[0].mxu0
  %v1415 = vpop.f32.mrb[0].mxu0
  %v1416 = vadd.f32 %v85, %v1415
  %v1417 = vpop.f32.mrb[0].mxu0
  %1418 = vmatprep.mubr.bf16.mxu0 0
  %1419 = vmatmul.mubr.bf16.gmra.mrb[0].mxu0 %v1252
  %v1420 = vpop.f32.mrb[0].mxu0
  %v1421 = vadd.f32 %v85, %v1420
  %v1422 = vpop.f32.mrb[0].mxu0
  %v1423 = vpop.f32.mrb[0].mxu0
  %v1424 = vadd.f32 %v85, %v1423
  %v1425 = vpop.f32.mrb[0].mxu0
  %1426 = vmatprep.mubr.bf16.mxu0 0
  %1427 = vmatmul.mubr.bf16.gmra.mrb[0].mxu0 %v1253
  %v1428 = vpop.f32.mrb[0].mxu0
  %v1429 = vadd.f32 %v85, %v1428
  %v1430 = vpop.f32.mrb[0].mxu0
  %v1431 = vpop.f32.mrb[0].mxu0
  %v1432 = vadd.f32 %v85, %v1431
  %v1433 = vpop.f32.mrb[0].mxu0
  %1434 = vmatprep.mubr.bf16.mxu0 0
  %1435 = vmatmul.mubr.bf16.gmra.mrb[0].mxu0 %v1254
  %v1436 = vpop.f32.mrb[0].mxu0
  %v1437 = vadd.f32 %v85, %v1436
  %v1438 = vpop.f32.mrb[0].mxu0
  %v1439 = vpop.f32.mrb[0].mxu0
  %v1440 = vadd.f32 %v85, %v1439
  %v1441 = vpop.f32.mrb[0].mxu0
  %1442 = vmatprep.mubr.bf16.mxu0 0
  %1443 = vmatmul.mubr.bf16.gmra.mrb[0].mxu0 %v1255
  %v1444 = vpop.f32.mrb[0].mxu0
  %v1445 = vadd.f32 %v85, %v1444
  %v1446 = vpop.f32.mrb[0].mxu0
  %v1447 = vpop.f32.mrb[0].mxu0
  %v1448 = vadd.f32 %v85, %v1447
  %v1449 = vpop.f32.mrb[0].mxu0
  %1450 = vmatprep.mubr.bf16.mxu0 0
  %1451 = vmatmul.mubr.bf16.gmra.mrb[0].mxu0 %v1256
  %v1452 = vpop.f32.mrb[0].mxu0
  %v1453 = vadd.f32 %v85, %v1452
  %v1454 = vpop.f32.mrb[0].mxu0
  %v1455 = vpop.f32.mrb[0].mxu0
  %v1456 = vadd.f32 %v85, %v1455
  %v1457 = vpop.f32.mrb[0].mxu0
  %1458 = vmatprep.mubr.bf16.mxu0 0
  %1459 = vmatmul.mubr.bf16.gmra.mrb[0].mxu0 %v1257
  %v1460 = vpop.f32.mrb[0].mxu0
  %v1461 = vadd.f32 %v85, %v1460
  %v1462 = vpop.f32.mrb[0].mxu0
  %v1463 = vpop.f32.mrb[0].mxu0
  %v1464 = vadd.f32 %v85, %v1463
  %v1465 = vpop.f32.mrb[0].mxu0
  %1466 = vmatprep.mubr.bf16.mxu0 0
  %1467 = vmatmul.mubr.bf16.gmra.mrb[0].mxu0 %v1258
  %v1468 = vpop.f32.mrb[0].mxu0
  %v1469 = vadd.f32 %v85, %v1468
  %v1470 = vpop.f32.mrb[0].mxu0
  %v1471 = vpop.f32.mrb[0].mxu0
  %v1472 = vadd.f32 %v85, %v1471
  %v1473 = vpop.f32.mrb[0].mxu0
  %1474 = vmatprep.mubr.bf16.mxu0 0
  %1475 = vmatmul.mubr.bf16.gmra.mrb[0].mxu0 %v1259
  %v1476 = vpop.f32.mrb[0].mxu0
  %v1477 = vadd.f32 %v85, %v1476
  %v1478 = vpop.f32.mrb[0].mxu0
  %v1479 = vpop.f32.mrb[0].mxu0
  %v1480 = vadd.f32 %v85, %v1479
  %v1481 = vpop.f32.mrb[0].mxu0
  %1482 = vmatprep.mubr.bf16.mxu0 0
  %1483 = vmatmul.mubr.bf16.gmra.mrb[0].mxu0 %v1260
  %v1484 = vpop.f32.mrb[0].mxu0
  %v1485 = vadd.f32 %v85, %v1484
  %v1486 = vpop.f32.mrb[0].mxu0
  %v1487 = vpop.f32.mrb[0].mxu0
  %v1488 = vadd.f32 %v85, %v1487
  %v1489 = vpop.f32.mrb[0].mxu0
  %1490 = vmatprep.mubr.bf16.mxu0 0
  %1491 = vmatmul.mubr.bf16.gmra.mrb[0].mxu0 %v1261
  %v1492 = vpop.f32.mrb[0].mxu0
  %v1493 = vadd.f32 %v85, %v1492
  %v1494 = vpop.f32.mrb[0].mxu0
  %v1495 = vpop.f32.mrb[0].mxu0
  %v1496 = vadd.f32 %v85, %v1495
  %v1497 = vpop.f32.mrb[0].mxu0
  %1498 = vmatprep.mubr.bf16.mxu0 0
  %1499 = vmatmul.mubr.bf16.gmra.mrb[0].mxu0 %v1262
  %v1500 = vpop.f32.mrb[0].mxu0
  %v1501 = vadd.f32 %v85, %v1500
  %v1502 = vpop.f32.mrb[0].mxu0
  %v1503 = vpop.f32.mrb[0].mxu0
  %v1504 = vadd.f32 %v85, %v1503
  %v1505 = vpop.f32.mrb[0].mxu0
  %1506 = vmatprep.mubr.bf16.mxu0 0
  %1507 = vmatmul.mubr.bf16.gmra.mrb[0].mxu0 %v1263
  %v1508 = vpop.f32.mrb[0].mxu0
  %v1509 = vadd.f32 %v85, %v1508
  %v1510 = vpop.f32.mrb[0].mxu0
  %v1511 = vpop.f32.mrb[0].mxu0
  %v1512 = vadd.f32 %v85, %v1511
  %v1513 = vpop.f32.mrb[0].mxu0
  %1514 = vmatprep.mubr.bf16.mxu0 0
  %1515 = vmatmul.mubr.bf16.gmra.mrb[0].mxu0 %v1264
  %v1516 = vpop.f32.mrb[0].mxu0
  %v1517 = vadd.f32 %v85, %v1516
  %v1518 = vpop.f32.mrb[0].mxu0
  %v1519 = vpop.f32.mrb[0].mxu0
  %v1520 = vpop.f32.mrb[0].mxu0
  %1521 = vdwg.mxu0
  %v1522 = vmax.f32 %v1325, 0.0
  %v1523 = vmax.f32 %v1328, 0.0
  %v1524 = vmax.f32 %v1333, 0.0
  %v1525 = vmax.f32 %v1336, 0.0
  %v1526 = vmax.f32 %v1341, 0.0
  %v1527 = vmax.f32 %v1344, 0.0
  %v1528 = vmax.f32 %v1349, 0.0
  %v1529 = vmax.f32 %v1352, 0.0
  %v1530 = vmax.f32 %v1357, 0.0
  %v1531 = vmax.f32 %v1360, 0.0
  %v1532 = vmax.f32 %v1365, 0.0
  %v1533 = vmax.f32 %v1368, 0.0
  %v1534 = vmax.f32 %v1373, 0.0
  %v1535 = vmax.f32 %v1376, 0.0
  %v1536 = vmax.f32 %v1381, 0.0
  %v1537 = vmax.f32 %v1384, 0.0
  %v1538 = vmax.f32 %v1389, 0.0
  %v1539 = vmax.f32 %v1392, 0.0
  %v1540 = vmax.f32 %v1397, 0.0
  %v1541 = vmax.f32 %v1400, 0.0
  %v1542 = vmax.f32 %v1405, 0.0
  %v1543 = vmax.f32 %v1408, 0.0
  %v1544 = vmax.f32 %v1413, 0.0
  %v1545 = vmax.f32 %v1416, 0.0
  %v1546 = vmax.f32 %v1421, 0.0
  %v1547 = vmax.f32 %v1424, 0.0
  %v1548 = vmax.f32 %v1429, 0.0
  %v1549 = vmax.f32 %v1432, 0.0
  %v1550 = vmax.f32 %v1437, 0.0
  %v1551 = vmax.f32 %v1440, 0.0
  %v1552 = vmax.f32 %v1445, 0.0
  %v1553 = vmax.f32 %v1448, 0.0
  %v1554 = vmax.f32 %v1453, 0.0
  %v1555 = vmax.f32 %v1456, 0.0
  %v1556 = vmax.f32 %v1461, 0.0
  %v1557 = vmax.f32 %v1464, 0.0
  %v1558 = vmax.f32 %v1469, 0.0
  %v1559 = vmax.f32 %v1472, 0.0
  %v1560 = vmax.f32 %v1477, 0.0
  %v1561 = vmax.f32 %v1480, 0.0
  %v1562 = vmax.f32 %v1485, 0.0
  %v1563 = vmax.f32 %v1488, 0.0
  %v1564 = vmax.f32 %v1493, 0.0
  %v1565 = vmax.f32 %v1496, 0.0
  %v1566 = vmax.f32 %v1501, 0.0
  %v1567 = vmax.f32 %v1504, 0.0
  %v1568 = vmax.f32 %v1509, 0.0
  %v1569 = vmax.f32 %v1512, 0.0
  %v1570 = vmax.f32 %v1517, 0.0
  %s1571 = scalar_lea.vmem %s0, 588
  %v1572 = vld [vmem:[%s1571] sm:$0xf]
  %v1573 = vld [vmem:[%s1571 + $0x4] sm:$0xf]
  %v1574 = vld [vmem:[%s1571 + $0x8] sm:$0xf]
  %v1575 = vld [vmem:[%s1571 + $0xc] sm:$0xf]
  %v1576 = vld [vmem:[%s1571 + $0x10] sm:$0xf]
  %v1577 = vld [vmem:[%s1571 + $0x14] sm:$0xf]
  %v1578 = vld [vmem:[%s1571 + $0x18] sm:$0xf]
  %v1579 = vld [vmem:[%s1571 + $0x1c] sm:$0xf]
  %v1580 = vld [vmem:[%s1571 + $0x20] sm:$0xf]
  %v1581 = vld [vmem:[%s1571 + $0x24] sm:$0xf]
  %v1582 = vld [vmem:[%s1571 + $0x28] sm:$0xf]
  %v1583 = vld [vmem:[%s1571 + $0x2c] sm:$0xf]
  %v1584 = vld [vmem:[%s1571 + $0x30] sm:$0xf]
  %v1585 = vld [vmem:[%s1571 + $0x34] sm:$0xf]
  %v1586 = vld [vmem:[%s1571 + $0x38] sm:$0xf]
  %v1587 = vld [vmem:[%s1571 + $0x3c] sm:$0xf]
  %v1588 = vld [vmem:[%s1571 + $0x40] sm:$0xf]
  %v1589 = vld [vmem:[%s1571 + $0x44] sm:$0xf]
  %v1590 = vld [vmem:[%s1571 + $0x48] sm:$0xf]
  %v1591 = vld [vmem:[%s1571 + $0x4c] sm:$0xf]
  %v1592 = vld [vmem:[%s1571 + $0x50] sm:$0xf]
  %v1593 = vld [vmem:[%s1571 + $0x54] sm:$0xf]
  %v1594 = vld [vmem:[%s1571 + $0x58] sm:$0xf]
  %v1595 = vld [vmem:[%s1571 + $0x5c] sm:$0xf]
  %v1596 = vld [vmem:[%s1571 + $0x60] sm:$0xf]
  %v1597 = vld [vmem:[%s1571 + $0x64] sm:$0xf]
  %v1598 = vld [vmem:[%s1571 + $0x68] sm:$0xf]
  %v1599 = vld [vmem:[%s1571 + $0x6c] sm:$0xf]
  %v1600 = vld [vmem:[%s1571 + $0x70] sm:$0xf]
  %v1601 = vld [vmem:[%s1571 + $0x74] sm:$0xf]
  %v1602 = vld [vmem:[%s1571 + $0x78] sm:$0xf]
  %v1603 = vld [vmem:[%s1571 + $0x7c] sm:$0xf]
  %v1604 = vld [vmem:[%s1571 + $0x80] sm:$0xf]
  %v1605 = vld [vmem:[%s1571 + $0x84] sm:$0xf]
  %v1606 = vld [vmem:[%s1571 + $0x88] sm:$0xf]
  %v1607 = vld [vmem:[%s1571 + $0x8c] sm:$0xf]
  %v1608 = vld [vmem:[%s1571 + $0x90] sm:$0xf]
  %v1609 = vld [vmem:[%s1571 + $0x94] sm:$0xf]
  %v1610 = vld [vmem:[%s1571 + $0x98] sm:$0xf]
  %v1611 = vld [vmem:[%s1571 + $0x9c] sm:$0xf]
  %v1612 = vld [vmem:[%s1571 + $0xa0] sm:$0xf]
  %v1613 = vld [vmem:[%s1571 + $0xa4] sm:$0xf]
  %v1614 = vld [vmem:[%s1571 + $0xa8] sm:$0xf]
  %v1615 = vld [vmem:[%s1571 + $0xac] sm:$0xf]
  %v1616 = vld [vmem:[%s1571 + $0xb0] sm:$0xf]
  %v1617 = vld [vmem:[%s1571 + $0xb4] sm:$0xf]
  %v1618 = vld [vmem:[%s1571 + $0xb8] sm:$0xf]
  %v1619 = vld [vmem:[%s1571 + $0xbc] sm:$0xf]
  %v1620 = vld [vmem:[%s1571 + $0xc0] sm:$0xf]
  %v1670 = vunpack.c.l.b16 %v1572
  %v1671 = vunpack.c.l.b16 %v1573
  %v1672 = vunpack.c.l.b16 %v1574
  %v1673 = vunpack.c.l.b16 %v1575
  %v1674 = vunpack.c.l.b16 %v1576
  %v1675 = vunpack.c.l.b16 %v1577
  %v1676 = vunpack.c.l.b16 %v1578
  %v1677 = vunpack.c.l.b16 %v1579
  %v1678 = vunpack.c.l.b16 %v1580
  %v1679 = vunpack.c.l.b16 %v1581
  %v1680 = vunpack.c.l.b16 %v1582
  %v1681 = vunpack.c.l.b16 %v1583
  %v1682 = vunpack.c.l.b16 %v1584
  %v1683 = vunpack.c.l.b16 %v1585
  %v1684 = vunpack.c.l.b16 %v1586
  %v1685 = vunpack.c.l.b16 %v1587
  %v1686 = vunpack.c.l.b16 %v1588
  %v1687 = vunpack.c.l.b16 %v1589
  %v1688 = vunpack.c.l.b16 %v1590
  %v1689 = vunpack.c.l.b16 %v1591
  %v1690 = vunpack.c.l.b16 %v1592
  %v1691 = vunpack.c.l.b16 %v1593
  %v1692 = vunpack.c.l.b16 %v1594
  %v1693 = vunpack.c.l.b16 %v1595
  %v1694 = vunpack.c.l.b16 %v1596
  %v1695 = vunpack.c.l.b16 %v1597
  %v1696 = vunpack.c.l.b16 %v1598
  %v1697 = vunpack.c.l.b16 %v1599
  %v1698 = vunpack.c.l.b16 %v1600
  %v1699 = vunpack.c.l.b16 %v1601
  %v1700 = vunpack.c.l.b16 %v1602
  %v1701 = vunpack.c.l.b16 %v1603
  %v1702 = vunpack.c.l.b16 %v1604
  %v1703 = vunpack.c.l.b16 %v1605
  %v1704 = vunpack.c.l.b16 %v1606
  %v1705 = vunpack.c.l.b16 %v1607
  %v1706 = vunpack.c.l.b16 %v1608
  %v1707 = vunpack.c.l.b16 %v1609
  %v1708 = vunpack.c.l.b16 %v1610
  %v1709 = vunpack.c.l.b16 %v1611
  %v1710 = vunpack.c.l.b16 %v1612
  %v1711 = vunpack.c.l.b16 %v1613
  %v1712 = vunpack.c.l.b16 %v1614
  %v1713 = vunpack.c.l.b16 %v1615
  %v1714 = vunpack.c.l.b16 %v1616
  %v1715 = vunpack.c.l.b16 %v1617
  %v1716 = vunpack.c.l.b16 %v1618
  %v1717 = vunpack.c.l.b16 %v1619
  %v1718 = vunpack.c.l.b16 %v1620
  %v1719 = vpack.c.b16 %v1671, %v1670
  %v1720 = vpack.c.b16 %v1673, %v1672
  %v1721 = vpack.c.b16 %v1675, %v1674
  %v1722 = vpack.c.b16 %v1677, %v1676
  %v1723 = vpack.c.b16 %v1679, %v1678
  %v1724 = vpack.c.b16 %v1681, %v1680
  %v1725 = vpack.c.b16 %v1683, %v1682
  %v1726 = vpack.c.b16 %v1685, %v1684
  %v1727 = vpack.c.b16 %v1687, %v1686
  %v1728 = vpack.c.b16 %v1689, %v1688
  %v1729 = vpack.c.b16 %v1691, %v1690
  %v1730 = vpack.c.b16 %v1693, %v1692
  %v1731 = vpack.c.b16 %v1695, %v1694
  %v1732 = vpack.c.b16 %v1697, %v1696
  %v1733 = vpack.c.b16 %v1699, %v1698
  %v1734 = vpack.c.b16 %v1701, %v1700
  %v1735 = vpack.c.b16 %v1703, %v1702
  %v1736 = vpack.c.b16 %v1705, %v1704
  %v1737 = vpack.c.b16 %v1707, %v1706
  %v1738 = vpack.c.b16 %v1709, %v1708
  %v1739 = vpack.c.b16 %v1711, %v1710
  %v1740 = vpack.c.b16 %v1713, %v1712
  %v1741 = vpack.c.b16 %v1715, %v1714
  %v1742 = vpack.c.b16 %v1717, %v1716
  %v1743 = vpack.c.b16 %v1718, %v1718
  %1769 = vmatprep.subr.bf16.mxu0 0
  %1770 = vmatpush1.bf16.msra.mxu0 %v267
  %1771 = vmatprep.subr.bf16.mxu0 0
  %1772 = vmatpush1.bf16.msra.mxu0 %v268
  %1773 = vmatprep.subr.bf16.mxu0 0
  %1774 = vmatpush1.bf16.msra.mxu0 %v269
  %1775 = vmatprep.subr.bf16.mxu0 0
  %1776 = vmatpush1.bf16.msra.mxu0 %v270
  %1777 = vmatprep.subr.bf16.mxu0 0
  %1778 = vmatpush1.bf16.msra.mxu0 %v271
  %1779 = vmatprep.subr.bf16.mxu0 0
  %1780 = vmatpush1.bf16.msra.mxu0 %v272
  %1781 = vmatprep.subr.bf16.mxu0 0
  %1782 = vmatpush1.bf16.msra.mxu0 %v273
  %1783 = vmatprep.subr.bf16.mxu0 0
  %1784 = vmatpush1.bf16.msra.mxu0 %v274
  %1785 = vmatprep.subr.bf16.mxu0 0
  %1786 = vmatpush1.bf16.msra.mxu0 0
  %1787 = vmatprep.subr.bf16.mxu0 0
  %1788 = vmatpush1.bf16.msra.mxu0 0
  %1789 = vmatprep.subr.bf16.mxu0 0
  %1790 = vmatpush1.bf16.msra.mxu0 0
  %1791 = vmatprep.subr.bf16.mxu0 0
  %1792 = vmatpush1.bf16.msra.mxu0 0
  %1793 = vmatprep.subr.bf16.mxu0 0
  %1794 = vmatpush1.bf16.msra.mxu0 0
  %1795 = vmatprep.subr.bf16.mxu0 0
  %1796 = vmatpush1.bf16.msra.mxu0 0
  %1797 = vmatprep.subr.bf16.mxu0 0
  %1798 = vmatpush1.bf16.msra.mxu0 0
  %1799 = vmatprep.subr.bf16.mxu0 0
  %1800 = vmatpush1.bf16.msra.mxu0 0
  %1801 = vmatprep.mubr.bf16.mxu0 0
  %1802 = vmatmul.mubr.bf16.gmra.mrb[0].mxu0 %v1719
  %v1803 = vpop.f32.mrb[0].mxu0
  %v1804 = vadd.f32 %v85, %v1803
  %v1805 = vpop.f32.mrb[0].mxu0
  %v1806 = vpop.f32.mrb[0].mxu0
  %v1807 = vadd.f32 %v85, %v1806
  %v1808 = vpop.f32.mrb[0].mxu0
  %1809 = vmatprep.mubr.bf16.mxu0 0
  %1810 = vmatmul.mubr.bf16.gmra.mrb[0].mxu0 %v1720
  %v1811 = vpop.f32.mrb[0].mxu0
  %v1812 = vadd.f32 %v85, %v1811
  %v1813 = vpop.f32.mrb[0].mxu0
  %v1814 = vpop.f32.mrb[0].mxu0
  %v1815 = vadd.f32 %v85, %v1814
  %v1816 = vpop.f32.mrb[0].mxu0
  %1817 = vmatprep.mubr.bf16.mxu0 0
  %1818 = vmatmul.mubr.bf16.gmra.mrb[0].mxu0 %v1721
  %v1819 = vpop.f32.mrb[0].mxu0
  %v1820 = vadd.f32 %v85, %v1819
  %v1821 = vpop.f32.mrb[0].mxu0
  %v1822 = vpop.f32.mrb[0].mxu0
  %v1823 = vadd.f32 %v85, %v1822
  %v1824 = vpop.f32.mrb[0].mxu0
  %1825 = vmatprep.mubr.bf16.mxu0 0
  %1826 = vmatmul.mubr.bf16.gmra.mrb[0].mxu0 %v1722
  %v1827 = vpop.f32.mrb[0].mxu0
  %v1828 = vadd.f32 %v85, %v1827
  %v1829 = vpop.f32.mrb[0].mxu0
  %v1830 = vpop.f32.mrb[0].mxu0
  %v1831 = vadd.f32 %v85, %v1830
  %v1832 = vpop.f32.mrb[0].mxu0
  %1833 = vmatprep.mubr.bf16.mxu0 0
  %1834 = vmatmul.mubr.bf16.gmra.mrb[0].mxu0 %v1723
  %v1835 = vpop.f32.mrb[0].mxu0
  %v1836 = vadd.f32 %v85, %v1835
  %v1837 = vpop.f32.mrb[0].mxu0
  %v1838 = vpop.f32.mrb[0].mxu0
  %v1839 = vadd.f32 %v85, %v1838
  %v1840 = vpop.f32.mrb[0].mxu0
  %1841 = vmatprep.mubr.bf16.mxu0 0
  %1842 = vmatmul.mubr.bf16.gmra.mrb[0].mxu0 %v1724
  %v1843 = vpop.f32.mrb[0].mxu0
  %v1844 = vadd.f32 %v85, %v1843
  %v1845 = vpop.f32.mrb[0].mxu0
  %v1846 = vpop.f32.mrb[0].mxu0
  %v1847 = vadd.f32 %v85, %v1846
  %v1848 = vpop.f32.mrb[0].mxu0
  %1849 = vmatprep.mubr.bf16.mxu0 0
  %1850 = vmatmul.mubr.bf16.gmra.mrb[0].mxu0 %v1725
  %v1851 = vpop.f32.mrb[0].mxu0
  %v1852 = vadd.f32 %v85, %v1851
  %v1853 = vpop.f32.mrb[0].mxu0
  %v1854 = vpop.f32.mrb[0].mxu0
  %v1855 = vadd.f32 %v85, %v1854
  %v1856 = vpop.f32.mrb[0].mxu0
  %1857 = vmatprep.mubr.bf16.mxu0 0
  %1858 = vmatmul.mubr.bf16.gmra.mrb[0].mxu0 %v1726
  %v1859 = vpop.f32.mrb[0].mxu0
  %v1860 = vadd.f32 %v85, %v1859
  %v1861 = vpop.f32.mrb[0].mxu0
  %v1862 = vpop.f32.mrb[0].mxu0
  %v1863 = vadd.f32 %v85, %v1862
  %v1864 = vpop.f32.mrb[0].mxu0
  %1865 = vmatprep.mubr.bf16.mxu0 0
  %1866 = vmatmul.mubr.bf16.gmra.mrb[0].mxu0 %v1727
  %v1867 = vpop.f32.mrb[0].mxu0
  %v1868 = vadd.f32 %v85, %v1867
  %v1869 = vpop.f32.mrb[0].mxu0
  %v1870 = vpop.f32.mrb[0].mxu0
  %v1871 = vadd.f32 %v85, %v1870
  %v1872 = vpop.f32.mrb[0].mxu0
  %1873 = vmatprep.mubr.bf16.mxu0 0
  %1874 = vmatmul.mubr.bf16.gmra.mrb[0].mxu0 %v1728
  %v1875 = vpop.f32.mrb[0].mxu0
  %v1876 = vadd.f32 %v85, %v1875
  %v1877 = vpop.f32.mrb[0].mxu0
  %v1878 = vpop.f32.mrb[0].mxu0
  %v1879 = vadd.f32 %v85, %v1878
  %v1880 = vpop.f32.mrb[0].mxu0
  %1881 = vmatprep.mubr.bf16.mxu0 0
  %1882 = vmatmul.mubr.bf16.gmra.mrb[0].mxu0 %v1729
  %v1883 = vpop.f32.mrb[0].mxu0
  %v1884 = vadd.f32 %v85, %v1883
  %v1885 = vpop.f32.mrb[0].mxu0
  %v1886 = vpop.f32.mrb[0].mxu0
  %v1887 = vadd.f32 %v85, %v1886
  %v1888 = vpop.f32.mrb[0].mxu0
  %1889 = vmatprep.mubr.bf16.mxu0 0
  %1890 = vmatmul.mubr.bf16.gmra.mrb[0].mxu0 %v1730
  %v1891 = vpop.f32.mrb[0].mxu0
  %v1892 = vadd.f32 %v85, %v1891
  %v1893 = vpop.f32.mrb[0].mxu0
  %v1894 = vpop.f32.mrb[0].mxu0
  %v1895 = vadd.f32 %v85, %v1894
  %v1896 = vpop.f32.mrb[0].mxu0
  %1897 = vmatprep.mubr.bf16.mxu0 0
  %1898 = vmatmul.mubr.bf16.gmra.mrb[0].mxu0 %v1731
  %v1899 = vpop.f32.mrb[0].mxu0
  %v1900 = vadd.f32 %v85, %v1899
  %v1901 = vpop.f32.mrb[0].mxu0
  %v1902 = vpop.f32.mrb[0].mxu0
  %v1903 = vadd.f32 %v85, %v1902
  %v1904 = vpop.f32.mrb[0].mxu0
  %1905 = vmatprep.mubr.bf16.mxu0 0
  %1906 = vmatmul.mubr.bf16.gmra.mrb[0].mxu0 %v1732
  %v1907 = vpop.f32.mrb[0].mxu0
  %v1908 = vadd.f32 %v85, %v1907
  %v1909 = vpop.f32.mrb[0].mxu0
  %v1910 = vpop.f32.mrb[0].mxu0
  %v1911 = vadd.f32 %v85, %v1910
  %v1912 = vpop.f32.mrb[0].mxu0
  %1913 = vmatprep.mubr.bf16.mxu0 0
  %1914 = vmatmul.mubr.bf16.gmra.mrb[0].mxu0 %v1733
  %v1915 = vpop.f32.mrb[0].mxu0
  %v1916 = vadd.f32 %v85, %v1915
  %v1917 = vpop.f32.mrb[0].mxu0
  %v1918 = vpop.f32.mrb[0].mxu0
  %v1919 = vadd.f32 %v85, %v1918
  %v1920 = vpop.f32.mrb[0].mxu0
  %1921 = vmatprep.mubr.bf16.mxu0 0
  %1922 = vmatmul.mubr.bf16.gmra.mrb[0].mxu0 %v1734
  %v1923 = vpop.f32.mrb[0].mxu0
  %v1924 = vadd.f32 %v85, %v1923
  %v1925 = vpop.f32.mrb[0].mxu0
  %v1926 = vpop.f32.mrb[0].mxu0
  %v1927 = vadd.f32 %v85, %v1926
  %v1928 = vpop.f32.mrb[0].mxu0
  %1929 = vmatprep.mubr.bf16.mxu0 0
  %1930 = vmatmul.mubr.bf16.gmra.mrb[0].mxu0 %v1735
  %v1931 = vpop.f32.mrb[0].mxu0
  %v1932 = vadd.f32 %v85, %v1931
  %v1933 = vpop.f32.mrb[0].mxu0
  %v1934 = vpop.f32.mrb[0].mxu0
  %v1935 = vadd.f32 %v85, %v1934
  %v1936 = vpop.f32.mrb[0].mxu0
  %1937 = vmatprep.mubr.bf16.mxu0 0
  %1938 = vmatmul.mubr.bf16.gmra.mrb[0].mxu0 %v1736
  %v1939 = vpop.f32.mrb[0].mxu0
  %v1940 = vadd.f32 %v85, %v1939
  %v1941 = vpop.f32.mrb[0].mxu0
  %v1942 = vpop.f32.mrb[0].mxu0
  %v1943 = vadd.f32 %v85, %v1942
  %v1944 = vpop.f32.mrb[0].mxu0
  %1945 = vmatprep.mubr.bf16.mxu0 0
  %1946 = vmatmul.mubr.bf16.gmra.mrb[0].mxu0 %v1737
  %v1947 = vpop.f32.mrb[0].mxu0
  %v1948 = vadd.f32 %v85, %v1947
  %v1949 = vpop.f32.mrb[0].mxu0
  %v1950 = vpop.f32.mrb[0].mxu0
  %v1951 = vadd.f32 %v85, %v1950
  %v1952 = vpop.f32.mrb[0].mxu0
  %1953 = vmatprep.mubr.bf16.mxu0 0
  %1954 = vmatmul.mubr.bf16.gmra.mrb[0].mxu0 %v1738
  %v1955 = vpop.f32.mrb[0].mxu0
  %v1956 = vadd.f32 %v85, %v1955
  %v1957 = vpop.f32.mrb[0].mxu0
  %v1958 = vpop.f32.mrb[0].mxu0
  %v1959 = vadd.f32 %v85, %v1958
  %v1960 = vpop.f32.mrb[0].mxu0
  %1961 = vmatprep.mubr.bf16.mxu0 0
  %1962 = vmatmul.mubr.bf16.gmra.mrb[0].mxu0 %v1739
  %v1963 = vpop.f32.mrb[0].mxu0
  %v1964 = vadd.f32 %v85, %v1963
  %v1965 = vpop.f32.mrb[0].mxu0
  %v1966 = vpop.f32.mrb[0].mxu0
  %v1967 = vadd.f32 %v85, %v1966
  %v1968 = vpop.f32.mrb[0].mxu0
  %1969 = vmatprep.mubr.bf16.mxu0 0
  %1970 = vmatmul.mubr.bf16.gmra.mrb[0].mxu0 %v1740
  %v1971 = vpop.f32.mrb[0].mxu0
  %v1972 = vadd.f32 %v85, %v1971
  %v1973 = vpop.f32.mrb[0].mxu0
  %v1974 = vpop.f32.mrb[0].mxu0
  %v1975 = vadd.f32 %v85, %v1974
  %v1976 = vpop.f32.mrb[0].mxu0
  %1977 = vmatprep.mubr.bf16.mxu0 0
  %1978 = vmatmul.mubr.bf16.gmra.mrb[0].mxu0 %v1741
  %v1979 = vpop.f32.mrb[0].mxu0
  %v1980 = vadd.f32 %v85, %v1979
  %v1981 = vpop.f32.mrb[0].mxu0
  %v1982 = vpop.f32.mrb[0].mxu0
  %v1983 = vadd.f32 %v85, %v1982
  %v1984 = vpop.f32.mrb[0].mxu0
  %1985 = vmatprep.mubr.bf16.mxu0 0
  %1986 = vmatmul.mubr.bf16.gmra.mrb[0].mxu0 %v1742
  %v1987 = vpop.f32.mrb[0].mxu0
  %v1988 = vadd.f32 %v85, %v1987
  %v1989 = vpop.f32.mrb[0].mxu0
  %v1990 = vpop.f32.mrb[0].mxu0
  %v1991 = vadd.f32 %v85, %v1990
  %v1992 = vpop.f32.mrb[0].mxu0
  %1993 = vmatprep.mubr.bf16.mxu0 0
  %1994 = vmatmul.mubr.bf16.gmra.mrb[0].mxu0 %v1743
  %v1995 = vpop.f32.mrb[0].mxu0
  %v1996 = vadd.f32 %v85, %v1995
  %v1997 = vpop.f32.mrb[0].mxu0
  %v1998 = vpop.f32.mrb[0].mxu0
  %v1999 = vpop.f32.mrb[0].mxu0
  %2000 = vdwg.mxu0
  %v2001 = vmax.f32 %v1804, 0.0
  %v2002 = vmax.f32 %v1807, 0.0
  %v2003 = vmax.f32 %v1812, 0.0
  %v2004 = vmax.f32 %v1815, 0.0
  %v2005 = vmax.f32 %v1820, 0.0
  %v2006 = vmax.f32 %v1823, 0.0
  %v2007 = vmax.f32 %v1828, 0.0
  %v2008 = vmax.f32 %v1831, 0.0
  %v2009 = vmax.f32 %v1836, 0.0
  %v2010 = vmax.f32 %v1839, 0.0
  %v2011 = vmax.f32 %v1844, 0.0
  %v2012 = vmax.f32 %v1847, 0.0
  %v2013 = vmax.f32 %v1852, 0.0
  %v2014 = vmax.f32 %v1855, 0.0
  %v2015 = vmax.f32 %v1860, 0.0
  %v2016 = vmax.f32 %v1863, 0.0
  %v2017 = vmax.f32 %v1868, 0.0
  %v2018 = vmax.f32 %v1871, 0.0
  %v2019 = vmax.f32 %v1876, 0.0
  %v2020 = vmax.f32 %v1879, 0.0
  %v2021 = vmax.f32 %v1884, 0.0
  %v2022 = vmax.f32 %v1887, 0.0
  %v2023 = vmax.f32 %v1892, 0.0
  %v2024 = vmax.f32 %v1895, 0.0
  %v2025 = vmax.f32 %v1900, 0.0
  %v2026 = vmax.f32 %v1903, 0.0
  %v2027 = vmax.f32 %v1908, 0.0
  %v2028 = vmax.f32 %v1911, 0.0
  %v2029 = vmax.f32 %v1916, 0.0
  %v2030 = vmax.f32 %v1919, 0.0
  %v2031 = vmax.f32 %v1924, 0.0
  %v2032 = vmax.f32 %v1927, 0.0
  %v2033 = vmax.f32 %v1932, 0.0
  %v2034 = vmax.f32 %v1935, 0.0
  %v2035 = vmax.f32 %v1940, 0.0
  %v2036 = vmax.f32 %v1943, 0.0
  %v2037 = vmax.f32 %v1948, 0.0
  %v2038 = vmax.f32 %v1951, 0.0
  %v2039 = vmax.f32 %v1956, 0.0
  %v2040 = vmax.f32 %v1959, 0.0
  %v2041 = vmax.f32 %v1964, 0.0
  %v2042 = vmax.f32 %v1967, 0.0
  %v2043 = vmax.f32 %v1972, 0.0
  %v2044 = vmax.f32 %v1975, 0.0
  %v2045 = vmax.f32 %v1980, 0.0
  %v2046 = vmax.f32 %v1983, 0.0
  %v2047 = vmax.f32 %v1988, 0.0
  %v2048 = vmax.f32 %v1991, 0.0
  %v2049 = vmax.f32 %v1996, 0.0
  %v2050 = vmax.f32 %v1522, %v2001
  %v2051 = vmax.f32 %v1523, %v2002
  %v2052 = vmax.f32 %v1524, %v2003
  %v2053 = vmax.f32 %v1525, %v2004
  %v2054 = vmax.f32 %v1526, %v2005
  %v2055 = vmax.f32 %v1527, %v2006
  %v2056 = vmax.f32 %v1528, %v2007
  %v2057 = vmax.f32 %v1529, %v2008
  %v2058 = vmax.f32 %v1530, %v2009
  %v2059 = vmax.f32 %v1531, %v2010
  %v2060 = vmax.f32 %v1532, %v2011
  %v2061 = vmax.f32 %v1533, %v2012
  %v2062 = vmax.f32 %v1534, %v2013
  %v2063 = vmax.f32 %v1535, %v2014
  %v2064 = vmax.f32 %v1536, %v2015
  %v2065 = vmax.f32 %v1537, %v2016
  %v2066 = vmax.f32 %v1538, %v2017
  %v2067 = vmax.f32 %v1539, %v2018
  %v2068 = vmax.f32 %v1540, %v2019
  %v2069 = vmax.f32 %v1541, %v2020
  %v2070 = vmax.f32 %v1542, %v2021
  %v2071 = vmax.f32 %v1543, %v2022
  %v2072 = vmax.f32 %v1544, %v2023
  %v2073 = vmax.f32 %v1545, %v2024
  %v2074 = vmax.f32 %v1546, %v2025
  %v2075 = vmax.f32 %v1547, %v2026
  %v2076 = vmax.f32 %v1548, %v2027
  %v2077 = vmax.f32 %v1549, %v2028
  %v2078 = vmax.f32 %v1550, %v2029
  %v2079 = vmax.f32 %v1551, %v2030
  %v2080 = vmax.f32 %v1552, %v2031
  %v2081 = vmax.f32 %v1553, %v2032
  %v2082 = vmax.f32 %v1554, %v2033
  %v2083 = vmax.f32 %v1555, %v2034
  %v2084 = vmax.f32 %v1556, %v2035
  %v2085 = vmax.f32 %v1557, %v2036
  %v2086 = vmax.f32 %v1558, %v2037
  %v2087 = vmax.f32 %v1559, %v2038
  %v2088 = vmax.f32 %v1560, %v2039
  %v2089 = vmax.f32 %v1561, %v2040
  %v2090 = vmax.f32 %v1562, %v2041
  %v2091 = vmax.f32 %v1563, %v2042
  %v2092 = vmax.f32 %v1564, %v2043
  %v2093 = vmax.f32 %v1565, %v2044
  %v2094 = vmax.f32 %v1566, %v2045
  %v2095 = vmax.f32 %v1567, %v2046
  %v2096 = vmax.f32 %v1568, %v2047
  %v2097 = vmax.f32 %v1569, %v2048
  %v2098 = vmax.f32 %v1570, %v2049
  %v2099 = vmax.f32 %v1043, %v2050
  %v2100 = vmax.f32 %v1044, %v2051
  %v2101 = vmax.f32 %v1045, %v2052
  %v2102 = vmax.f32 %v1046, %v2053
  %v2103 = vmax.f32 %v1047, %v2054
  %v2104 = vmax.f32 %v1048, %v2055
  %v2105 = vmax.f32 %v1049, %v2056
  %v2106 = vmax.f32 %v1050, %v2057
  %v2107 = vmax.f32 %v1051, %v2058
  %v2108 = vmax.f32 %v1052, %v2059
  %v2109 = vmax.f32 %v1053, %v2060
  %v2110 = vmax.f32 %v1054, %v2061
  %v2111 = vmax.f32 %v1055, %v2062
  %v2112 = vmax.f32 %v1056, %v2063
  %v2113 = vmax.f32 %v1057, %v2064
  %v2114 = vmax.f32 %v1058, %v2065
  %v2115 = vmax.f32 %v1059, %v2066
  %v2116 = vmax.f32 %v1060, %v2067
  %v2117 = vmax.f32 %v1061, %v2068
  %v2118 = vmax.f32 %v1062, %v2069
  %v2119 = vmax.f32 %v1063, %v2070
  %v2120 = vmax.f32 %v1064, %v2071
  %v2121 = vmax.f32 %v1065, %v2072
  %v2122 = vmax.f32 %v1066, %v2073
  %v2123 = vmax.f32 %v1067, %v2074
  %v2124 = vmax.f32 %v1068, %v2075
  %v2125 = vmax.f32 %v1069, %v2076
  %v2126 = vmax.f32 %v1070, %v2077
  %v2127 = vmax.f32 %v1071, %v2078
  %v2128 = vmax.f32 %v1072, %v2079
  %v2129 = vmax.f32 %v1073, %v2080
  %v2130 = vmax.f32 %v1074, %v2081
  %v2131 = vmax.f32 %v1075, %v2082
  %v2132 = vmax.f32 %v1076, %v2083
  %v2133 = vmax.f32 %v1077, %v2084
  %v2134 = vmax.f32 %v1078, %v2085
  %v2135 = vmax.f32 %v1079, %v2086
  %v2136 = vmax.f32 %v1080, %v2087
  %v2137 = vmax.f32 %v1081, %v2088
  %v2138 = vmax.f32 %v1082, %v2089
  %v2139 = vmax.f32 %v1083, %v2090
  %v2140 = vmax.f32 %v1084, %v2091
  %v2141 = vmax.f32 %v1085, %v2092
  %v2142 = vmax.f32 %v1086, %v2093
  %v2143 = vmax.f32 %v1087, %v2094
  %v2144 = vmax.f32 %v1088, %v2095
  %v2145 = vmax.f32 %v1089, %v2096
  %v2146 = vmax.f32 %v1090, %v2097
  %v2147 = vmax.f32 %v1091, %v2098
  %2148 = vst [vmem:[%s3] sm:$0xff] %v2099
  %2149 = vst [vmem:[%s3 + $0x8] sm:$0xff] %v2100
  %2150 = vst [vmem:[%s3 + $0x10] sm:$0xff] %v2101
  %2151 = vst [vmem:[%s3 + $0x18] sm:$0xff] %v2102
  %2152 = vst [vmem:[%s3 + $0x20] sm:$0xff] %v2103
  %2153 = vst [vmem:[%s3 + $0x28] sm:$0xff] %v2104
  %2154 = vst [vmem:[%s3 + $0x30] sm:$0xff] %v2105
  %2155 = vst [vmem:[%s3 + $0x38] sm:$0xff] %v2106
  %2156 = vst [vmem:[%s3 + $0x40] sm:$0xff] %v2107
  %2157 = vst [vmem:[%s3 + $0x48] sm:$0xff] %v2108
  %2158 = vst [vmem:[%s3 + $0x50] sm:$0xff] %v2109
  %2159 = vst [vmem:[%s3 + $0x58] sm:$0xff] %v2110
  %2160 = vst [vmem:[%s3 + $0x60] sm:$0xff] %v2111
  %2161 = vst [vmem:[%s3 + $0x68] sm:$0xff] %v2112
  %2162 = vst [vmem:[%s3 + $0x70] sm:$0xff] %v2113
  %2163 = vst [vmem:[%s3 + $0x78] sm:$0xff] %v2114
  %2164 = vst [vmem:[%s3 + $0x80] sm:$0xff] %v2115
  %2165 = vst [vmem:[%s3 + $0x88] sm:$0xff] %v2116
  %2166 = vst [vmem:[%s3 + $0x90] sm:$0xff] %v2117
  %2167 = vst [vmem:[%s3 + $0x98] sm:$0xff] %v2118
  %2168 = vst [vmem:[%s3 + $0xa0] sm:$0xff] %v2119
  %2169 = vst [vmem:[%s3 + $0xa8] sm:$0xff] %v2120
  %2170 = vst [vmem:[%s3 + $0xb0] sm:$0xff] %v2121
  %2171 = vst [vmem:[%s3 + $0xb8] sm:$0xff] %v2122
  %2172 = vst [vmem:[%s3 + $0xc0] sm:$0xff] %v2123
  %2173 = vst [vmem:[%s3 + $0xc8] sm:$0xff] %v2124
  %2174 = vst [vmem:[%s3 + $0xd0] sm:$0xff] %v2125
  %2175 = vst [vmem:[%s3 + $0xd8] sm:$0xff] %v2126
  %2176 = vst [vmem:[%s3 + $0xe0] sm:$0xff] %v2127
  %2177 = vst [vmem:[%s3 + $0xe8] sm:$0xff] %v2128
  %2178 = vst [vmem:[%s3 + $0xf0] sm:$0xff] %v2129
  %2179 = vst [vmem:[%s3 + $0xf8] sm:$0xff] %v2130
  %2180 = vst [vmem:[%s3 + $0x100] sm:$0xff] %v2131
  %2181 = vst [vmem:[%s3 + $0x108] sm:$0xff] %v2132
  %2182 = vst [vmem:[%s3 + $0x110] sm:$0xff] %v2133
  %2183 = vst [vmem:[%s3 + $0x118] sm:$0xff] %v2134
  %2184 = vst [vmem:[%s3 + $0x120] sm:$0xff] %v2135
  %2185 = vst [vmem:[%s3 + $0x128] sm:$0xff] %v2136
  %2186 = vst [vmem:[%s3 + $0x130] sm:$0xff] %v2137
  %2187 = vst [vmem:[%s3 + $0x138] sm:$0xff] %v2138
  %2188 = vst [vmem:[%s3 + $0x140] sm:$0xff] %v2139
  %2189 = vst [vmem:[%s3 + $0x148] sm:$0xff] %v2140
  %2190 = vst [vmem:[%s3 + $0x150] sm:$0xff] %v2141
  %2191 = vst [vmem:[%s3 + $0x158] sm:$0xff] %v2142
  %2192 = vst [vmem:[%s3 + $0x160] sm:$0xff] %v2143
  %2193 = vst [vmem:[%s3 + $0x168] sm:$0xff] %v2144
  %2194 = vst [vmem:[%s3 + $0x170] sm:$0xff] %v2145
  %2195 = vst [vmem:[%s3 + $0x178] sm:$0xff] %v2146
  %2196 = vst [vmem:[%s3 + $0x180] sm:$0xff] %v2147
  // Predicated region
  $region14: #{lenet5_forward.3} parent=0 // pred_check
    _
  $region15: #{lenet5_forward.3} parent=0 // pred_check_branch
    %2198 = sbr.rel (0) target = $region17
  $region16: #{lenet5_forward.3} parent=0 // pred_region
    _
  $region17: #{lenet5_forward.3} parent=0 // pred_fallthru
    _
  // Predicated region
  $region18: #{lenet5_forward.3} parent=0 // pred_check
    _
  $region19: #{lenet5_forward.3} parent=0 // pred_check_branch
    %2200 = sbr.rel (0) target = $region21
  $region20: #{lenet5_forward.3} parent=0 // pred_region
    _
  $region21: #{lenet5_forward.3} parent=0 // pred_fallthru
    _

// kernel: lenet5_forward.4
$region0: #{lenet5_forward.4}
  #allocation0 [shape = 'u32[]', space=smem, size = 0x4, offset = 0x4, fixed_abs, tag = 'smem constant byte address 0x4 - core index']
  #allocation1 [shape = 'u32[144,128]{1,0:T(1,128)}', space=vmem, size = 0x12000, scoped, tag = 'internal scratch']
  %s0 = inlined_call_operand.vmem [shape: bf16[4,50,256], index: 0, kind: input, shape index: {}]
  %s1 = inlined_call_operand.vmem [shape: bf16[256,128], index: 1, kind: input, shape index: {}]
  %s2 = inlined_call_operand.vmem [shape: f32[1,128], index: 2, kind: input, shape index: {}]
  %s3 = inlined_call_operand.vmem [shape: f32[50,128], index: 3, kind: output, shape index: {}]
  %s4 = sld [smem:[#allocation0]]
  $region22: #{lenet5_forward.4} parent=0
    _
  %s6 = ssub.s32 1, %s4
  %s7 = scalar_select 0, %s6, %s4
  // Predicated region
  $region2: #{lenet5_forward.4} parent=0 // pred_check
    _
  $region3: #{lenet5_forward.4} parent=0 // pred_check_branch
    %9 = sbr.rel (0) target = $region5
  $region4: #{lenet5_forward.4} parent=0 // pred_region
    _
  $region5: #{lenet5_forward.4} parent=0 // pred_fallthru
    _
  // Predicated region
  $region6: #{lenet5_forward.4} parent=0 // pred_check
    _
  $region7: #{lenet5_forward.4} parent=0 // pred_check_branch
    %11 = sbr.rel (0) target = $region9
  $region8: #{lenet5_forward.4} parent=0 // pred_region
    _
  $region9: #{lenet5_forward.4} parent=0 // pred_fallthru
    _
  // Predicated region
  $region10: #{lenet5_forward.4} parent=0 // pred_check
    _
  $region11: #{lenet5_forward.4} parent=0 // pred_check_branch
    %13 = sbr.rel (0) target = $region13
  $region12: #{lenet5_forward.4} parent=0 // pred_region
    _
  $region13: #{lenet5_forward.4} parent=0 // pred_fallthru
    _
  %v15 = vld [vmem:[%s1] sm:$0xf]
  %v16 = vld [vmem:[%s1 + $0x4] sm:$0xf]
  %v17 = vld [vmem:[%s1 + $0x8] sm:$0xf]
  %v18 = vld [vmem:[%s1 + $0xc] sm:$0xf]
  %v19 = vld [vmem:[%s1 + $0x10] sm:$0xf]
  %v20 = vld [vmem:[%s1 + $0x14] sm:$0xf]
  %v21 = vld [vmem:[%s1 + $0x18] sm:$0xf]
  %v22 = vld [vmem:[%s1 + $0x1c] sm:$0xf]
  %v23 = vld [vmem:[%s1 + $0x20] sm:$0xf]
  %v24 = vld [vmem:[%s1 + $0x24] sm:$0xf]
  %v25 = vld [vmem:[%s1 + $0x28] sm:$0xf]
  %v26 = vld [vmem:[%s1 + $0x2c] sm:$0xf]
  %v27 = vld [vmem:[%s1 + $0x30] sm:$0xf]
  %v28 = vld [vmem:[%s1 + $0x34] sm:$0xf]
  %v29 = vld [vmem:[%s1 + $0x38] sm:$0xf]
  %v30 = vld [vmem:[%s1 + $0x3c] sm:$0xf]
  %v31 = vld [vmem:[%s1 + $0x40] sm:$0xf]
  %v32 = vld [vmem:[%s1 + $0x44] sm:$0xf]
  %v33 = vld [vmem:[%s1 + $0x48] sm:$0xf]
  %v34 = vld [vmem:[%s1 + $0x4c] sm:$0xf]
  %v35 = vld [vmem:[%s1 + $0x50] sm:$0xf]
  %v36 = vld [vmem:[%s1 + $0x54] sm:$0xf]
  %v37 = vld [vmem:[%s1 + $0x58] sm:$0xf]
  %v38 = vld [vmem:[%s1 + $0x5c] sm:$0xf]
  %v39 = vld [vmem:[%s1 + $0x60] sm:$0xf]
  %v40 = vld [vmem:[%s1 + $0x64] sm:$0xf]
  %v41 = vld [vmem:[%s1 + $0x68] sm:$0xf]
  %v42 = vld [vmem:[%s1 + $0x6c] sm:$0xf]
  %v43 = vld [vmem:[%s1 + $0x70] sm:$0xf]
  %v44 = vld [vmem:[%s1 + $0x74] sm:$0xf]
  %v45 = vld [vmem:[%s1 + $0x78] sm:$0xf]
  %v46 = vld [vmem:[%s1 + $0x7c] sm:$0xf]
  %v47 = vld [vmem:[%s2] sm:$0x1]
  %v48 = vld [vmem:[%s0] sm:$0xff]
  %v49 = vld [vmem:[%s0 + $0x8] sm:$0xff]
  %v50 = vld [vmem:[%s0 + $0x10] sm:$0xff]
  %v51 = vld [vmem:[%s0 + $0x18] sm:$0xff]
  %v52 = vld [vmem:[%s0 + $0x20] sm:$0xff]
  %v53 = vld [vmem:[%s0 + $0x28] sm:$0xff]
  %v54 = vld [vmem:[%s0 + $0x30] sm:$0x11]
  %v56 = vlaneseq
  %v57 = vshrl.u32 %v56, 7
  %v58 = vsub.s32 0, %v57
  %v59 = vrot.slane %v47, %v58
  %v68 = vunpack.c.l.b16 %v48
  %v69 = vunpack.c.h.b16 %v48
  %v70 = vunpack.c.l.b16 %v49
  %v71 = vunpack.c.h.b16 %v49
  %v72 = vunpack.c.l.b16 %v50
  %v73 = vunpack.c.h.b16 %v50
  %v74 = vunpack.c.l.b16 %v51
  %v75 = vunpack.c.h.b16 %v51
  %v76 = vunpack.c.l.b16 %v52
  %v77 = vunpack.c.h.b16 %v52
  %v78 = vunpack.c.l.b16 %v53
  %v79 = vunpack.c.h.b16 %v53
  %v80 = vunpack.c.l.b16 %v54
  %v81 = vunpack.c.h.b16 %v54
  %v82 = vpack.c.b16 %v70, %v68
  %v83 = vpack.c.b16 %v71, %v69
  %v84 = vpack.c.b16 %v74, %v72
  %v85 = vpack.c.b16 %v75, %v73
  %v86 = vpack.c.b16 %v78, %v76
  %v87 = vpack.c.b16 %v79, %v77
  %v88 = vpack.c.b16 %v80, %v80
  %v89 = vpack.c.b16 %v81, %v81
  %v130 = vunpack.c.l.b16 %v15
  %v131 = vunpack.c.l.b16 %v16
  %v132 = vunpack.c.l.b16 %v17
  %v133 = vunpack.c.l.b16 %v18
  %v134 = vunpack.c.l.b16 %v19
  %v135 = vunpack.c.l.b16 %v20
  %v136 = vunpack.c.l.b16 %v21
  %v137 = vunpack.c.l.b16 %v22
  %v138 = vunpack.c.l.b16 %v23
  %v139 = vunpack.c.l.b16 %v24
  %v140 = vunpack.c.l.b16 %v25
  %v141 = vunpack.c.l.b16 %v26
  %v142 = vunpack.c.l.b16 %v27
  %v143 = vunpack.c.l.b16 %v28
  %v144 = vunpack.c.l.b16 %v29
  %v145 = vunpack.c.l.b16 %v30
  %v146 = vunpack.c.l.b16 %v31
  %v147 = vunpack.c.l.b16 %v32
  %v148 = vunpack.c.l.b16 %v33
  %v149 = vunpack.c.l.b16 %v34
  %v150 = vunpack.c.l.b16 %v35
  %v151 = vunpack.c.l.b16 %v36
  %v152 = vunpack.c.l.b16 %v37
  %v153 = vunpack.c.l.b16 %v38
  %v154 = vunpack.c.l.b16 %v39
  %v155 = vunpack.c.l.b16 %v40
  %v156 = vunpack.c.l.b16 %v41
  %v157 = vunpack.c.l.b16 %v42
  %v158 = vunpack.c.l.b16 %v43
  %v159 = vunpack.c.l.b16 %v44
  %v160 = vunpack.c.l.b16 %v45
  %v161 = vunpack.c.l.b16 %v46
  %v162 = vpack.c.b16 %v131, %v130
  %v163 = vpack.c.b16 %v133, %v132
  %v164 = vpack.c.b16 %v135, %v134
  %v165 = vpack.c.b16 %v137, %v136
  %v166 = vpack.c.b16 %v139, %v138
  %v167 = vpack.c.b16 %v141, %v140
  %v168 = vpack.c.b16 %v143, %v142
  %v169 = vpack.c.b16 %v145, %v144
  %v170 = vpack.c.b16 %v147, %v146
  %v171 = vpack.c.b16 %v149, %v148
  %v172 = vpack.c.b16 %v151, %v150
  %v173 = vpack.c.b16 %v153, %v152
  %v174 = vpack.c.b16 %v155, %v154
  %v175 = vpack.c.b16 %v157, %v156
  %v176 = vpack.c.b16 %v159, %v158
  %v177 = vpack.c.b16 %v161, %v160
  %194 = vmatprep.subr.bf16.mxu0 0
  %195 = vmatpush1.bf16.msra.mxu0 %v162
  %196 = vmatprep.subr.bf16.mxu0 0
  %197 = vmatpush1.bf16.msra.mxu0 %v163
  %198 = vmatprep.subr.bf16.mxu0 0
  %199 = vmatpush1.bf16.msra.mxu0 %v164
  %200 = vmatprep.subr.bf16.mxu0 0
  %201 = vmatpush1.bf16.msra.mxu0 %v165
  %202 = vmatprep.subr.bf16.mxu0 0
  %203 = vmatpush1.bf16.msra.mxu0 %v166
  %204 = vmatprep.subr.bf16.mxu0 0
  %205 = vmatpush1.bf16.msra.mxu0 %v167
  %206 = vmatprep.subr.bf16.mxu0 0
  %207 = vmatpush1.bf16.msra.mxu0 %v168
  %208 = vmatprep.subr.bf16.mxu0 0
  %209 = vmatpush1.bf16.msra.mxu0 %v169
  %210 = vmatprep.subr.bf16.mxu0 0
  %211 = vmatpush1.bf16.msra.mxu0 %v170
  %212 = vmatprep.subr.bf16.mxu0 0
  %213 = vmatpush1.bf16.msra.mxu0 %v171
  %214 = vmatprep.subr.bf16.mxu0 0
  %215 = vmatpush1.bf16.msra.mxu0 %v172
  %216 = vmatprep.subr.bf16.mxu0 0
  %217 = vmatpush1.bf16.msra.mxu0 %v173
  %218 = vmatprep.subr.bf16.mxu0 0
  %219 = vmatpush1.bf16.msra.mxu0 %v174
  %220 = vmatprep.subr.bf16.mxu0 0
  %221 = vmatpush1.bf16.msra.mxu0 %v175
  %222 = vmatprep.subr.bf16.mxu0 0
  %223 = vmatpush1.bf16.msra.mxu0 %v176
  %224 = vmatprep.subr.bf16.mxu0 0
  %225 = vmatpush1.bf16.msra.mxu0 %v177
  %226 = vmatprep.mubr.bf16.mxu0 %v83
  %227 = vmatmul.mubr.bf16.gmra.mrb[0].mxu0 %v82
  %v228 = vpop.f32.mrb[0].mxu0
  %v229 = vadd.f32 %v59, %v228
  %v230 = vpop.f32.mrb[0].mxu0
  %v231 = vpop.f32.mrb[0].mxu0
  %v232 = vadd.f32 %v59, %v231
  %v233 = vpop.f32.mrb[0].mxu0
  %234 = vmatprep.mubr.bf16.mxu0 %v85
  %235 = vmatmul.mubr.bf16.gmra.mrb[0].mxu0 %v84
  %v236 = vpop.f32.mrb[0].mxu0
  %v237 = vadd.f32 %v59, %v236
  %v238 = vpop.f32.mrb[0].mxu0
  %v239 = vpop.f32.mrb[0].mxu0
  %v240 = vadd.f32 %v59, %v239
  %v241 = vpop.f32.mrb[0].mxu0
  %242 = vmatprep.mubr.bf16.mxu0 %v87
  %243 = vmatmul.mubr.bf16.gmra.mrb[0].mxu0 %v86
  %v244 = vpop.f32.mrb[0].mxu0
  %v245 = vadd.f32 %v59, %v244
  %v246 = vpop.f32.mrb[0].mxu0
  %v247 = vpop.f32.mrb[0].mxu0
  %v248 = vadd.f32 %v59, %v247
  %v249 = vpop.f32.mrb[0].mxu0
  %250 = vmatprep.mubr.bf16.mxu0 %v89
  %251 = vmatmul.mubr.bf16.gmra.mrb[0].mxu0 %v88
  %v252 = vpop.f32.mrb[0].mxu0
  %v253 = vadd.f32 %v59, %v252
  %v254 = vpop.f32.mrb[0].mxu0
  %v255 = vpop.f32.mrb[0].mxu0
  %v256 = vpop.f32.mrb[0].mxu0
  %257 = vdwg.mxu0
  %v258 = vmax.f32 %v229, 0.0
  %v259 = vmax.f32 %v232, 0.0
  %v260 = vmax.f32 %v237, 0.0
  %v261 = vmax.f32 %v240, 0.0
  %v262 = vmax.f32 %v245, 0.0
  %v263 = vmax.f32 %v248, 0.0
  %v264 = vmax.f32 %v253, 0.0
  %s265 = scalar_lea.vmem %s0, 56
  %v266 = vld [vmem:[%s265] sm:$0xff]
  %v267 = vld [vmem:[%s265 + $0x8] sm:$0xff]
  %v268 = vld [vmem:[%s265 + $0x10] sm:$0xff]
  %v269 = vld [vmem:[%s265 + $0x18] sm:$0xff]
  %v270 = vld [vmem:[%s265 + $0x20] sm:$0xff]
  %v271 = vld [vmem:[%s265 + $0x28] sm:$0xff]
  %v272 = vld [vmem:[%s265 + $0x30] sm:$0x11]
  %v280 = vunpack.c.l.b16 %v266
  %v281 = vunpack.c.h.b16 %v266
  %v282 = vunpack.c.l.b16 %v267
  %v283 = vunpack.c.h.b16 %v267
  %v284 = vunpack.c.l.b16 %v268
  %v285 = vunpack.c.h.b16 %v268
  %v286 = vunpack.c.l.b16 %v269
  %v287 = vunpack.c.h.b16 %v269
  %v288 = vunpack.c.l.b16 %v270
  %v289 = vunpack.c.h.b16 %v270
  %v290 = vunpack.c.l.b16 %v271
  %v291 = vunpack.c.h.b16 %v271
  %v292 = vunpack.c.l.b16 %v272
  %v293 = vunpack.c.h.b16 %v272
  %v294 = vpack.c.b16 %v282, %v280
  %v295 = vpack.c.b16 %v283, %v281
  %v296 = vpack.c.b16 %v286, %v284
  %v297 = vpack.c.b16 %v287, %v285
  %v298 = vpack.c.b16 %v290, %v288
  %v299 = vpack.c.b16 %v291, %v289
  %v300 = vpack.c.b16 %v292, %v292
  %v301 = vpack.c.b16 %v293, %v293
  %310 = vmatprep.subr.bf16.mxu0 0
  %311 = vmatpush1.bf16.msra.mxu0 %v162
  %312 = vmatprep.subr.bf16.mxu0 0
  %313 = vmatpush1.bf16.msra.mxu0 %v163
  %314 = vmatprep.subr.bf16.mxu0 0
  %315 = vmatpush1.bf16.msra.mxu0 %v164
  %316 = vmatprep.subr.bf16.mxu0 0
  %317 = vmatpush1.bf16.msra.mxu0 %v165
  %318 = vmatprep.subr.bf16.mxu0 0
  %319 = vmatpush1.bf16.msra.mxu0 %v166
  %320 = vmatprep.subr.bf16.mxu0 0
  %321 = vmatpush1.bf16.msra.mxu0 %v167
  %322 = vmatprep.subr.bf16.mxu0 0
  %323 = vmatpush1.bf16.msra.mxu0 %v168
  %324 = vmatprep.subr.bf16.mxu0 0
  %325 = vmatpush1.bf16.msra.mxu0 %v169
  %326 = vmatprep.subr.bf16.mxu0 0
  %327 = vmatpush1.bf16.msra.mxu0 %v170
  %328 = vmatprep.subr.bf16.mxu0 0
  %329 = vmatpush1.bf16.msra.mxu0 %v171
  %330 = vmatprep.subr.bf16.mxu0 0
  %331 = vmatpush1.bf16.msra.mxu0 %v172
  %332 = vmatprep.subr.bf16.mxu0 0
  %333 = vmatpush1.bf16.msra.mxu0 %v173
  %334 = vmatprep.subr.bf16.mxu0 0
  %335 = vmatpush1.bf16.msra.mxu0 %v174
  %336 = vmatprep.subr.bf16.mxu0 0
  %337 = vmatpush1.bf16.msra.mxu0 %v175
  %338 = vmatprep.subr.bf16.mxu0 0
  %339 = vmatpush1.bf16.msra.mxu0 %v176
  %340 = vmatprep.subr.bf16.mxu0 0
  %341 = vmatpush1.bf16.msra.mxu0 %v177
  %342 = vmatprep.mubr.bf16.mxu0 %v295
  %343 = vmatmul.mubr.bf16.gmra.mrb[0].mxu0 %v294
  %v344 = vpop.f32.mrb[0].mxu0
  %v345 = vadd.f32 %v59, %v344
  %v346 = vpop.f32.mrb[0].mxu0
  %v347 = vpop.f32.mrb[0].mxu0
  %v348 = vadd.f32 %v59, %v347
  %v349 = vpop.f32.mrb[0].mxu0
  %350 = vmatprep.mubr.bf16.mxu0 %v297
  %351 = vmatmul.mubr.bf16.gmra.mrb[0].mxu0 %v296
  %v352 = vpop.f32.mrb[0].mxu0
  %v353 = vadd.f32 %v59, %v352
  %v354 = vpop.f32.mrb[0].mxu0
  %v355 = vpop.f32.mrb[0].mxu0
  %v356 = vadd.f32 %v59, %v355
  %v357 = vpop.f32.mrb[0].mxu0
  %358 = vmatprep.mubr.bf16.mxu0 %v299
  %359 = vmatmul.mubr.bf16.gmra.mrb[0].mxu0 %v298
  %v360 = vpop.f32.mrb[0].mxu0
  %v361 = vadd.f32 %v59, %v360
  %v362 = vpop.f32.mrb[0].mxu0
  %v363 = vpop.f32.mrb[0].mxu0
  %v364 = vadd.f32 %v59, %v363
  %v365 = vpop.f32.mrb[0].mxu0
  %366 = vmatprep.mubr.bf16.mxu0 %v301
  %367 = vmatmul.mubr.bf16.gmra.mrb[0].mxu0 %v300
  %v368 = vpop.f32.mrb[0].mxu0
  %v369 = vadd.f32 %v59, %v368
  %v370 = vpop.f32.mrb[0].mxu0
  %v371 = vpop.f32.mrb[0].mxu0
  %v372 = vpop.f32.mrb[0].mxu0
  %373 = vdwg.mxu0
  %v374 = vmax.f32 %v345, 0.0
  %v375 = vmax.f32 %v348, 0.0
  %v376 = vmax.f32 %v353, 0.0
  %v377 = vmax.f32 %v356, 0.0
  %v378 = vmax.f32 %v361, 0.0
  %v379 = vmax.f32 %v364, 0.0
  %v380 = vmax.f32 %v369, 0.0
  %v381 = vmax.f32 %v258, %v374
  %v382 = vmax.f32 %v259, %v375
  %v383 = vmax.f32 %v260, %v376
  %v384 = vmax.f32 %v261, %v377
  %v385 = vmax.f32 %v262, %v378
  %v386 = vmax.f32 %v263, %v379
  %v387 = vmax.f32 %v264, %v380
  %s388 = scalar_lea.vmem %s0, 112
  %v389 = vld [vmem:[%s388] sm:$0xff]
  %v390 = vld [vmem:[%s388 + $0x8] sm:$0xff]
  %v391 = vld [vmem:[%s388 + $0x10] sm:$0xff]
  %v392 = vld [vmem:[%s388 + $0x18] sm:$0xff]
  %v393 = vld [vmem:[%s388 + $0x20] sm:$0xff]
  %v394 = vld [vmem:[%s388 + $0x28] sm:$0xff]
  %v395 = vld [vmem:[%s388 + $0x30] sm:$0x11]
  %v403 = vunpack.c.l.b16 %v389
  %v404 = vunpack.c.h.b16 %v389
  %v405 = vunpack.c.l.b16 %v390
  %v406 = vunpack.c.h.b16 %v390
  %v407 = vunpack.c.l.b16 %v391
  %v408 = vunpack.c.h.b16 %v391
  %v409 = vunpack.c.l.b16 %v392
  %v410 = vunpack.c.h.b16 %v392
  %v411 = vunpack.c.l.b16 %v393
  %v412 = vunpack.c.h.b16 %v393
  %v413 = vunpack.c.l.b16 %v394
  %v414 = vunpack.c.h.b16 %v394
  %v415 = vunpack.c.l.b16 %v395
  %v416 = vunpack.c.h.b16 %v395
  %v417 = vpack.c.b16 %v405, %v403
  %v418 = vpack.c.b16 %v406, %v404
  %v419 = vpack.c.b16 %v409, %v407
  %v420 = vpack.c.b16 %v410, %v408
  %v421 = vpack.c.b16 %v413, %v411
  %v422 = vpack.c.b16 %v414, %v412
  %v423 = vpack.c.b16 %v415, %v415
  %v424 = vpack.c.b16 %v416, %v416
  %433 = vmatprep.subr.bf16.mxu0 0
  %434 = vmatpush1.bf16.msra.mxu0 %v162
  %435 = vmatprep.subr.bf16.mxu0 0
  %436 = vmatpush1.bf16.msra.mxu0 %v163
  %437 = vmatprep.subr.bf16.mxu0 0
  %438 = vmatpush1.bf16.msra.mxu0 %v164
  %439 = vmatprep.subr.bf16.mxu0 0
  %440 = vmatpush1.bf16.msra.mxu0 %v165
  %441 = vmatprep.subr.bf16.mxu0 0
  %442 = vmatpush1.bf16.msra.mxu0 %v166
  %443 = vmatprep.subr.bf16.mxu0 0
  %444 = vmatpush1.bf16.msra.mxu0 %v167
  %445 = vmatprep.subr.bf16.mxu0 0
  %446 = vmatpush1.bf16.msra.mxu0 %v168
  %447 = vmatprep.subr.bf16.mxu0 0
  %448 = vmatpush1.bf16.msra.mxu0 %v169
  %449 = vmatprep.subr.bf16.mxu0 0
  %450 = vmatpush1.bf16.msra.mxu0 %v170
  %451 = vmatprep.subr.bf16.mxu0 0
  %452 = vmatpush1.bf16.msra.mxu0 %v171
  %453 = vmatprep.subr.bf16.mxu0 0
  %454 = vmatpush1.bf16.msra.mxu0 %v172
  %455 = vmatprep.subr.bf16.mxu0 0
  %456 = vmatpush1.bf16.msra.mxu0 %v173
  %457 = vmatprep.subr.bf16.mxu0 0
  %458 = vmatpush1.bf16.msra.mxu0 %v174
  %459 = vmatprep.subr.bf16.mxu0 0
  %460 = vmatpush1.bf16.msra.mxu0 %v175
  %461 = vmatprep.subr.bf16.mxu0 0
  %462 = vmatpush1.bf16.msra.mxu0 %v176
  %463 = vmatprep.subr.bf16.mxu0 0
  %464 = vmatpush1.bf16.msra.mxu0 %v177
  %465 = vmatprep.mubr.bf16.mxu0 %v418
  %466 = vmatmul.mubr.bf16.gmra.mrb[0].mxu0 %v417
  %v467 = vpop.f32.mrb[0].mxu0
  %v468 = vadd.f32 %v59, %v467
  %v469 = vpop.f32.mrb[0].mxu0
  %v470 = vpop.f32.mrb[0].mxu0
  %v471 = vadd.f32 %v59, %v470
  %v472 = vpop.f32.mrb[0].mxu0
  %473 = vmatprep.mubr.bf16.mxu0 %v420
  %474 = vmatmul.mubr.bf16.gmra.mrb[0].mxu0 %v419
  %v475 = vpop.f32.mrb[0].mxu0
  %v476 = vadd.f32 %v59, %v475
  %v477 = vpop.f32.mrb[0].mxu0
  %v478 = vpop.f32.mrb[0].mxu0
  %v479 = vadd.f32 %v59, %v478
  %v480 = vpop.f32.mrb[0].mxu0
  %481 = vmatprep.mubr.bf16.mxu0 %v422
  %482 = vmatmul.mubr.bf16.gmra.mrb[0].mxu0 %v421
  %v483 = vpop.f32.mrb[0].mxu0
  %v484 = vadd.f32 %v59, %v483
  %v485 = vpop.f32.mrb[0].mxu0
  %v486 = vpop.f32.mrb[0].mxu0
  %v487 = vadd.f32 %v59, %v486
  %v488 = vpop.f32.mrb[0].mxu0
  %489 = vmatprep.mubr.bf16.mxu0 %v424
  %490 = vmatmul.mubr.bf16.gmra.mrb[0].mxu0 %v423
  %v491 = vpop.f32.mrb[0].mxu0
  %v492 = vadd.f32 %v59, %v491
  %v493 = vpop.f32.mrb[0].mxu0
  %v494 = vpop.f32.mrb[0].mxu0
  %v495 = vpop.f32.mrb[0].mxu0
  %496 = vdwg.mxu0
  %v497 = vmax.f32 %v468, 0.0
  %v498 = vmax.f32 %v471, 0.0
  %v499 = vmax.f32 %v476, 0.0
  %v500 = vmax.f32 %v479, 0.0
  %v501 = vmax.f32 %v484, 0.0
  %v502 = vmax.f32 %v487, 0.0
  %v503 = vmax.f32 %v492, 0.0
  %s504 = scalar_lea.vmem %s0, 168
  %v505 = vld [vmem:[%s504] sm:$0xff]
  %v506 = vld [vmem:[%s504 + $0x8] sm:$0xff]
  %v507 = vld [vmem:[%s504 + $0x10] sm:$0xff]
  %v508 = vld [vmem:[%s504 + $0x18] sm:$0xff]
  %v509 = vld [vmem:[%s504 + $0x20] sm:$0xff]
  %v510 = vld [vmem:[%s504 + $0x28] sm:$0xff]
  %v511 = vld [vmem:[%s504 + $0x30] sm:$0x11]
  %v519 = vunpack.c.l.b16 %v505
  %v520 = vunpack.c.h.b16 %v505
  %v521 = vunpack.c.l.b16 %v506
  %v522 = vunpack.c.h.b16 %v506
  %v523 = vunpack.c.l.b16 %v507
  %v524 = vunpack.c.h.b16 %v507
  %v525 = vunpack.c.l.b16 %v508
  %v526 = vunpack.c.h.b16 %v508
  %v527 = vunpack.c.l.b16 %v509
  %v528 = vunpack.c.h.b16 %v509
  %v529 = vunpack.c.l.b16 %v510
  %v530 = vunpack.c.h.b16 %v510
  %v531 = vunpack.c.l.b16 %v511
  %v532 = vunpack.c.h.b16 %v511
  %v533 = vpack.c.b16 %v521, %v519
  %v534 = vpack.c.b16 %v522, %v520
  %v535 = vpack.c.b16 %v525, %v523
  %v536 = vpack.c.b16 %v526, %v524
  %v537 = vpack.c.b16 %v529, %v527
  %v538 = vpack.c.b16 %v530, %v528
  %v539 = vpack.c.b16 %v531, %v531
  %v540 = vpack.c.b16 %v532, %v532
  %549 = vmatprep.subr.bf16.mxu0 0
  %550 = vmatpush1.bf16.msra.mxu0 %v162
  %551 = vmatprep.subr.bf16.mxu0 0
  %552 = vmatpush1.bf16.msra.mxu0 %v163
  %553 = vmatprep.subr.bf16.mxu0 0
  %554 = vmatpush1.bf16.msra.mxu0 %v164
  %555 = vmatprep.subr.bf16.mxu0 0
  %556 = vmatpush1.bf16.msra.mxu0 %v165
  %557 = vmatprep.subr.bf16.mxu0 0
  %558 = vmatpush1.bf16.msra.mxu0 %v166
  %559 = vmatprep.subr.bf16.mxu0 0
  %560 = vmatpush1.bf16.msra.mxu0 %v167
  %561 = vmatprep.subr.bf16.mxu0 0
  %562 = vmatpush1.bf16.msra.mxu0 %v168
  %563 = vmatprep.subr.bf16.mxu0 0
  %564 = vmatpush1.bf16.msra.mxu0 %v169
  %565 = vmatprep.subr.bf16.mxu0 0
  %566 = vmatpush1.bf16.msra.mxu0 %v170
  %567 = vmatprep.subr.bf16.mxu0 0
  %568 = vmatpush1.bf16.msra.mxu0 %v171
  %569 = vmatprep.subr.bf16.mxu0 0
  %570 = vmatpush1.bf16.msra.mxu0 %v172
  %571 = vmatprep.subr.bf16.mxu0 0
  %572 = vmatpush1.bf16.msra.mxu0 %v173
  %573 = vmatprep.subr.bf16.mxu0 0
  %574 = vmatpush1.bf16.msra.mxu0 %v174
  %575 = vmatprep.subr.bf16.mxu0 0
  %576 = vmatpush1.bf16.msra.mxu0 %v175
  %577 = vmatprep.subr.bf16.mxu0 0
  %578 = vmatpush1.bf16.msra.mxu0 %v176
  %579 = vmatprep.subr.bf16.mxu0 0
  %580 = vmatpush1.bf16.msra.mxu0 %v177
  %581 = vmatprep.mubr.bf16.mxu0 %v534
  %582 = vmatmul.mubr.bf16.gmra.mrb[0].mxu0 %v533
  %v583 = vpop.f32.mrb[0].mxu0
  %v584 = vadd.f32 %v59, %v583
  %v585 = vpop.f32.mrb[0].mxu0
  %v586 = vpop.f32.mrb[0].mxu0
  %v587 = vadd.f32 %v59, %v586
  %v588 = vpop.f32.mrb[0].mxu0
  %589 = vmatprep.mubr.bf16.mxu0 %v536
  %590 = vmatmul.mubr.bf16.gmra.mrb[0].mxu0 %v535
  %v591 = vpop.f32.mrb[0].mxu0
  %v592 = vadd.f32 %v59, %v591
  %v593 = vpop.f32.mrb[0].mxu0
  %v594 = vpop.f32.mrb[0].mxu0
  %v595 = vadd.f32 %v59, %v594
  %v596 = vpop.f32.mrb[0].mxu0
  %597 = vmatprep.mubr.bf16.mxu0 %v538
  %598 = vmatmul.mubr.bf16.gmra.mrb[0].mxu0 %v537
  %v599 = vpop.f32.mrb[0].mxu0
  %v600 = vadd.f32 %v59, %v599
  %v601 = vpop.f32.mrb[0].mxu0
  %v602 = vpop.f32.mrb[0].mxu0
  %v603 = vadd.f32 %v59, %v602
  %v604 = vpop.f32.mrb[0].mxu0
  %605 = vmatprep.mubr.bf16.mxu0 %v540
  %606 = vmatmul.mubr.bf16.gmra.mrb[0].mxu0 %v539
  %v607 = vpop.f32.mrb[0].mxu0
  %v608 = vadd.f32 %v59, %v607
  %v609 = vpop.f32.mrb[0].mxu0
  %v610 = vpop.f32.mrb[0].mxu0
  %v611 = vpop.f32.mrb[0].mxu0
  %612 = vdwg.mxu0
  %v613 = vmax.f32 %v584, 0.0
  %v614 = vmax.f32 %v587, 0.0
  %v615 = vmax.f32 %v592, 0.0
  %v616 = vmax.f32 %v595, 0.0
  %v617 = vmax.f32 %v600, 0.0
  %v618 = vmax.f32 %v603, 0.0
  %v619 = vmax.f32 %v608, 0.0
  %v620 = vmax.f32 %v497, %v613
  %v621 = vmax.f32 %v498, %v614
  %v622 = vmax.f32 %v499, %v615
  %v623 = vmax.f32 %v500, %v616
  %v624 = vmax.f32 %v501, %v617
  %v625 = vmax.f32 %v502, %v618
  %v626 = vmax.f32 %v503, %v619
  %v627 = vmax.f32 %v381, %v620
  %v628 = vmax.f32 %v382, %v621
  %v629 = vmax.f32 %v383, %v622
  %v630 = vmax.f32 %v384, %v623
  %v631 = vmax.f32 %v385, %v624
  %v632 = vmax.f32 %v386, %v625
  %v633 = vmax.f32 %v387, %v626
  %634 = vst [vmem:[%s3] sm:$0xff] %v627
  %635 = vst [vmem:[%s3 + $0x8] sm:$0xff] %v628
  %636 = vst [vmem:[%s3 + $0x10] sm:$0xff] %v629
  %637 = vst [vmem:[%s3 + $0x18] sm:$0xff] %v630
  %638 = vst [vmem:[%s3 + $0x20] sm:$0xff] %v631
  %639 = vst [vmem:[%s3 + $0x28] sm:$0xff] %v632
  %640 = vst [vmem:[%s3 + $0x30] sm:$0x3] %v633
  // Predicated region
  $region14: #{lenet5_forward.4} parent=0 // pred_check
    _
  $region15: #{lenet5_forward.4} parent=0 // pred_check_branch
    %642 = sbr.rel (0) target = $region17
  $region16: #{lenet5_forward.4} parent=0 // pred_region
    _
  $region17: #{lenet5_forward.4} parent=0 // pred_fallthru
    _
  // Predicated region
  $region18: #{lenet5_forward.4} parent=0 // pred_check
    _
  $region19: #{lenet5_forward.4} parent=0 // pred_check_branch
    %644 = sbr.rel (0) target = $region21
  $region20: #{lenet5_forward.4} parent=0 // pred_region
    _
  $region21: #{lenet5_forward.4} parent=0 // pred_fallthru
    _

// kernel: lenet5_forward.5
$region0: #{lenet5_forward.5}
  #allocation0 [shape = 'u32[]', space=smem, size = 0x4, offset = 0x4, fixed_abs, tag = 'smem constant byte address 0x4 - core index']
  #allocation1 [shape = 'u32[144,128]{1,0:T(1,128)}', space=vmem, size = 0x12000, scoped, tag = 'internal scratch']
  %s0 = inlined_call_operand.vmem [shape: bf16[2,400], index: 0, kind: input, shape index: {}]
  %s1 = inlined_call_operand.vmem [shape: bf16[400,128], index: 1, kind: input, shape index: {}]
  %s2 = inlined_call_operand.vmem [shape: f32[1,128], index: 2, kind: input, shape index: {}]
  %s3 = inlined_call_operand.vmem [shape: bf16[128,128], index: 3, kind: input, shape index: {}]
  %s4 = inlined_call_operand.vmem [shape: f32[1,128], index: 4, kind: input, shape index: {}]
  %s5 = inlined_call_operand.vmem [shape: bf16[128,128], index: 5, kind: input, shape index: {}]
  %s6 = inlined_call_operand.vmem [shape: f32[1,128], index: 6, kind: input, shape index: {}]
  %s7 = inlined_call_operand.hbm [shape: f32[2,128], index: 7, kind: output, shape index: {}]
  %s8 = sld [smem:[#allocation0]]
  $region38: #{lenet5_forward.5} parent=0
    _
  %s10 = ssub.s32 1, %s8
  %s11 = scalar_select 0, %s10, %s8
  $region1: #{lenet5_forward.5} parent=0
    #allocation2 [shape = 'u8[1024]{0}', space=vmem, size = 0x400, scoped, tag = 'output window, operand 0, single buffered']
    #allocation3 [shape = 's32[1]{0}', space=sflag, size = 0x4, scoped, tag = 'scoped memory for lenet5_forward.5']
    %12 = vsyncpa [#allocation3], 0
    // Predicated region
    $region2: #{lenet5_forward.5} parent=1 // pred_check
      _
    $region3: #{lenet5_forward.5} parent=1 // pred_check_branch
      %14 = sbr.rel (0) target = $region5
    $region4: #{lenet5_forward.5} parent=1 // pred_region
      _
    $region5: #{lenet5_forward.5} parent=1 // pred_fallthru
      _
    // Predicated region
    $region6: #{lenet5_forward.5} parent=1 // pred_check
      _
    $region7: #{lenet5_forward.5} parent=1 // pred_check_branch
      %16 = sbr.rel (0) target = $region9
    $region8: #{lenet5_forward.5} parent=1 // pred_region
      _
    $region9: #{lenet5_forward.5} parent=1 // pred_fallthru
      _
    // Predicated region
    $region10: #{lenet5_forward.5} parent=1 // pred_check
      _
    $region11: #{lenet5_forward.5} parent=1 // pred_check_branch
      %18 = sbr.rel (0) target = $region13
    $region12: #{lenet5_forward.5} parent=1 // pred_region
      _
    $region13: #{lenet5_forward.5} parent=1 // pred_fallthru
      _
    // Predicated region
    $region14: #{lenet5_forward.5} parent=1 // pred_check
      _
    $region15: #{lenet5_forward.5} parent=1 // pred_check_branch
      %20 = sbr.rel (0) target = $region17
    $region16: #{lenet5_forward.5} parent=1 // pred_region
      _
    $region17: #{lenet5_forward.5} parent=1 // pred_fallthru
      _
    // Predicated region
    $region18: #{lenet5_forward.5} parent=1 // pred_check
      _
    $region19: #{lenet5_forward.5} parent=1 // pred_check_branch
      %22 = sbr.rel (0) target = $region21
    $region20: #{lenet5_forward.5} parent=1 // pred_region
      _
    $region21: #{lenet5_forward.5} parent=1 // pred_fallthru
      _
    // Predicated region
    $region22: #{lenet5_forward.5} parent=1 // pred_check
      _
    $region23: #{lenet5_forward.5} parent=1 // pred_check_branch
      %24 = sbr.rel (0) target = $region25
    $region24: #{lenet5_forward.5} parent=1 // pred_region
      _
    $region25: #{lenet5_forward.5} parent=1 // pred_fallthru
      _
    // Predicated region
    $region26: #{lenet5_forward.5} parent=1 // pred_check
      _
    $region27: #{lenet5_forward.5} parent=1 // pred_check_branch
      %26 = sbr.rel (0) target = $region29
    $region28: #{lenet5_forward.5} parent=1 // pred_region
      _
    $region29: #{lenet5_forward.5} parent=1 // pred_fallthru
      _
    %v28 = vld [vmem:[%s0] sm:$0xf]
    %v29 = vld [vmem:[%s1] sm:$0xf]
    %v30 = vld [vmem:[%s1 + $0x4] sm:$0xf]
    %v31 = vld [vmem:[%s1 + $0x8] sm:$0xf]
    %v32 = vld [vmem:[%s1 + $0xc] sm:$0xf]
    %v33 = vld [vmem:[%s1 + $0x10] sm:$0xf]
    %v34 = vld [vmem:[%s1 + $0x14] sm:$0xf]
    %v35 = vld [vmem:[%s1 + $0x18] sm:$0xf]
    %v36 = vld [vmem:[%s1 + $0x1c] sm:$0xf]
    %v37 = vld [vmem:[%s1 + $0x20] sm:$0xf]
    %v38 = vld [vmem:[%s1 + $0x24] sm:$0xf]
    %v39 = vld [vmem:[%s1 + $0x28] sm:$0xf]
    %v40 = vld [vmem:[%s1 + $0x2c] sm:$0xf]
    %v41 = vld [vmem:[%s1 + $0x30] sm:$0xf]
    %v42 = vld [vmem:[%s1 + $0x34] sm:$0xf]
    %v43 = vld [vmem:[%s1 + $0x38] sm:$0xf]
    %v44 = vld [vmem:[%s1 + $0x3c] sm:$0xf]
    %v45 = vld [vmem:[%s1 + $0x40] sm:$0xf]
    %v46 = vld [vmem:[%s1 + $0x44] sm:$0xf]
    %v47 = vld [vmem:[%s1 + $0x48] sm:$0xf]
    %v48 = vld [vmem:[%s1 + $0x4c] sm:$0xf]
    %v49 = vld [vmem:[%s1 + $0x50] sm:$0xf]
    %v50 = vld [vmem:[%s1 + $0x54] sm:$0xf]
    %v51 = vld [vmem:[%s1 + $0x58] sm:$0xf]
    %v52 = vld [vmem:[%s1 + $0x5c] sm:$0xf]
    %v53 = vld [vmem:[%s1 + $0x60] sm:$0xf]
    %v54 = vld [vmem:[%s1 + $0x64] sm:$0xf]
    %v55 = vld [vmem:[%s1 + $0x68] sm:$0xf]
    %v56 = vld [vmem:[%s1 + $0x6c] sm:$0xf]
    %v57 = vld [vmem:[%s1 + $0x70] sm:$0xf]
    %v58 = vld [vmem:[%s1 + $0x74] sm:$0xf]
    %v59 = vld [vmem:[%s1 + $0x78] sm:$0xf]
    %v60 = vld [vmem:[%s1 + $0x7c] sm:$0xf]
    %v61 = vld [vmem:[%s1 + $0x80] sm:$0xf]
    %v62 = vld [vmem:[%s1 + $0x84] sm:$0xf]
    %v63 = vld [vmem:[%s1 + $0x88] sm:$0xf]
    %v64 = vld [vmem:[%s1 + $0x8c] sm:$0xf]
    %v65 = vld [vmem:[%s1 + $0x90] sm:$0xf]
    %v66 = vld [vmem:[%s1 + $0x94] sm:$0xf]
    %v67 = vld [vmem:[%s1 + $0x98] sm:$0xf]
    %v68 = vld [vmem:[%s1 + $0x9c] sm:$0xf]
    %v69 = vld [vmem:[%s1 + $0xa0] sm:$0xf]
    %v70 = vld [vmem:[%s1 + $0xa4] sm:$0xf]
    %v71 = vld [vmem:[%s1 + $0xa8] sm:$0xf]
    %v72 = vld [vmem:[%s1 + $0xac] sm:$0xf]
    %v73 = vld [vmem:[%s1 + $0xb0] sm:$0xf]
    %v74 = vld [vmem:[%s1 + $0xb4] sm:$0xf]
    %v75 = vld [vmem:[%s1 + $0xb8] sm:$0xf]
    %v76 = vld [vmem:[%s1 + $0xbc] sm:$0xf]
    %v77 = vld [vmem:[%s1 + $0xc0] sm:$0xf]
    %v78 = vld [vmem:[%s1 + $0xc4] sm:$0xf]
    %v79 = vld [vmem:[%s2] sm:$0x1]
    %v81 = vlaneseq
    %v82 = vshrl.u32 %v81, 7
    %v83 = vsub.s32 0, %v82
    %v84 = vrot.slane %v79, %v83
    %v88 = vunpack.c.l.s4 1966171168
    %v89 = vunpack.c.0.s8 %v88
    %v90 = vlaneseq
    %v91 = vshrl.u32 %v90, 7
    %v92 = vsub.s32 %v89, %v91
    %v93 = vrot.slane %v28, %v92
    %v94 = vcombine.high %v93, %v93
    %v96 = vunpack.c.l.s4 1966171168
    %v97 = vunpack.c.0.s8 %v96
    %v98 = vlaneseq
    %v99 = vshrl.u32 %v98, 7
    %v100 = vsub.s32 %v97, %v99
    %v101 = vrot.slane %v93, %v100
    %v103 = vunpack.c.l.s4 1966171168
    %v104 = vunpack.c.0.s8 %v103
    %v105 = vlaneseq
    %v106 = vshrl.u32 %v105, 7
    %v107 = vsub.s32 %v104, %v106
    %v108 = vrot.slane %v94, %v107
    %v109 = vcombine.high %v101, %v101
    %v110 = vcombine.high %v108, %v108
    %v164 = vunpack.c.l.b16 %v29
    %v165 = vunpack.c.l.b16 %v30
    %v166 = vunpack.c.l.b16 %v31
    %v167 = vunpack.c.l.b16 %v32
    %v168 = vunpack.c.l.b16 %v33
    %v169 = vunpack.c.l.b16 %v34
    %v170 = vunpack.c.l.b16 %v35
    %v171 = vunpack.c.l.b16 %v36
    %v172 = vunpack.c.l.b16 %v37
    %v173 = vunpack.c.l.b16 %v38
    %v174 = vunpack.c.l.b16 %v39
    %v175 = vunpack.c.l.b16 %v40
    %v176 = vunpack.c.l.b16 %v41
    %v177 = vunpack.c.l.b16 %v42
    %v178 = vunpack.c.l.b16 %v43
    %v179 = vunpack.c.l.b16 %v44
    %v180 = vunpack.c.l.b16 %v45
    %v181 = vunpack.c.l.b16 %v46
    %v182 = vunpack.c.l.b16 %v47
    %v183 = vunpack.c.l.b16 %v48
    %v184 = vunpack.c.l.b16 %v49
    %v185 = vunpack.c.l.b16 %v50
    %v186 = vunpack.c.l.b16 %v51
    %v187 = vunpack.c.l.b16 %v52
    %v188 = vunpack.c.l.b16 %v53
    %v189 = vunpack.c.l.b16 %v54
    %v190 = vunpack.c.l.b16 %v55
    %v191 = vunpack.c.l.b16 %v56
    %v192 = vunpack.c.l.b16 %v57
    %v193 = vunpack.c.l.b16 %v58
    %v194 = vunpack.c.l.b16 %v59
    %v195 = vunpack.c.l.b16 %v60
    %v196 = vunpack.c.l.b16 %v61
    %v197 = vunpack.c.l.b16 %v62
    %v198 = vunpack.c.l.b16 %v63
    %v199 = vunpack.c.l.b16 %v64
    %v200 = vunpack.c.l.b16 %v65
    %v201 = vunpack.c.l.b16 %v66
    %v202 = vunpack.c.l.b16 %v67
    %v203 = vunpack.c.l.b16 %v68
    %v204 = vunpack.c.l.b16 %v69
    %v205 = vunpack.c.l.b16 %v70
    %v206 = vunpack.c.l.b16 %v71
    %v207 = vunpack.c.l.b16 %v72
    %v208 = vunpack.c.l.b16 %v73
    %v209 = vunpack.c.l.b16 %v74
    %v210 = vunpack.c.l.b16 %v75
    %v211 = vunpack.c.l.b16 %v76
    %v212 = vunpack.c.l.b16 %v77
    %v213 = vunpack.c.l.b16 %v78
    %v214 = vpack.c.b16 %v165, %v164
    %v215 = vpack.c.b16 %v167, %v166
    %v216 = vpack.c.b16 %v169, %v168
    %v217 = vpack.c.b16 %v171, %v170
    %v218 = vpack.c.b16 %v173, %v172
    %v219 = vpack.c.b16 %v175, %v174
    %v220 = vpack.c.b16 %v177, %v176
    %v221 = vpack.c.b16 %v179, %v178
    %v222 = vpack.c.b16 %v181, %v180
    %v223 = vpack.c.b16 %v183, %v182
    %v224 = vpack.c.b16 %v185, %v184
    %v225 = vpack.c.b16 %v187, %v186
    %v226 = vpack.c.b16 %v189, %v188
    %v227 = vpack.c.b16 %v191, %v190
    %v228 = vpack.c.b16 %v193, %v192
    %v229 = vpack.c.b16 %v195, %v194
    %v230 = vpack.c.b16 %v197, %v196
    %v231 = vpack.c.b16 %v199, %v198
    %v232 = vpack.c.b16 %v201, %v200
    %v233 = vpack.c.b16 %v203, %v202
    %v234 = vpack.c.b16 %v205, %v204
    %v235 = vpack.c.b16 %v207, %v206
    %v236 = vpack.c.b16 %v209, %v208
    %v237 = vpack.c.b16 %v211, %v210
    %v238 = vpack.c.b16 %v213, %v212
    %vm264 = vcmask 130048
    %v266 = vsel %vm264, %v110, 0
    %268 = vmatprep.subr.bf16.mxu0 0
    %269 = vmatpush1.bf16.msra.mxu0 %v214
    %270 = vmatprep.subr.bf16.mxu0 0
    %271 = vmatpush1.bf16.msra.mxu0 %v215
    %272 = vmatprep.subr.bf16.mxu0 0
    %273 = vmatpush1.bf16.msra.mxu0 %v216
    %274 = vmatprep.subr.bf16.mxu0 0
    %275 = vmatpush1.bf16.msra.mxu0 %v217
    %276 = vmatprep.subr.bf16.mxu0 0
    %277 = vmatpush1.bf16.msra.mxu0 %v218
    %278 = vmatprep.subr.bf16.mxu0 0
    %279 = vmatpush1.bf16.msra.mxu0 %v219
    %280 = vmatprep.subr.bf16.mxu0 0
    %281 = vmatpush1.bf16.msra.mxu0 %v220
    %282 = vmatprep.subr.bf16.mxu0 0
    %283 = vmatpush1.bf16.msra.mxu0 %v221
    %284 = vmatprep.subr.bf16.mxu0 0
    %285 = vmatpush1.bf16.msra.mxu0 %v222
    %286 = vmatprep.subr.bf16.mxu0 0
    %287 = vmatpush1.bf16.msra.mxu0 %v223
    %288 = vmatprep.subr.bf16.mxu0 0
    %289 = vmatpush1.bf16.msra.mxu0 %v224
    %290 = vmatprep.subr.bf16.mxu0 0
    %291 = vmatpush1.bf16.msra.mxu0 %v225
    %292 = vmatprep.subr.bf16.mxu0 0
    %293 = vmatpush1.bf16.msra.mxu0 %v226
    %294 = vmatprep.subr.bf16.mxu0 0
    %295 = vmatpush1.bf16.msra.mxu0 %v227
    %296 = vmatprep.subr.bf16.mxu0 0
    %297 = vmatpush1.bf16.msra.mxu0 %v228
    %298 = vmatprep.subr.bf16.mxu0 0
    %299 = vmatpush1.bf16.msra.mxu0 %v229
    %300 = vmatprep.mubr.bf16.mxu0 %v108
    %301 = vmatmul.mubr.bf16.gmra.mrb[0].mxu0 %v101
    %v302 = vpop.f32.mrb[0].mxu0
    %v303 = vadd.f32 %v84, %v302
    %v304 = vpop.f32.mrb[0].mxu0
    %v305 = vpop.f32.mrb[0].mxu0
    %v306 = vpop.f32.mrb[0].mxu0
    %307 = vdwg.mxu0
    %308 = vmatprep.subr.bf16.mxu0 0
    %309 = vmatpush1.bf16.msra.mxu0 %v230
    %310 = vmatprep.subr.bf16.mxu0 0
    %311 = vmatpush1.bf16.msra.mxu0 %v231
    %312 = vmatprep.subr.bf16.mxu0 0
    %313 = vmatpush1.bf16.msra.mxu0 %v232
    %314 = vmatprep.subr.bf16.mxu0 0
    %315 = vmatpush1.bf16.msra.mxu0 %v233
    %316 = vmatprep.subr.bf16.mxu0 0
    %317 = vmatpush1.bf16.msra.mxu0 %v234
    %318 = vmatprep.subr.bf16.mxu0 0
    %319 = vmatpush1.bf16.msra.mxu0 %v235
    %320 = vmatprep.subr.bf16.mxu0 0
    %321 = vmatpush1.bf16.msra.mxu0 %v236
    %322 = vmatprep.subr.bf16.mxu0 0
    %323 = vmatpush1.bf16.msra.mxu0 %v237
    %324 = vmatprep.subr.bf16.mxu0 0
    %325 = vmatpush1.bf16.msra.mxu0 %v238
    %326 = vmatprep.subr.bf16.mxu0 0
    %327 = vmatpush1.bf16.msra.mxu0 0
    %328 = vmatprep.subr.bf16.mxu0 0
    %329 = vmatpush1.bf16.msra.mxu0 0
    %330 = vmatprep.subr.bf16.mxu0 0
    %331 = vmatpush1.bf16.msra.mxu0 0
    %332 = vmatprep.subr.bf16.mxu0 0
    %333 = vmatpush1.bf16.msra.mxu0 0
    %334 = vmatprep.subr.bf16.mxu0 0
    %335 = vmatpush1.bf16.msra.mxu0 0
    %336 = vmatprep.subr.bf16.mxu0 0
    %337 = vmatpush1.bf16.msra.mxu0 0
    %338 = vmatprep.subr.bf16.mxu0 0
    %339 = vmatpush1.bf16.msra.mxu0 0
    %340 = vmatprep.mubr.bf16.mxu0 %v266
    %341 = vmatmul.mubr.bf16.gmra.mrb[0].mxu0 %v109
    %v342 = vpop.f32.mrb[0].mxu0
    %v343 = vadd.f32 %v303, %v342
    %v344 = vpop.f32.mrb[0].mxu0
    %v345 = vpop.f32.mrb[0].mxu0
    %v346 = vpop.f32.mrb[0].mxu0
    %347 = vdwg.mxu0
    %v348 = vmax.f32 %v343, 0.0
    %v349 = vpack.c.bf16 %v348, %v348
    %v350 = vld [vmem:[%s3] sm:$0xf]
    %v351 = vld [vmem:[%s3 + $0x4] sm:$0xf]
    %v352 = vld [vmem:[%s3 + $0x8] sm:$0xf]
    %v353 = vld [vmem:[%s3 + $0xc] sm:$0xf]
    %v354 = vld [vmem:[%s3 + $0x10] sm:$0xf]
    %v355 = vld [vmem:[%s3 + $0x14] sm:$0xf]
    %v356 = vld [vmem:[%s3 + $0x18] sm:$0xf]
    %v357 = vld [vmem:[%s3 + $0x1c] sm:$0xf]
    %v358 = vld [vmem:[%s3 + $0x20] sm:$0xf]
    %v359 = vld [vmem:[%s3 + $0x24] sm:$0xf]
    %v360 = vld [vmem:[%s3 + $0x28] sm:$0xf]
    %v361 = vld [vmem:[%s3 + $0x2c] sm:$0xf]
    %v362 = vld [vmem:[%s3 + $0x30] sm:$0xf]
    %v363 = vld [vmem:[%s3 + $0x34] sm:$0xf]
    %v364 = vld [vmem:[%s3 + $0x38] sm:$0xf]
    %v365 = vld [vmem:[%s3 + $0x3c] sm:$0xf]
    %v366 = vld [vmem:[%s4] sm:$0x1]
    %v368 = vlaneseq
    %v369 = vshrl.u32 %v368, 7
    %v370 = vsub.s32 0, %v369
    %v371 = vrot.slane %v366, %v370
    %v389 = vunpack.c.l.b16 %v350
    %v390 = vunpack.c.l.b16 %v351
    %v391 = vunpack.c.l.b16 %v352
    %v392 = vunpack.c.l.b16 %v353
    %v393 = vunpack.c.l.b16 %v354
    %v394 = vunpack.c.l.b16 %v355
    %v395 = vunpack.c.l.b16 %v356
    %v396 = vunpack.c.l.b16 %v357
    %v397 = vunpack.c.l.b16 %v358
    %v398 = vunpack.c.l.b16 %v359
    %v399 = vunpack.c.l.b16 %v360
    %v400 = vunpack.c.l.b16 %v361
    %v401 = vunpack.c.l.b16 %v362
    %v402 = vunpack.c.l.b16 %v363
    %v403 = vunpack.c.l.b16 %v364
    %v404 = vunpack.c.l.b16 %v365
    %v405 = vpack.c.b16 %v390, %v389
    %v406 = vpack.c.b16 %v392, %v391
    %v407 = vpack.c.b16 %v394, %v393
    %v408 = vpack.c.b16 %v396, %v395
    %v409 = vpack.c.b16 %v398, %v397
    %v410 = vpack.c.b16 %v400, %v399
    %v411 = vpack.c.b16 %v402, %v401
    %v412 = vpack.c.b16 %v404, %v403
    %421 = vmatprep.subr.bf16.mxu0 0
    %422 = vmatpush1.bf16.msra.mxu0 %v405
    %423 = vmatprep.subr.bf16.mxu0 0
    %424 = vmatpush1.bf16.msra.mxu0 %v406
    %425 = vmatprep.subr.bf16.mxu0 0
    %426 = vmatpush1.bf16.msra.mxu0 %v407
    %427 = vmatprep.subr.bf16.mxu0 0
    %428 = vmatpush1.bf16.msra.mxu0 %v408
    %429 = vmatprep.subr.bf16.mxu0 0
    %430 = vmatpush1.bf16.msra.mxu0 %v409
    %431 = vmatprep.subr.bf16.mxu0 0
    %432 = vmatpush1.bf16.msra.mxu0 %v410
    %433 = vmatprep.subr.bf16.mxu0 0
    %434 = vmatpush1.bf16.msra.mxu0 %v411
    %435 = vmatprep.subr.bf16.mxu0 0
    %436 = vmatpush1.bf16.msra.mxu0 %v412
    %437 = vmatprep.subr.bf16.mxu0 0
    %438 = vmatpush1.bf16.msra.mxu0 0
    %439 = vmatprep.subr.bf16.mxu0 0
    %440 = vmatpush1.bf16.msra.mxu0 0
    %441 = vmatprep.subr.bf16.mxu0 0
    %442 = vmatpush1.bf16.msra.mxu0 0
    %443 = vmatprep.subr.bf16.mxu0 0
    %444 = vmatpush1.bf16.msra.mxu0 0
    %445 = vmatprep.subr.bf16.mxu0 0
    %446 = vmatpush1.bf16.msra.mxu0 0
    %447 = vmatprep.subr.bf16.mxu0 0
    %448 = vmatpush1.bf16.msra.mxu0 0
    %449 = vmatprep.subr.bf16.mxu0 0
    %450 = vmatpush1.bf16.msra.mxu0 0
    %451 = vmatprep.subr.bf16.mxu0 0
    %452 = vmatpush1.bf16.msra.mxu0 0
    %453 = vmatprep.mubr.bf16.mxu0 0
    %454 = vmatmul.mubr.bf16.gmra.mrb[0].mxu0 %v349
    %v455 = vpop.f32.mrb[0].mxu0
    %v456 = vadd.f32 %v371, %v455
    %v457 = vpop.f32.mrb[0].mxu0
    %v458 = vpop.f32.mrb[0].mxu0
    %v459 = vpop.f32.mrb[0].mxu0
    %460 = vdwg.mxu0
    %v461 = vmax.f32 %v456, 0.0
    %v462 = vpack.c.bf16 %v461, %v461
    %v463 = vld [vmem:[%s5] sm:$0xf]
    %v464 = vld [vmem:[%s5 + $0x4] sm:$0xf]
    %v465 = vld [vmem:[%s5 + $0x8] sm:$0xf]
    %v466 = vld [vmem:[%s5 + $0xc] sm:$0xf]
    %v467 = vld [vmem:[%s5 + $0x10] sm:$0xf]
    %v468 = vld [vmem:[%s5 + $0x14] sm:$0xf]
    %v469 = vld [vmem:[%s5 + $0x18] sm:$0xf]
    %v470 = vld [vmem:[%s5 + $0x1c] sm:$0xf]
    %v471 = vld [vmem:[%s5 + $0x20] sm:$0xf]
    %v472 = vld [vmem:[%s5 + $0x24] sm:$0xf]
    %v473 = vld [vmem:[%s5 + $0x28] sm:$0xf]
    %v474 = vld [vmem:[%s5 + $0x2c] sm:$0xf]
    %v475 = vld [vmem:[%s5 + $0x30] sm:$0xf]
    %v476 = vld [vmem:[%s5 + $0x34] sm:$0xf]
    %v477 = vld [vmem:[%s5 + $0x38] sm:$0xf]
    %v478 = vld [vmem:[%s5 + $0x3c] sm:$0xf]
    %v479 = vld [vmem:[%s6] sm:$0x1]
    %v481 = vlaneseq
    %v482 = vshrl.u32 %v481, 7
    %v483 = vsub.s32 0, %v482
    %v484 = vrot.slane %v479, %v483
    %v502 = vunpack.c.l.b16 %v463
    %v503 = vunpack.c.l.b16 %v464
    %v504 = vunpack.c.l.b16 %v465
    %v505 = vunpack.c.l.b16 %v466
    %v506 = vunpack.c.l.b16 %v467
    %v507 = vunpack.c.l.b16 %v468
    %v508 = vunpack.c.l.b16 %v469
    %v509 = vunpack.c.l.b16 %v470
    %v510 = vunpack.c.l.b16 %v471
    %v511 = vunpack.c.l.b16 %v472
    %v512 = vunpack.c.l.b16 %v473
    %v513 = vunpack.c.l.b16 %v474
    %v514 = vunpack.c.l.b16 %v475
    %v515 = vunpack.c.l.b16 %v476
    %v516 = vunpack.c.l.b16 %v477
    %v517 = vunpack.c.l.b16 %v478
    %v518 = vpack.c.b16 %v503, %v502
    %v519 = vpack.c.b16 %v505, %v504
    %v520 = vpack.c.b16 %v507, %v506
    %v521 = vpack.c.b16 %v509, %v508
    %v522 = vpack.c.b16 %v511, %v510
    %v523 = vpack.c.b16 %v513, %v512
    %v524 = vpack.c.b16 %v515, %v514
    %v525 = vpack.c.b16 %v517, %v516
    %534 = vmatprep.subr.bf16.mxu0 0
    %535 = vmatpush1.bf16.msra.mxu0 %v518
    %536 = vmatprep.subr.bf16.mxu0 0
    %537 = vmatpush1.bf16.msra.mxu0 %v519
    %538 = vmatprep.subr.bf16.mxu0 0
    %539 = vmatpush1.bf16.msra.mxu0 %v520
    %540 = vmatprep.subr.bf16.mxu0 0
    %541 = vmatpush1.bf16.msra.mxu0 %v521
    %542 = vmatprep.subr.bf16.mxu0 0
    %543 = vmatpush1.bf16.msra.mxu0 %v522
    %544 = vmatprep.subr.bf16.mxu0 0
    %545 = vmatpush1.bf16.msra.mxu0 %v523
    %546 = vmatprep.subr.bf16.mxu0 0
    %547 = vmatpush1.bf16.msra.mxu0 %v524
    %548 = vmatprep.subr.bf16.mxu0 0
    %549 = vmatpush1.bf16.msra.mxu0 %v525
    %550 = vmatprep.subr.bf16.mxu0 0
    %551 = vmatpush1.bf16.msra.mxu0 0
    %552 = vmatprep.subr.bf16.mxu0 0
    %553 = vmatpush1.bf16.msra.mxu0 0
    %554 = vmatprep.subr.bf16.mxu0 0
    %555 = vmatpush1.bf16.msra.mxu0 0
    %556 = vmatprep.subr.bf16.mxu0 0
    %557 = vmatpush1.bf16.msra.mxu0 0
    %558 = vmatprep.subr.bf16.mxu0 0
    %559 = vmatpush1.bf16.msra.mxu0 0
    %560 = vmatprep.subr.bf16.mxu0 0
    %561 = vmatpush1.bf16.msra.mxu0 0
    %562 = vmatprep.subr.bf16.mxu0 0
    %563 = vmatpush1.bf16.msra.mxu0 0
    %564 = vmatprep.subr.bf16.mxu0 0
    %565 = vmatpush1.bf16.msra.mxu0 0
    %566 = vmatprep.mubr.bf16.mxu0 0
    %567 = vmatmul.mubr.bf16.gmra.mrb[0].mxu0 %v462
    %v568 = vpop.f32.mrb[0].mxu0
    %v569 = vadd.f32 %v484, %v568
    %v570 = vpop.f32.mrb[0].mxu0
    %v571 = vpop.f32.mrb[0].mxu0
    %v572 = vpop.f32.mrb[0].mxu0
    %573 = vdwg.mxu0
    %574 = vst [vmem:[#allocation2] sm:$0x3] %v569
    // Predicated region
    $region30: #{lenet5_forward.5} parent=1 // pred_check
      _
    $region31: #{lenet5_forward.5} parent=1 // pred_check_branch
      %576 = sbr.rel (0) target = $region33
    $region32: #{lenet5_forward.5} parent=1 // pred_region
      %s578 = ssub.s32 32, 32
      %579 = vsyncadd [#allocation3], %s578
      %s581 = sshll.u32 [#allocation2], 4
      %s582 = int_to_ptr.vmem [resolvable:$true] %s581
      %584 = dma.vmem_to_hbm [thread:$0]  %s582, 32, %s7, [#allocation3]
    $region33: #{lenet5_forward.5} parent=1 // pred_fallthru
      _
    // Predicated region
    $region34: #{lenet5_forward.5} parent=1 // pred_check
      _
    $region35: #{lenet5_forward.5} parent=1 // pred_check_branch
      %586 = sbr.rel (0) target = $region37
    $region36: #{lenet5_forward.5} parent=1 // pred_region
      %587 = dma.done [#allocation3], 32
    $region37: #{lenet5_forward.5} parent=1 // pred_fallthru
      _
    %588 = vsyncpa [#allocation3], 1

</llo_original>
